<compile_context>
chip_gen: v7x
topology: tpu7x:2x2x1
jax: 0.10.0
libtpu: 0.0.40
codegen_flags: <defaults>
</compile_context>

<pallas_src>
import functools

import jax
import jax.numpy as jnp
from jax.experimental import pallas as pl
from jax.experimental.pallas import tpu as pltpu


# ---------------------------------------------------------------------------
# Kernels
# ---------------------------------------------------------------------------
def _accumulate_conv(main_ref, halo_ref, w_ref, acc_ref, *, ks, th, w_out, cin):
    """Accumulate all ks*ks conv taps of one row tile into acc_ref (f32).

    main_ref: (1, th, W_pad, Cin)   non-overlapping row tile (read once)
    halo_ref: (1, ks-1, W_pad, Cin) the ks-1 padded rows just below the tile
    w_ref   : (ks, ks, Cin, Cpad)   flipped ConvTranspose weights, bf16
    acc_ref : (th*w_out, Cpad)      f32 scratch accumulator
    """
    acc_ref[...] = jnp.zeros_like(acc_ref)
    for kh in range(ks):
        hi = th - kh                       # output rows fed by the main block
        for kw in range(ks):
            w_tap = w_ref[kh, kw]                                  # (Cin, Cpad)
            m = main_ref[0, kh:kh + hi, kw:kw + w_out, :]
            m = m.reshape(hi * w_out, cin)
            acc_ref[pl.ds(0, hi * w_out), :] += jnp.dot(
                m, w_tap, preferred_element_type=jnp.float32)
            if kh > 0:                     # last kh output rows need the halo
                h = halo_ref[0, 0:kh, kw:kw + w_out, :].reshape(kh * w_out, cin)
                acc_ref[pl.ds(hi * w_out, kh * w_out), :] += jnp.dot(
                    h, w_tap, preferred_element_type=jnp.float32)


def _stats_kernel(main_ref, halo_ref, w_ref, stats_ref, acc_ref,
                  *, ks, th, w_out, cin):
    """Pass 1: per-tile BatchNorm partials (mean, centered M2) per channel."""
    _accumulate_conv(main_ref, halo_ref, w_ref, acc_ref,
                     ks=ks, th=th, w_out=w_out, cin=cin)
    y = acc_ref[...]
    mean = jnp.mean(y, axis=0, keepdims=True)                   # (1, Cpad)
    m2 = jnp.sum((y - mean) ** 2, axis=0, keepdims=True)        # (1, Cpad)
    fill = jnp.zeros((6, y.shape[1]), jnp.float32)
    stats_ref[...] = jnp.concatenate([mean, m2, fill], axis=0)  # (8, Cpad)


def _norm_relu_kernel(main_ref, halo_ref, w_ref, scale_ref, shift_ref,
                      o_ref, acc_ref, *, ks, th, w_out, cin):
    """Pass 2: recompute conv tile, apply BN scale/shift + ReLU."""
    _accumulate_conv(main_ref, halo_ref, w_ref, acc_ref,
                     ks=ks, th=th, w_out=w_out, cin=cin)
    o_ref[...] = jnp.maximum(acc_ref[...] * scale_ref[...] + shift_ref[...],
                             0.0).astype(o_ref.dtype)


# ---------------------------------------------------------------------------
# Per-generation tuning (VMEM scoped limit, output rows per tile)
# ---------------------------------------------------------------------------
def _device_tuning():
    try:
        kind = jax.devices()[0].device_kind.lower()
    except Exception:  # pragma: no cover
        kind = ""
    if "v5" in kind or "v6" in kind:
        return 96 * 1024 * 1024, 2048   # 128 MiB physical VMEM: big tiles
    if "v7" in kind:
        return 44 * 1024 * 1024, 1024   # 64 MiB / TensorCore: leave headroom
    return 48 * 1024 * 1024, 1024       # unknown chip: conservative


# ---------------------------------------------------------------------------
# Wrapper
# ---------------------------------------------------------------------------
def up_conv_block_forward(x_nchw, wt, bias, gamma, beta, *,
                          ks=3, s=1, pad=1, op=0, eps=1e-5,
                          block_rows=None, vmem_limit_bytes=None,
                          out_dtype=jnp.float32):
    """Forward pass of up_conv_block (default stride-1 configuration)."""
    # stride-1 / output_padding-0 ConvTranspose2d == regular conv with a
    # spatially flipped kernel, swapped channel axes and padding ks-1-pad.
    assert s == 1 and op == 0, "kernel implements the default stride-1 case"
    assert ks >= 2
    # TODO(synk): generalize to stride>1 / output_padding>0 (input dilation).
    N, Cin, H, W = x_nchw.shape
    Cout = wt.shape[1]
    cp = ks - 1 - pad
    H_out = H + ks - 1 - 2 * pad
    W_out = W + ks - 1 - 2 * pad
    Cpad = ((Cout + 127) // 128) * 128              # lane-dense channels

    dflt_vmem, dflt_rows = _device_tuning()
    if vmem_limit_bytes is None:
        vmem_limit_bytes = dflt_vmem
    if block_rows is None:
        block_rows = dflt_rows

    # --- weights / per-channel vectors (tiny XLA glue) ----------------------
    # ConvTranspose2d stores (Cin, Cout, kH, kW) -> flipped (ks, ks, Cin, Cpad)
    w_conv = jnp.transpose(jnp.flip(wt, axis=(2, 3)), (2, 3, 0, 1))
    w_conv = jnp.pad(w_conv, ((0, 0), (0, 0), (0, 0), (0, Cpad - Cout)))
    w_conv = w_conv.astype(jnp.bfloat16)
    b_pad = jnp.pad(bias, (0, Cpad - Cout)).reshape(1, Cpad).astype(jnp.float32)
    g_pad = jnp.pad(gamma, (0, Cpad - Cout)).reshape(1, Cpad).astype(jnp.float32)
    bt_pad = jnp.pad(beta, (0, Cpad - Cout)).reshape(1, Cpad).astype(jnp.float32)

    # --- input: NCHW -> NHWC bf16, spatially padded ONCE ---------------------
    x_nhwc = jnp.transpose(x_nchw, (0, 2, 3, 1)).astype(jnp.bfloat16)
    x_sp = jnp.pad(x_nhwc, ((0, 0), (cp, cp), (cp, cp), (0, 0)))
    W_padded = W + 2 * cp                           # = W_out + ks - 1
    # padded height = H_out + ks - 1; main tiles use rows [0, H_out)

    # --- tile height th over output rows (th | H_out, rows % 8 == 0) --------
    cands = [d for d in range(1, H_out + 1)
             if H_out % d == 0 and (d * W_out) % 8 == 0
             and d * W_out <= block_rows]
    th = max(cands) if cands else H_out   # TODO(synk): masked ragged last tile
    n_h = H_out // th
    if N * n_h < 2:                        # keep >=2 grid steps (v7x dual-TC)
        smaller = [d for d in cands if d < th]
        if smaller:
            th = max(smaller)
            n_h = H_out // th
    nb = N * n_h
    rows = th * W_out

    # --- halo: the ks-1 padded rows directly below each tile (tiny dup) -----
    halo = jnp.stack(
        [x_sp[:, (i + 1) * th:(i + 1) * th + ks - 1] for i in range(n_h)],
        axis=1).reshape(nb, ks - 1, W_padded, Cin)

    main_spec = pl.BlockSpec((1, th, W_padded, Cin), lambda n, i: (n, i, 0, 0))
    halo_spec = pl.BlockSpec((1, ks - 1, W_padded, Cin),
                             lambda n, i: (n * n_h + i, 0, 0, 0))
    w_spec = pl.BlockSpec((ks, ks, Cin, Cpad), lambda n, i: (0, 0, 0, 0))
    vec_spec = pl.BlockSpec((1, Cpad), lambda n, i: (0, 0))
    cparams = pltpu.CompilerParams(
        dimension_semantics=("parallel", "parallel"),
        vmem_limit_bytes=vmem_limit_bytes)
    kern_kwargs = dict(ks=ks, th=th, w_out=W_out, cin=Cin)

    # --- pass 1: per-tile BN statistics --------------------------------------
    stats = pl.pallas_call(
        functools.partial(_stats_kernel, **kern_kwargs),
        grid=(N, n_h),
        in_specs=[main_spec, halo_spec, w_spec],
        out_specs=pl.BlockSpec((8, Cpad), lambda n, i: (n * n_h + i, 0)),
        out_shape=jax.ShapeDtypeStruct((nb * 8, Cpad), jnp.float32),
        scratch_shapes=[pltpu.VMEM((rows, Cpad), jnp.float32)],
        compiler_params=cparams,
    )(x_sp, halo, w_conv)

    stats = stats.reshape(nb, 8, Cpad)
    blk_mean, blk_m2 = stats[:, 0, :], stats[:, 1, :]            # (nb, Cpad)
    # Chan parallel-variance combine (equal-size tiles: th | H_out).
    mean = jnp.mean(blk_mean, axis=0, keepdims=True)             # (1, Cpad)
    m2 = (jnp.sum(blk_m2, axis=0, keepdims=True)
          + rows * jnp.sum((blk_mean - mean) ** 2, axis=0, keepdims=True))
    var = m2 / (nb * rows)        # biased variance = BatchNorm training mode
    # Conv bias enters the mean only (it cancels out of the normalized output);
    # fold it into scale/shift so the kernels never touch it.
    mean_full = mean + b_pad
    inv = jax.lax.rsqrt(var + eps)
    scale = (g_pad * inv).astype(jnp.float32)                    # (1, Cpad)
    shift = (bt_pad + (b_pad - mean_full) * scale).astype(jnp.float32)
    # TODO(synk): eval-mode BatchNorm (running stats) would skip pass 1 and
    # feed precomputed scale/shift directly into pass 2.

    # --- pass 2: conv recomputed + normalize + ReLU --------------------------
    out_flat = pl.pallas_call(
        functools.partial(_norm_relu_kernel, **kern_kwargs),
        grid=(N, n_h),
        in_specs=[main_spec, halo_spec, w_spec, vec_spec, vec_spec],
        out_specs=pl.BlockSpec((rows, Cpad), lambda n, i: (n * n_h + i, 0)),
        out_shape=jax.ShapeDtypeStruct((nb * rows, Cpad), out_dtype),
        scratch_shapes=[pltpu.VMEM((rows, Cpad), jnp.float32)],
        compiler_params=cparams,
    )(x_sp, halo, w_conv, scale, shift)

    out = out_flat[:, :Cout].reshape(N, H_out, W_out, Cout)
    return jnp.transpose(out, (0, 3, 1, 2)).astype(out_dtype)    # back to NCHW


# ---------------------------------------------------------------------------
# Pure-JAX f32 reference (module semantics) for the correctness check
# ---------------------------------------------------------------------------
def _reference(x_nchw, wt, bias, gamma, beta, *, ks=3, pad=1, eps=1e-5):
    N, Cin, H, W = x_nchw.shape
    Cout = wt.shape[1]
    cp = ks - 1 - pad
    H_out, W_out = H + ks - 1 - 2 * pad, W + ks - 1 - 2 * pad
    w_conv = jnp.transpose(jnp.flip(wt, axis=(2, 3)), (2, 3, 0, 1))
    x_nhwc = jnp.transpose(x_nchw, (0, 2, 3, 1))
    x_pad = jnp.pad(x_nhwc, ((0, 0), (cp, cp), (cp, cp), (0, 0)))
    acc = jnp.zeros((N, H_out, W_out, Cout), jnp.float32)
    for kh in range(ks):
        for kw in range(ks):
            acc += jnp.einsum('nhwc,co->nhwo',
                              x_pad[:, kh:kh + H_out, kw:kw + W_out, :],
                              w_conv[kh, kw])
    y = acc + bias
    mean = y.mean(axis=(0, 1, 2), keepdims=True)
    var = ((y - mean) ** 2).mean(axis=(0, 1, 2), keepdims=True)
    y = (y - mean) / jnp.sqrt(var + eps) * gamma + beta
    y = jnp.maximum(y, 0.0)
    return jnp.transpose(y, (0, 3, 1, 2))


if __name__ == "__main__":
    key = jax.random.PRNGKey(0)
    k1, k2, k3, k4, k5 = jax.random.split(key, 5)
    N, Cin, Cout, H, W, ks = 2, 4, 8, 16, 16, 3

    x = jax.random.normal(k1, (N, Cin, H, W), jnp.float32)
    # ConvTranspose2d weight shape: (in_ch, out_ch, kH, kW); deterministic init.
    wt = 0.1 * jax.random.normal(k2, (Cin, Cout, ks, ks), jnp.float32)
    bias = 0.1 * jax.random.normal(k3, (Cout,), jnp.float32)
    gamma = 1.0 + 0.1 * jax.random.normal(k4, (Cout,), jnp.float32)
    beta = 0.1 * jax.random.normal(k5, (Cout,), jnp.float32)

    # block_rows=128 -> th=8 rows/tile, 2x2 grid at this toy size (exercises
    # the halo path and multi-step pipeline); production shapes use the
    # per-generation defaults (~1-2K output rows per tile).
    out = up_conv_block_forward(x, wt, bias, gamma, beta,
                                ks=ks, s=1, pad=1, op=0, block_rows=128)
    out = jax.block_until_ready(out)

    ref = _reference(x, wt, bias, gamma, beta, ks=ks, pad=1)
    assert out.shape == (N, Cout, H, W), out.shape
    # Tolerance accounts for bf16 matmul inputs (f32 accumulation) vs the
    # pure-f32 reference; the BN-normalized output is O(1).
    err = float(jnp.max(jnp.abs(out - ref)))
    assert jnp.allclose(out, ref, rtol=2e-2, atol=2e-2), err
    print("KERNEL_OK")
</pallas_src>

<mosaic_0001>
module attributes {stable_mosaic.version = 11 : i64} {
  func.func @_stats_kernel(%arg0: i32, %arg1: i32, %arg2: memref<1x8x18x4xbf16, #tpu.memory_space<vmem>>, %arg3: memref<1x2x18x4xbf16, #tpu.memory_space<vmem>>, %arg4: memref<3x3x4x128xbf16, #tpu.memory_space<vmem>>, %arg5: memref<8x128xf32, #tpu.memory_space<vmem>>, %arg6: memref<128x128xf32, #tpu.memory_space<vmem>>) attributes {dimension_semantics = [#tpu.dimension_semantics<parallel>, #tpu.dimension_semantics<parallel>], iteration_bounds = array<i64: 2, 2>, scalar_prefetch = 0 : i64, scratch_operands = 1 : i64, tpu.core_type = #tpu.core_type<tc>, window_params = [{transform_indices = @transform_0, window_bounds = array<i64: 1, 8, 18, 4>}, {transform_indices = @transform_1, window_bounds = array<i64: 1, 2, 18, 4>}, {pipeline_mode = #tpu.pipeline_mode<synchronous>, transform_indices = @transform_2, window_bounds = array<i64: 3, 3, 4, 128>}, {transform_indices = @transform_3, window_bounds = array<i64: 8, 128>}]} {
    %cst = arith.constant 0.000000e+00 : f32
    %0 = vector.broadcast %cst : f32 to vector<128x128xf32>
    %c0 = arith.constant 0 : index
    %c0_0 = arith.constant 0 : index
    %1 = vector.load %arg6[%c0, %c0_0] : memref<128x128xf32, #tpu.memory_space<vmem>>, vector<128x128xf32>
    tpu.vector_store %arg6[%c0, %c0_0], %0 {strides = array<i32>} : memref<128x128xf32, #tpu.memory_space<vmem>>, vector<128x128xf32>,
    %c0_1 = arith.constant 0 : index
    %c0_2 = arith.constant 0 : index
    %c0_3 = arith.constant 0 : index
    %c0_4 = arith.constant 0 : index
    %2 = vector.load %arg4[%c0_1, %c0_2, %c0_3, %c0_4] : memref<3x3x4x128xbf16, #tpu.memory_space<vmem>>, vector<1x1x4x128xbf16>
    %3 = vector.shape_cast %2 : vector<1x1x4x128xbf16> to vector<4x128xbf16>
    %c0_5 = arith.constant 0 : index
    %c0_6 = arith.constant 0 : index
    %c0_7 = arith.constant 0 : index
    %c0_8 = arith.constant 0 : index
    %4 = vector.load %arg2[%c0_5, %c0_6, %c0_7, %c0_8] : memref<1x8x18x4xbf16, #tpu.memory_space<vmem>>, vector<1x8x16x4xbf16>
    %5 = vector.shape_cast %4 : vector<1x8x16x4xbf16> to vector<8x16x4xbf16>
    %6 = vector.shape_cast %5 : vector<8x16x4xbf16> to vector<128x4xbf16>
    %c0_9 = arith.constant 0 : index
    %c0_10 = arith.constant 0 : index
    %7 = vector.load %arg6[%c0_9, %c0_10] : memref<128x128xf32, #tpu.memory_space<vmem>>, vector<128x128xf32>
    %cst_11 = arith.constant dense<0.000000e+00> : vector<128x128xf32>
    %8 = tpu.matmul %6, %3, %cst_11 {dimension_numbers = #tpu.dot_dimension_numbers<[1], [0], [0], [1], [0, 0, 1, 1], [], []>} : vector<128x4xbf16>, vector<4x128xbf16>, vector<128x128xf32> -> vector<128x128xf32>
    %9 = arith.addf %7, %8 : vector<128x128xf32>
    %c0_12 = arith.constant 0 : index
    %c0_13 = arith.constant 0 : index
    %10 = vector.load %arg6[%c0_12, %c0_13] : memref<128x128xf32, #tpu.memory_space<vmem>>, vector<128x128xf32>
    tpu.vector_store %arg6[%c0_12, %c0_13], %9 {strides = array<i32>} : memref<128x128xf32, #tpu.memory_space<vmem>>, vector<128x128xf32>,
    %c0_14 = arith.constant 0 : index
    %c1 = arith.constant 1 : index
    %c0_15 = arith.constant 0 : index
    %c0_16 = arith.constant 0 : index
    %11 = vector.load %arg4[%c0_14, %c1, %c0_15, %c0_16] : memref<3x3x4x128xbf16, #tpu.memory_space<vmem>>, vector<1x1x4x128xbf16>
    %12 = vector.shape_cast %11 : vector<1x1x4x128xbf16> to vector<4x128xbf16>
    %c0_17 = arith.constant 0 : index
    %c0_18 = arith.constant 0 : index
    %c1_19 = arith.constant 1 : index
    %c0_20 = arith.constant 0 : index
    %13 = vector.load %arg2[%c0_17, %c0_18, %c1_19, %c0_20] : memref<1x8x18x4xbf16, #tpu.memory_space<vmem>>, vector<1x8x16x4xbf16>
    %14 = vector.shape_cast %13 : vector<1x8x16x4xbf16> to vector<8x16x4xbf16>
    %15 = vector.shape_cast %14 : vector<8x16x4xbf16> to vector<128x4xbf16>
    %c0_21 = arith.constant 0 : index
    %c0_22 = arith.constant 0 : index
    %16 = vector.load %arg6[%c0_21, %c0_22] : memref<128x128xf32, #tpu.memory_space<vmem>>, vector<128x128xf32>
    %cst_23 = arith.constant dense<0.000000e+00> : vector<128x128xf32>
    %17 = tpu.matmul %15, %12, %cst_23 {dimension_numbers = #tpu.dot_dimension_numbers<[1], [0], [0], [1], [0, 0, 1, 1], [], []>} : vector<128x4xbf16>, vector<4x128xbf16>, vector<128x128xf32> -> vector<128x128xf32>
    %18 = arith.addf %16, %17 : vector<128x128xf32>
    %c0_24 = arith.constant 0 : index
    %c0_25 = arith.constant 0 : index
    %19 = vector.load %arg6[%c0_24, %c0_25] : memref<128x128xf32, #tpu.memory_space<vmem>>, vector<128x128xf32>
    tpu.vector_store %arg6[%c0_24, %c0_25], %18 {strides = array<i32>} : memref<128x128xf32, #tpu.memory_space<vmem>>, vector<128x128xf32>,
    %c0_26 = arith.constant 0 : index
    %c2 = arith.constant 2 : index
    %c0_27 = arith.constant 0 : index
    %c0_28 = arith.constant 0 : index
    %20 = vector.load %arg4[%c0_26, %c2, %c0_27, %c0_28] : memref<3x3x4x128xbf16, #tpu.memory_space<vmem>>, vector<1x1x4x128xbf16>
    %21 = vector.shape_cast %20 : vector<1x1x4x128xbf16> to vector<4x128xbf16>
    %c0_29 = arith.constant 0 : index
    %c0_30 = arith.constant 0 : index
    %c2_31 = arith.constant 2 : index
    %c0_32 = arith.constant 0 : index
    %22 = vector.load %arg2[%c0_29, %c0_30, %c2_31, %c0_32] : memref<1x8x18x4xbf16, #tpu.memory_space<vmem>>, vector<1x8x16x4xbf16>
    %23 = vector.shape_cast %22 : vector<1x8x16x4xbf16> to vector<8x16x4xbf16>
    %24 = vector.shape_cast %23 : vector<8x16x4xbf16> to vector<128x4xbf16>
    %c0_33 = arith.constant 0 : index
    %c0_34 = arith.constant 0 : index
    %25 = vector.load %arg6[%c0_33, %c0_34] : memref<128x128xf32, #tpu.memory_space<vmem>>, vector<128x128xf32>
    %cst_35 = arith.constant dense<0.000000e+00> : vector<128x128xf32>
    %26 = tpu.matmul %24, %21, %cst_35 {dimension_numbers = #tpu.dot_dimension_numbers<[1], [0], [0], [1], [0, 0, 1, 1], [], []>} : vector<128x4xbf16>, vector<4x128xbf16>, vector<128x128xf32> -> vector<128x128xf32>
    %27 = arith.addf %25, %26 : vector<128x128xf32>
    %c0_36 = arith.constant 0 : index
    %c0_37 = arith.constant 0 : index
    %28 = vector.load %arg6[%c0_36, %c0_37] : memref<128x128xf32, #tpu.memory_space<vmem>>, vector<128x128xf32>
    tpu.vector_store %arg6[%c0_36, %c0_37], %27 {strides = array<i32>} : memref<128x128xf32, #tpu.memory_space<vmem>>, vector<128x128xf32>,
    %c1_38 = arith.constant 1 : index
    %c0_39 = arith.constant 0 : index
    %c0_40 = arith.constant 0 : index
    %c0_41 = arith.constant 0 : index
    %29 = vector.load %arg4[%c1_38, %c0_39, %c0_40, %c0_41] : memref<3x3x4x128xbf16, #tpu.memory_space<vmem>>, vector<1x1x4x128xbf16>
    %30 = vector.shape_cast %29 : vector<1x1x4x128xbf16> to vector<4x128xbf16>
    %c0_42 = arith.constant 0 : index
    %c1_43 = arith.constant 1 : index
    %c0_44 = arith.constant 0 : index
    %c0_45 = arith.constant 0 : index
    %31 = vector.load %arg2[%c0_42, %c1_43, %c0_44, %c0_45] : memref<1x8x18x4xbf16, #tpu.memory_space<vmem>>, vector<1x7x16x4xbf16>
    %32 = vector.shape_cast %31 : vector<1x7x16x4xbf16> to vector<7x16x4xbf16>
    %33 = vector.shape_cast %32 : vector<7x16x4xbf16> to vector<112x4xbf16>
    %c0_46 = arith.constant 0 : index
    %c0_47 = arith.constant 0 : index
    %34 = vector.load %arg6[%c0_46, %c0_47] : memref<128x128xf32, #tpu.memory_space<vmem>>, vector<112x128xf32>
    %cst_48 = arith.constant dense<0.000000e+00> : vector<112x128xf32>
    %35 = tpu.matmul %33, %30, %cst_48 {dimension_numbers = #tpu.dot_dimension_numbers<[1], [0], [0], [1], [0, 0, 1, 1], [], []>} : vector<112x4xbf16>, vector<4x128xbf16>, vector<112x128xf32> -> vector<112x128xf32>
    %36 = arith.addf %34, %35 : vector<112x128xf32>
    %c0_49 = arith.constant 0 : index
    %c0_50 = arith.constant 0 : index
    %37 = vector.load %arg6[%c0_49, %c0_50] : memref<128x128xf32, #tpu.memory_space<vmem>>, vector<112x128xf32>
    tpu.vector_store %arg6[%c0_49, %c0_50], %36 {strides = array<i32>} : memref<128x128xf32, #tpu.memory_space<vmem>>, vector<112x128xf32>,
    %c0_51 = arith.constant 0 : index
    %c0_52 = arith.constant 0 : index
    %c0_53 = arith.constant 0 : index
    %c0_54 = arith.constant 0 : index
    %38 = vector.load %arg3[%c0_51, %c0_52, %c0_53, %c0_54] : memref<1x2x18x4xbf16, #tpu.memory_space<vmem>>, vector<1x1x16x4xbf16>
    %39 = vector.shape_cast %38 : vector<1x1x16x4xbf16> to vector<1x16x4xbf16>
    %40 = vector.shape_cast %39 : vector<1x16x4xbf16> to vector<16x4xbf16>
    %c112 = arith.constant 112 : index
    %c0_55 = arith.constant 0 : index
    %41 = vector.load %arg6[%c112, %c0_55] : memref<128x128xf32, #tpu.memory_space<vmem>>, vector<16x128xf32>
    %cst_56 = arith.constant dense<0.000000e+00> : vector<16x128xf32>
    %42 = tpu.matmul %40, %30, %cst_56 {dimension_numbers = #tpu.dot_dimension_numbers<[1], [0], [0], [1], [0, 0, 1, 1], [], []>} : vector<16x4xbf16>, vector<4x128xbf16>, vector<16x128xf32> -> vector<16x128xf32>
    %43 = arith.addf %41, %42 : vector<16x128xf32>
    %c112_57 = arith.constant 112 : index
    %c0_58 = arith.constant 0 : index
    %44 = vector.load %arg6[%c112_57, %c0_58] : memref<128x128xf32, #tpu.memory_space<vmem>>, vector<16x128xf32>
    tpu.vector_store %arg6[%c112_57, %c0_58], %43 {strides = array<i32>} : memref<128x128xf32, #tpu.memory_space<vmem>>, vector<16x128xf32>,
    %c1_59 = arith.constant 1 : index
    %c1_60 = arith.constant 1 : index
    %c0_61 = arith.constant 0 : index
    %c0_62 = arith.constant 0 : index
    %45 = vector.load %arg4[%c1_59, %c1_60, %c0_61, %c0_62] : memref<3x3x4x128xbf16, #tpu.memory_space<vmem>>, vector<1x1x4x128xbf16>
    %46 = vector.shape_cast %45 : vector<1x1x4x128xbf16> to vector<4x128xbf16>
    %c0_63 = arith.constant 0 : index
    %c1_64 = arith.constant 1 : index
    %c1_65 = arith.constant 1 : index
    %c0_66 = arith.constant 0 : index
    %47 = vector.load %arg2[%c0_63, %c1_64, %c1_65, %c0_66] : memref<1x8x18x4xbf16, #tpu.memory_space<vmem>>, vector<1x7x16x4xbf16>
    %48 = vector.shape_cast %47 : vector<1x7x16x4xbf16> to vector<7x16x4xbf16>
    %49 = vector.shape_cast %48 : vector<7x16x4xbf16> to vector<112x4xbf16>
    %c0_67 = arith.constant 0 : index
    %c0_68 = arith.constant 0 : index
    %50 = vector.load %arg6[%c0_67, %c0_68] : memref<128x128xf32, #tpu.memory_space<vmem>>, vector<112x128xf32>
    %cst_69 = arith.constant dense<0.000000e+00> : vector<112x128xf32>
    %51 = tpu.matmul %49, %46, %cst_69 {dimension_numbers = #tpu.dot_dimension_numbers<[1], [0], [0], [1], [0, 0, 1, 1], [], []>} : vector<112x4xbf16>, vector<4x128xbf16>, vector<112x128xf32> -> vector<112x128xf32>
    %52 = arith.addf %50, %51 : vector<112x128xf32>
    %c0_70 = arith.constant 0 : index
    %c0_71 = arith.constant 0 : index
    %53 = vector.load %arg6[%c0_70, %c0_71] : memref<128x128xf32, #tpu.memory_space<vmem>>, vector<112x128xf32>
    tpu.vector_store %arg6[%c0_70, %c0_71], %52 {strides = array<i32>} : memref<128x128xf32, #tpu.memory_space<vmem>>, vector<112x128xf32>,
    %c0_72 = arith.constant 0 : index
    %c0_73 = arith.constant 0 : index
    %c1_74 = arith.constant 1 : index
    %c0_75 = arith.constant 0 : index
    %54 = vector.load %arg3[%c0_72, %c0_73, %c1_74, %c0_75] : memref<1x2x18x4xbf16, #tpu.memory_space<vmem>>, vector<1x1x16x4xbf16>
    %55 = vector.shape_cast %54 : vector<1x1x16x4xbf16> to vector<1x16x4xbf16>
    %56 = vector.shape_cast %55 : vector<1x16x4xbf16> to vector<16x4xbf16>
    %c112_76 = arith.constant 112 : index
    %c0_77 = arith.constant 0 : index
    %57 = vector.load %arg6[%c112_76, %c0_77] : memref<128x128xf32, #tpu.memory_space<vmem>>, vector<16x128xf32>
    %cst_78 = arith.constant dense<0.000000e+00> : vector<16x128xf32>
    %58 = tpu.matmul %56, %46, %cst_78 {dimension_numbers = #tpu.dot_dimension_numbers<[1], [0], [0], [1], [0, 0, 1, 1], [], []>} : vector<16x4xbf16>, vector<4x128xbf16>, vector<16x128xf32> -> vector<16x128xf32>
    %59 = arith.addf %57, %58 : vector<16x128xf32>
    %c112_79 = arith.constant 112 : index
    %c0_80 = arith.constant 0 : index
    %60 = vector.load %arg6[%c112_79, %c0_80] : memref<128x128xf32, #tpu.memory_space<vmem>>, vector<16x128xf32>
    tpu.vector_store %arg6[%c112_79, %c0_80], %59 {strides = array<i32>} : memref<128x128xf32, #tpu.memory_space<vmem>>, vector<16x128xf32>,
    %c1_81 = arith.constant 1 : index
    %c2_82 = arith.constant 2 : index
    %c0_83 = arith.constant 0 : index
    %c0_84 = arith.constant 0 : index
    %61 = vector.load %arg4[%c1_81, %c2_82, %c0_83, %c0_84] : memref<3x3x4x128xbf16, #tpu.memory_space<vmem>>, vector<1x1x4x128xbf16>
    %62 = vector.shape_cast %61 : vector<1x1x4x128xbf16> to vector<4x128xbf16>
    %c0_85 = arith.constant 0 : index
    %c1_86 = arith.constant 1 : index
    %c2_87 = arith.constant 2 : index
    %c0_88 = arith.constant 0 : index
    %63 = vector.load %arg2[%c0_85, %c1_86, %c2_87, %c0_88] : memref<1x8x18x4xbf16, #tpu.memory_space<vmem>>, vector<1x7x16x4xbf16>
    %64 = vector.shape_cast %63 : vector<1x7x16x4xbf16> to vector<7x16x4xbf16>
    %65 = vector.shape_cast %64 : vector<7x16x4xbf16> to vector<112x4xbf16>
    %c0_89 = arith.constant 0 : index
    %c0_90 = arith.constant 0 : index
    %66 = vector.load %arg6[%c0_89, %c0_90] : memref<128x128xf32, #tpu.memory_space<vmem>>, vector<112x128xf32>
    %cst_91 = arith.constant dense<0.000000e+00> : vector<112x128xf32>
    %67 = tpu.matmul %65, %62, %cst_91 {dimension_numbers = #tpu.dot_dimension_numbers<[1], [0], [0], [1], [0, 0, 1, 1], [], []>} : vector<112x4xbf16>, vector<4x128xbf16>, vector<112x128xf32> -> vector<112x128xf32>
    %68 = arith.addf %66, %67 : vector<112x128xf32>
    %c0_92 = arith.constant 0 : index
    %c0_93 = arith.constant 0 : index
    %69 = vector.load %arg6[%c0_92, %c0_93] : memref<128x128xf32, #tpu.memory_space<vmem>>, vector<112x128xf32>
    tpu.vector_store %arg6[%c0_92, %c0_93], %68 {strides = array<i32>} : memref<128x128xf32, #tpu.memory_space<vmem>>, vector<112x128xf32>,
    %c0_94 = arith.constant 0 : index
    %c0_95 = arith.constant 0 : index
    %c2_96 = arith.constant 2 : index
    %c0_97 = arith.constant 0 : index
    %70 = vector.load %arg3[%c0_94, %c0_95, %c2_96, %c0_97] : memref<1x2x18x4xbf16, #tpu.memory_space<vmem>>, vector<1x1x16x4xbf16>
    %71 = vector.shape_cast %70 : vector<1x1x16x4xbf16> to vector<1x16x4xbf16>
    %72 = vector.shape_cast %71 : vector<1x16x4xbf16> to vector<16x4xbf16>
    %c112_98 = arith.constant 112 : index
    %c0_99 = arith.constant 0 : index
    %73 = vector.load %arg6[%c112_98, %c0_99] : memref<128x128xf32, #tpu.memory_space<vmem>>, vector<16x128xf32>
    %cst_100 = arith.constant dense<0.000000e+00> : vector<16x128xf32>
    %74 = tpu.matmul %72, %62, %cst_100 {dimension_numbers = #tpu.dot_dimension_numbers<[1], [0], [0], [1], [0, 0, 1, 1], [], []>} : vector<16x4xbf16>, vector<4x128xbf16>, vector<16x128xf32> -> vector<16x128xf32>
    %75 = arith.addf %73, %74 : vector<16x128xf32>
    %c112_101 = arith.constant 112 : index
    %c0_102 = arith.constant 0 : index
    %76 = vector.load %arg6[%c112_101, %c0_102] : memref<128x128xf32, #tpu.memory_space<vmem>>, vector<16x128xf32>
    tpu.vector_store %arg6[%c112_101, %c0_102], %75 {strides = array<i32>} : memref<128x128xf32, #tpu.memory_space<vmem>>, vector<16x128xf32>,
    %c2_103 = arith.constant 2 : index
    %c0_104 = arith.constant 0 : index
    %c0_105 = arith.constant 0 : index
    %c0_106 = arith.constant 0 : index
    %77 = vector.load %arg4[%c2_103, %c0_104, %c0_105, %c0_106] : memref<3x3x4x128xbf16, #tpu.memory_space<vmem>>, vector<1x1x4x128xbf16>
    %78 = vector.shape_cast %77 : vector<1x1x4x128xbf16> to vector<4x128xbf16>
    %c0_107 = arith.constant 0 : index
    %c2_108 = arith.constant 2 : index
    %c0_109 = arith.constant 0 : index
    %c0_110 = arith.constant 0 : index
    %79 = vector.load %arg2[%c0_107, %c2_108, %c0_109, %c0_110] : memref<1x8x18x4xbf16, #tpu.memory_space<vmem>>, vector<1x6x16x4xbf16>
    %80 = vector.shape_cast %79 : vector<1x6x16x4xbf16> to vector<6x16x4xbf16>
    %81 = vector.shape_cast %80 : vector<6x16x4xbf16> to vector<96x4xbf16>
    %c0_111 = arith.constant 0 : index
    %c0_112 = arith.constant 0 : index
    %82 = vector.load %arg6[%c0_111, %c0_112] : memref<128x128xf32, #tpu.memory_space<vmem>>, vector<96x128xf32>
    %cst_113 = arith.constant dense<0.000000e+00> : vector<96x128xf32>
    %83 = tpu.matmul %81, %78, %cst_113 {dimension_numbers = #tpu.dot_dimension_numbers<[1], [0], [0], [1], [0, 0, 1, 1], [], []>} : vector<96x4xbf16>, vector<4x128xbf16>, vector<96x128xf32> -> vector<96x128xf32>
    %84 = arith.addf %82, %83 : vector<96x128xf32>
    %c0_114 = arith.constant 0 : index
    %c0_115 = arith.constant 0 : index
    %85 = vector.load %arg6[%c0_114, %c0_115] : memref<128x128xf32, #tpu.memory_space<vmem>>, vector<96x128xf32>
    tpu.vector_store %arg6[%c0_114, %c0_115], %84 {strides = array<i32>} : memref<128x128xf32, #tpu.memory_space<vmem>>, vector<96x128xf32>,
    %c0_116 = arith.constant 0 : index
    %c0_117 = arith.constant 0 : index
    %c0_118 = arith.constant 0 : index
    %c0_119 = arith.constant 0 : index
    %86 = vector.load %arg3[%c0_116, %c0_117, %c0_118, %c0_119] : memref<1x2x18x4xbf16, #tpu.memory_space<vmem>>, vector<1x2x16x4xbf16>
    %87 = vector.shape_cast %86 : vector<1x2x16x4xbf16> to vector<2x16x4xbf16>
    %88 = vector.shape_cast %87 : vector<2x16x4xbf16> to vector<32x4xbf16>
    %c96 = arith.constant 96 : index
    %c0_120 = arith.constant 0 : index
    %89 = vector.load %arg6[%c96, %c0_120] : memref<128x128xf32, #tpu.memory_space<vmem>>, vector<32x128xf32>
    %cst_121 = arith.constant dense<0.000000e+00> : vector<32x128xf32>
    %90 = tpu.matmul %88, %78, %cst_121 {dimension_numbers = #tpu.dot_dimension_numbers<[1], [0], [0], [1], [0, 0, 1, 1], [], []>} : vector<32x4xbf16>, vector<4x128xbf16>, vector<32x128xf32> -> vector<32x128xf32>
    %91 = arith.addf %89, %90 : vector<32x128xf32>
    %c96_122 = arith.constant 96 : index
    %c0_123 = arith.constant 0 : index
    %92 = vector.load %arg6[%c96_122, %c0_123] : memref<128x128xf32, #tpu.memory_space<vmem>>, vector<32x128xf32>
    tpu.vector_store %arg6[%c96_122, %c0_123], %91 {strides = array<i32>} : memref<128x128xf32, #tpu.memory_space<vmem>>, vector<32x128xf32>,
    %c2_124 = arith.constant 2 : index
    %c1_125 = arith.constant 1 : index
    %c0_126 = arith.constant 0 : index
    %c0_127 = arith.constant 0 : index
    %93 = vector.load %arg4[%c2_124, %c1_125, %c0_126, %c0_127] : memref<3x3x4x128xbf16, #tpu.memory_space<vmem>>, vector<1x1x4x128xbf16>
    %94 = vector.shape_cast %93 : vector<1x1x4x128xbf16> to vector<4x128xbf16>
    %c0_128 = arith.constant 0 : index
    %c2_129 = arith.constant 2 : index
    %c1_130 = arith.constant 1 : index
    %c0_131 = arith.constant 0 : index
    %95 = vector.load %arg2[%c0_128, %c2_129, %c1_130, %c0_131] : memref<1x8x18x4xbf16, #tpu.memory_space<vmem>>, vector<1x6x16x4xbf16>
    %96 = vector.shape_cast %95 : vector<1x6x16x4xbf16> to vector<6x16x4xbf16>
    %97 = vector.shape_cast %96 : vector<6x16x4xbf16> to vector<96x4xbf16>
    %c0_132 = arith.constant 0 : index
    %c0_133 = arith.constant 0 : index
    %98 = vector.load %arg6[%c0_132, %c0_133] : memref<128x128xf32, #tpu.memory_space<vmem>>, vector<96x128xf32>
    %cst_134 = arith.constant dense<0.000000e+00> : vector<96x128xf32>
    %99 = tpu.matmul %97, %94, %cst_134 {dimension_numbers = #tpu.dot_dimension_numbers<[1], [0], [0], [1], [0, 0, 1, 1], [], []>} : vector<96x4xbf16>, vector<4x128xbf16>, vector<96x128xf32> -> vector<96x128xf32>
    %100 = arith.addf %98, %99 : vector<96x128xf32>
    %c0_135 = arith.constant 0 : index
    %c0_136 = arith.constant 0 : index
    %101 = vector.load %arg6[%c0_135, %c0_136] : memref<128x128xf32, #tpu.memory_space<vmem>>, vector<96x128xf32>
    tpu.vector_store %arg6[%c0_135, %c0_136], %100 {strides = array<i32>} : memref<128x128xf32, #tpu.memory_space<vmem>>, vector<96x128xf32>,
    %c0_137 = arith.constant 0 : index
    %c0_138 = arith.constant 0 : index
    %c1_139 = arith.constant 1 : index
    %c0_140 = arith.constant 0 : index
    %102 = vector.load %arg3[%c0_137, %c0_138, %c1_139, %c0_140] : memref<1x2x18x4xbf16, #tpu.memory_space<vmem>>, vector<1x2x16x4xbf16>
    %103 = vector.shape_cast %102 : vector<1x2x16x4xbf16> to vector<2x16x4xbf16>
    %104 = vector.shape_cast %103 : vector<2x16x4xbf16> to vector<32x4xbf16>
    %c96_141 = arith.constant 96 : index
    %c0_142 = arith.constant 0 : index
    %105 = vector.load %arg6[%c96_141, %c0_142] : memref<128x128xf32, #tpu.memory_space<vmem>>, vector<32x128xf32>
    %cst_143 = arith.constant dense<0.000000e+00> : vector<32x128xf32>
    %106 = tpu.matmul %104, %94, %cst_143 {dimension_numbers = #tpu.dot_dimension_numbers<[1], [0], [0], [1], [0, 0, 1, 1], [], []>} : vector<32x4xbf16>, vector<4x128xbf16>, vector<32x128xf32> -> vector<32x128xf32>
    %107 = arith.addf %105, %106 : vector<32x128xf32>
    %c96_144 = arith.constant 96 : index
    %c0_145 = arith.constant 0 : index
    %108 = vector.load %arg6[%c96_144, %c0_145] : memref<128x128xf32, #tpu.memory_space<vmem>>, vector<32x128xf32>
    tpu.vector_store %arg6[%c96_144, %c0_145], %107 {strides = array<i32>} : memref<128x128xf32, #tpu.memory_space<vmem>>, vector<32x128xf32>,
    %c2_146 = arith.constant 2 : index
    %c2_147 = arith.constant 2 : index
    %c0_148 = arith.constant 0 : index
    %c0_149 = arith.constant 0 : index
    %109 = vector.load %arg4[%c2_146, %c2_147, %c0_148, %c0_149] : memref<3x3x4x128xbf16, #tpu.memory_space<vmem>>, vector<1x1x4x128xbf16>
    %110 = vector.shape_cast %109 : vector<1x1x4x128xbf16> to vector<4x128xbf16>
    %c0_150 = arith.constant 0 : index
    %c2_151 = arith.constant 2 : index
    %c2_152 = arith.constant 2 : index
    %c0_153 = arith.constant 0 : index
    %111 = vector.load %arg2[%c0_150, %c2_151, %c2_152, %c0_153] : memref<1x8x18x4xbf16, #tpu.memory_space<vmem>>, vector<1x6x16x4xbf16>
    %112 = vector.shape_cast %111 : vector<1x6x16x4xbf16> to vector<6x16x4xbf16>
    %113 = vector.shape_cast %112 : vector<6x16x4xbf16> to vector<96x4xbf16>
    %c0_154 = arith.constant 0 : index
    %c0_155 = arith.constant 0 : index
    %114 = vector.load %arg6[%c0_154, %c0_155] : memref<128x128xf32, #tpu.memory_space<vmem>>, vector<96x128xf32>
    %cst_156 = arith.constant dense<0.000000e+00> : vector<96x128xf32>
    %115 = tpu.matmul %113, %110, %cst_156 {dimension_numbers = #tpu.dot_dimension_numbers<[1], [0], [0], [1], [0, 0, 1, 1], [], []>} : vector<96x4xbf16>, vector<4x128xbf16>, vector<96x128xf32> -> vector<96x128xf32>
    %116 = arith.addf %114, %115 : vector<96x128xf32>
    %c0_157 = arith.constant 0 : index
    %c0_158 = arith.constant 0 : index
    %117 = vector.load %arg6[%c0_157, %c0_158] : memref<128x128xf32, #tpu.memory_space<vmem>>, vector<96x128xf32>
    tpu.vector_store %arg6[%c0_157, %c0_158], %116 {strides = array<i32>} : memref<128x128xf32, #tpu.memory_space<vmem>>, vector<96x128xf32>,
    %c0_159 = arith.constant 0 : index
    %c0_160 = arith.constant 0 : index
    %c2_161 = arith.constant 2 : index
    %c0_162 = arith.constant 0 : index
    %118 = vector.load %arg3[%c0_159, %c0_160, %c2_161, %c0_162] : memref<1x2x18x4xbf16, #tpu.memory_space<vmem>>, vector<1x2x16x4xbf16>
    %119 = vector.shape_cast %118 : vector<1x2x16x4xbf16> to vector<2x16x4xbf16>
    %120 = vector.shape_cast %119 : vector<2x16x4xbf16> to vector<32x4xbf16>
    %c96_163 = arith.constant 96 : index
    %c0_164 = arith.constant 0 : index
    %121 = vector.load %arg6[%c96_163, %c0_164] : memref<128x128xf32, #tpu.memory_space<vmem>>, vector<32x128xf32>
    %cst_165 = arith.constant dense<0.000000e+00> : vector<32x128xf32>
    %122 = tpu.matmul %120, %110, %cst_165 {dimension_numbers = #tpu.dot_dimension_numbers<[1], [0], [0], [1], [0, 0, 1, 1], [], []>} : vector<32x4xbf16>, vector<4x128xbf16>, vector<32x128xf32> -> vector<32x128xf32>
    %123 = arith.addf %121, %122 : vector<32x128xf32>
    %c96_166 = arith.constant 96 : index
    %c0_167 = arith.constant 0 : index
    %124 = vector.load %arg6[%c96_166, %c0_167] : memref<128x128xf32, #tpu.memory_space<vmem>>, vector<32x128xf32>
    tpu.vector_store %arg6[%c96_166, %c0_167], %123 {strides = array<i32>} : memref<128x128xf32, #tpu.memory_space<vmem>>, vector<32x128xf32>,
    %c0_168 = arith.constant 0 : index
    %c0_169 = arith.constant 0 : index
    %125 = vector.load %arg6[%c0_168, %c0_169] : memref<128x128xf32, #tpu.memory_space<vmem>>, vector<128x128xf32>
    %cst_170 = arith.constant dense<0.000000e+00> : vector<128xf32>
    %126 = vector.multi_reduction <add>, %125, %cst_170 [0] : vector<128x128xf32> to vector<128xf32>
    %127 = vector.shape_cast %126 : vector<128xf32> to vector<1x128xf32>
    %cst_171 = arith.constant 1.280000e+02 : f32
    %128 = vector.broadcast %cst_171 : f32 to vector<1x128xf32>
    %129 = arith.divf %127, %128 : vector<1x128xf32>
    %130 = vector.broadcast %129 : vector<1x128xf32> to vector<128x128xf32>
    %131 = arith.subf %125, %130 : vector<128x128xf32>
    %132 = arith.mulf %131, %131 : vector<128x128xf32>
    %cst_172 = arith.constant dense<0.000000e+00> : vector<128xf32>
    %133 = vector.multi_reduction <add>, %132, %cst_172 [0] : vector<128x128xf32> to vector<128xf32>
    %134 = vector.shape_cast %133 : vector<128xf32> to vector<1x128xf32>
    %cst_173 = arith.constant 0.000000e+00 : f32
    %135 = vector.broadcast %cst_173 : f32 to vector<6x128xf32>
    %136 = tpu.concatenate %129, %134, %135 in 0 : vector<1x128xf32>, vector<1x128xf32>, vector<6x128xf32> -> vector<8x128xf32>
    %c0_174 = arith.constant 0 : index
    %c0_175 = arith.constant 0 : index
    %137 = vector.load %arg5[%c0_174, %c0_175] : memref<8x128xf32, #tpu.memory_space<vmem>>, vector<8x128xf32>
    tpu.vector_store %arg5[%c0_174, %c0_175], %136 {strides = array<i32>} : memref<8x128xf32, #tpu.memory_space<vmem>>, vector<8x128xf32>,
    return
  }
  func.func @transform_0(%arg0: i32, %arg1: i32) -> (i32, i32, i32, i32) {
    %c0_i32 = arith.constant 0 : i32
    %c0_i32_0 = arith.constant 0 : i32
    %c0_i32_1 = arith.constant 0 : i32
    return %arg0, %arg1, %c0_i32, %c0_i32_0 : i32, i32, i32, i32
  }
  func.func @transform_1(%arg0: i32, %arg1: i32) -> (i32, i32, i32, i32) {
    %c2_i32 = arith.constant 2 : i32
    %0 = arith.muli %arg0, %c2_i32 : i32
    %1 = arith.addi %0, %arg1 : i32
    %c0_i32 = arith.constant 0 : i32
    %c0_i32_0 = arith.constant 0 : i32
    %c0_i32_1 = arith.constant 0 : i32
    %c0_i32_2 = arith.constant 0 : i32
    return %1, %c0_i32, %c0_i32_0, %c0_i32_1 : i32, i32, i32, i32
  }
  func.func @transform_2(%arg0: i32, %arg1: i32) -> (i32, i32, i32, i32) {
    %c0_i32 = arith.constant 0 : i32
    %c0_i32_0 = arith.constant 0 : i32
    %c0_i32_1 = arith.constant 0 : i32
    %c0_i32_2 = arith.constant 0 : i32
    %c0_i32_3 = arith.constant 0 : i32
    return %c0_i32, %c0_i32_0, %c0_i32_1, %c0_i32_2 : i32, i32, i32, i32
  }
  func.func @transform_3(%arg0: i32, %arg1: i32) -> (i32, i32) {
    %c2_i32 = arith.constant 2 : i32
    %0 = arith.muli %arg0, %c2_i32 : i32
    %1 = arith.addi %0, %arg1 : i32
    %c0_i32 = arith.constant 0 : i32
    %c0_i32_0 = arith.constant 0 : i32
    return %1, %c0_i32 : i32, i32
  }
}

</mosaic_0001>

<llo_original>
// kernel: tpu_custom_call.1
$region0: #{tpu_custom_call.1}
  #allocation0 [shape = 'u32[]', space=smem, size = 0x4, offset = 0x4, fixed_abs, tag = 'smem constant byte address 0x4 - core index']
  #allocation1 [shape = 'u32[144,128]{1,0:T(1,128)}', space=vmem, size = 0x12000, scoped, tag = 'internal scratch']
  #allocation2 [shape = 'f32[128,128]{1,0:T(8,128)}', space=vmem, size = 0x10000, scoped, tag = 'scratch operand']
  %s0 = inlined_call_operand.vmem [shape: bf16[2,18,18,4], index: 0, kind: input, shape index: {}]
  %s1 = inlined_call_operand.vmem [shape: bf16[4,2,18,4], index: 1, kind: input, shape index: {}]
  %s2 = inlined_call_operand.vmem [shape: bf16[3,3,4,128], index: 2, kind: input, shape index: {}]
  %s3 = inlined_call_operand.hbm [shape: f32[32,128], index: 3, kind: output, shape index: {}]
  %s4 = sld [smem:[#allocation0]]
  $region45: #{tpu_custom_call.1} parent=0
    _
  %s6 = ssub.s32 1, %s4
  %s7 = scalar_select 0, %s6, %s4
  $region1: #{tpu_custom_call.1} parent=0
    #allocation3 [shape = 'u8[8192]{0}', space=vmem, size = 0x2000, scoped, tag = 'output window, operand 0']
    #allocation4 [shape = 's32[2]{0}', space=sflag, size = 0x8, scoped, tag = 'scoped memory for tpu_custom_call.1']
    %8 = vsyncpa [#allocation4], 0
    %s9 = scalar_lea.sflag [#allocation4], 1
    %10 = vsyncpa %s9, 0
    loop: start=0, step=1, limit=6
    $region2: #{tpu_custom_call.1} parent=1 // loop_pre_header
      _
    $region3: #{tpu_custom_call.1} parent=1 // loop_header
      %s12 = sphi 0, %s16
      %p13 = scmp.ge.s32.totalorder %s12, 6
      %s19 = sphi 0, %s31
      %s20 = sphi 0, %s27
      %s21 = sphi 0, %s19
      %s22 = sphi 0, %s20
      %s23 = sphi 0, %s21
      %s24 = sphi 0, %s22
      %s36 = sphi 0, %s38
      %s39 = sphi 0, %s36
      %s40 = sphi 0, %s39
      %s56 = sphi 0, %s40
      %s66 = sphi 0, %s68
      %s69 = sphi 0, %s66
      %s70 = sphi 0, %s69
      %s86 = sphi 0, %s70
      %s90 = sphi 0, %s90
      %s92 = sphi 0, %s90
      %s93 = sphi 0, %s92
      %s107 = sphi 0, %s93
      %s117 = sphi 0, %s119
      %s120 = sphi 0, %s117
      %s121 = sphi 0, %s120
      %s137 = sphi 0, %s121
    $region4: #{tpu_custom_call.1} parent=1 // loop_header_branch
      %15 = sbr.rel (%p13) target = $region8
    $region5: #{tpu_custom_call.1} parent=1 // loop_body
      %s17 = ssub.s32 %s12, 1
      %s18 = ssub.s32 %s12, 2
      %s25 = sadd.s32 1, %s20
      %p26 = scmp.ge.s32.totalorder %s25, 2
      %s27 = scalar_select %p26, 0, %s25
      %s28 = sadd.s32 1, %s19
      %s29 = scalar_select %p26, %s28, %s19
      %p30 = scmp.ge.s32.totalorder %s29, 2
      %s31 = scalar_select %p30, 0, %s29
      %s32 = ssub.s32 %s19, %s31
      %s33 = ssub.s32 %s20, %s27
      %s34 = sor.u32 %s32, %s33
      %p35 = scmp.eq.s32.totalorder %s34, 0
      %s37 = sadd.s32 %s36, 1
      %s38 = scalar_select %p35, %s36, %s37
      %p41 = pneg %p35
      %p42 = scmp.eq.s32.totalorder %s12, 3
      %p43 = por %p41, %p42
      %p44 = scmp.ne.s32.totalorder %s36, %s39
      %p45 = scmp.eq.s32.totalorder %s12, 0
      %p46 = por %p44, %p45
      %p47 = scmp.ne.s32.totalorder %s36, %s39
      %p48 = scmp.eq.s32.totalorder %s17, 3
      %p49 = por %p47, %p48
      %p50 = scmp.ne.s32.totalorder %s39, %s40
      %p51 = scmp.eq.s32.totalorder %s17, 0
      %p52 = por %p50, %p51
      %p53 = scmp.ne.s32.totalorder %s39, %s40
      %p54 = scmp.eq.s32.totalorder %s18, 3
      %p55 = por %p53, %p54
      %p57 = scmp.ne.s32.totalorder %s40, %s56
      %p58 = scmp.eq.s32.totalorder %s18, 0
      %p59 = por %p57, %p58
      %s60 = smul.u32 %s19, 2
      %s61 = sadd.s32 %s60, %s20
      %s62 = smul.u32 %s31, 2
      %s63 = sadd.s32 %s62, %s27
      %s64 = ssub.s32 %s61, %s63
      %p65 = scmp.eq.s32.totalorder %s64, 0
      %s67 = sadd.s32 %s66, 1
      %s68 = scalar_select %p65, %s66, %s67
      %p71 = pneg %p65
      %p72 = scmp.eq.s32.totalorder %s12, 3
      %p73 = por %p71, %p72
      %p74 = scmp.ne.s32.totalorder %s66, %s69
      %p75 = scmp.eq.s32.totalorder %s12, 0
      %p76 = por %p74, %p75
      %p77 = scmp.ne.s32.totalorder %s66, %s69
      %p78 = scmp.eq.s32.totalorder %s17, 3
      %p79 = por %p77, %p78
      %p80 = scmp.ne.s32.totalorder %s69, %s70
      %p81 = scmp.eq.s32.totalorder %s17, 0
      %p82 = por %p80, %p81
      %p83 = scmp.ne.s32.totalorder %s69, %s70
      %p84 = scmp.eq.s32.totalorder %s18, 3
      %p85 = por %p83, %p84
      %p87 = scmp.ne.s32.totalorder %s70, %s86
      %p88 = scmp.eq.s32.totalorder %s18, 0
      %p89 = por %p87, %p88
      %s91 = sadd.s32 %s90, 1
      %p94 = scmp.eq.s32.totalorder %s12, 3
      %p95 = scmp.ne.s32.totalorder %s90, %s92
      %p96 = scmp.eq.s32.totalorder %s12, 0
      %p97 = por %p95, %p96
      %p98 = scmp.ne.s32.totalorder %s90, %s92
      %p99 = scmp.eq.s32.totalorder %s17, 3
      %p100 = por %p98, %p99
      %p101 = scmp.ne.s32.totalorder %s92, %s93
      %p102 = scmp.eq.s32.totalorder %s17, 0
      %p103 = por %p101, %p102
      %p104 = scmp.ne.s32.totalorder %s92, %s93
      %p105 = scmp.eq.s32.totalorder %s18, 3
      %p106 = por %p104, %p105
      %p108 = scmp.ne.s32.totalorder %s93, %s107
      %p109 = scmp.eq.s32.totalorder %s18, 0
      %p110 = por %p108, %p109
      %s111 = smul.u32 %s19, 2
      %s112 = sadd.s32 %s111, %s20
      %s113 = smul.u32 %s31, 2
      %s114 = sadd.s32 %s113, %s27
      %s115 = ssub.s32 %s112, %s114
      %p116 = scmp.eq.s32.totalorder %s115, 0
      %s118 = sadd.s32 %s117, 1
      %s119 = scalar_select %p116, %s117, %s118
      %p122 = pneg %p116
      %p123 = scmp.eq.s32.totalorder %s12, 3
      %p124 = por %p122, %p123
      %p125 = scmp.ne.s32.totalorder %s117, %s120
      %p126 = scmp.eq.s32.totalorder %s12, 0
      %p127 = por %p125, %p126
      %p128 = scmp.ne.s32.totalorder %s117, %s120
      %p129 = scmp.eq.s32.totalorder %s17, 3
      %p130 = por %p128, %p129
      %p131 = scmp.ne.s32.totalorder %s120, %s121
      %p132 = scmp.eq.s32.totalorder %s17, 0
      %p133 = por %p131, %p132
      %p134 = scmp.ne.s32.totalorder %s120, %s121
      %p135 = scmp.eq.s32.totalorder %s18, 3
      %p136 = por %p134, %p135
      %p138 = scmp.ne.s32.totalorder %s121, %s137
      %p139 = scmp.eq.s32.totalorder %s18, 0
      %p140 = por %p138, %p139
      %p141 = scmp.le.s32.totalorder 1, %s12
      %p142 = scmp.lt.s32.totalorder %s12, 5
      %p143 = pnand %p141, %p142
      %p144 = pneg %p143
      // Predicated region
      $region9: #{tpu_custom_call.1} parent=5 // pred_check
        _
      $region10: #{tpu_custom_call.1} parent=5 // pred_check_branch
        %146 = sbr.rel (%p143) target = $region12
      $region11: #{tpu_custom_call.1} parent=5 // pred_region
        %s147 = ssub.s32 %s12, 1
        // Predicated region
        $region13: #{tpu_custom_call.1} parent=11 // pred_check
          %p148 = pneg %p103
        $region14: #{tpu_custom_call.1} parent=11 // pred_check_branch
          %150 = sbr.rel (%p148) target = $region16
        $region15: #{tpu_custom_call.1} parent=11 // pred_region
          _
        $region16: #{tpu_custom_call.1} parent=11 // pred_fallthru
          _
      $region12: #{tpu_custom_call.1} parent=5 // pred_fallthru
        _
      %p151 = scmp.lt.s32.totalorder %s12, 4
      // Predicated region
      $region17: #{tpu_custom_call.1} parent=5 // pred_check
        %p152 = pneg %p151
      $region18: #{tpu_custom_call.1} parent=5 // pred_check_branch
        %154 = sbr.rel (%p152) target = $region20
      $region19: #{tpu_custom_call.1} parent=5 // pred_region
        // Predicated region
        $region21: #{tpu_custom_call.1} parent=19 // pred_check
          %p155 = pneg %p46
        $region22: #{tpu_custom_call.1} parent=19 // pred_check_branch
          %157 = sbr.rel (%p155) target = $region24
        $region23: #{tpu_custom_call.1} parent=19 // pred_region
          %s158 = smul.u32 8, %s20
          %s159 = ssub.s32 18, %s158
          %p160 = scmp.lt.s32.totalorder %s159, 8
          %s161 = scalar_select %p160, %s159, 8
          %s162 = smul.u32 64, %s161
          %s163 = smul.u32 %s162, 3
          %p164 = scmp.lt.s32.totalorder %s19, 1
          %s165 = scalar_select %p164, %s19, 1
          %p166 = scmp.lt.s32.totalorder %s158, 17
          %s167 = scalar_select %p166, %s158, 17
          %s168 = smul.addr %s167, 3
          %s169 = smul.addr %s165, 54
          %s170 = sadd.s32 %s168, %s169
          %s171 = smul.addr %s170, 4
          %s172 = scalar_lea.vmem %s0, %s171
          %s173 = smul.u32 8, %s20
          %s174 = ssub.s32 18, %s173
          %p175 = scmp.lt.s32.totalorder %s174, 8
          %s176 = scalar_select %p175, %s174, 8
          %s177 = smul.u32 64, %s176
          %s178 = smul.u32 %s177, 3
        $region24: #{tpu_custom_call.1} parent=19 // pred_fallthru
          _
        // Predicated region
        $region25: #{tpu_custom_call.1} parent=19 // pred_check
          %p179 = pneg %p76
        $region26: #{tpu_custom_call.1} parent=19 // pred_check_branch
          %181 = sbr.rel (%p179) target = $region28
        $region27: #{tpu_custom_call.1} parent=19 // pred_region
          %s182 = smul.u32 %s19, 2
          %s183 = sadd.s32 %s182, %s20
          %p184 = scmp.lt.s32.totalorder %s183, 3
          %s185 = scalar_select %p184, %s183, 3
          %s186 = smul.addr %s185, 6
          %s187 = smul.addr %s186, 4
          %s188 = scalar_lea.vmem %s1, %s187
          %s189 = smul.u32 %s19, 2
          %s190 = sadd.s32 %s189, %s20
        $region28: #{tpu_custom_call.1} parent=19 // pred_fallthru
          _
      $region20: #{tpu_custom_call.1} parent=5 // pred_fallthru
        _
      %p191 = scmp.le.s32.totalorder 1, %s12
      %p192 = scmp.lt.s32.totalorder %s12, 5
      %p193 = pnand %p191, %p192
      %p194 = pneg %p193
      // Predicated region
      $region29: #{tpu_custom_call.1} parent=5 // pred_check
        _
      $region30: #{tpu_custom_call.1} parent=5 // pred_check_branch
        %196 = sbr.rel (%p193) target = $region32
      $region31: #{tpu_custom_call.1} parent=5 // pred_region
        %s197 = ssub.s32 %s12, 1
        %s198 = smul.u32 8, %s22
        %s199 = ssub.s32 18, %s198
        %p200 = scmp.lt.s32.totalorder %s199, 8
        %s201 = scalar_select %p200, %s199, 8
        %s202 = smul.u32 64, %s201
        %s203 = smul.u32 %s202, 3
        %p204 = scmp.lt.s32.totalorder %s21, 1
        %s205 = scalar_select %p204, %s21, 1
        %p206 = scmp.lt.s32.totalorder %s198, 17
        %s207 = scalar_select %p206, %s198, 17
        %s208 = smul.addr %s207, 3
        %s209 = smul.addr %s205, 54
        %s210 = sadd.s32 %s208, %s209
        %s211 = smul.addr %s210, 4
        %s212 = scalar_lea.vmem %s0, %s211
        %p213 = pneg %p52
        %p214 = pneg %p49
        %s215 = smul.u32 %s21, 2
        %s216 = sadd.s32 %s215, %s22
        %p217 = scmp.lt.s32.totalorder %s216, 3
        %s218 = scalar_select %p217, %s216, 3
        %s219 = smul.addr %s218, 6
        %s220 = smul.addr %s219, 4
        %s221 = scalar_lea.vmem %s1, %s220
        %p222 = pneg %p82
        %p223 = pneg %p79
        %p224 = pneg %p103
        %p225 = pneg %p100
        %p226 = pneg %p133
        %p227 = pneg %p130
        %s228 = sand.u32 %s120, 1
        %s229 = scalar_lea.sflag [#allocation4], %s228
        %s230 = sand.u32 %s120, 1
        %s231 = smul.addr %s230, 8
        %s232 = scalar_lea.vmem [#allocation3], %s231
        %s233 = smul.u32 8, %s22
        %s234 = ssub.s32 18, %s233
        %p235 = scmp.lt.s32.totalorder %s234, 8
        %s236 = scalar_select %p235, %s234, 8
        %s237 = smul.u32 64, %s236
        %s238 = smul.u32 %s237, 3
        %p239 = scmp.lt.s32.totalorder %s21, 1
        %s240 = scalar_select %p239, %s21, 1
        %p241 = scmp.lt.s32.totalorder %s233, 17
        %s242 = scalar_select %p241, %s233, 17
        %s243 = smul.addr %s242, 3
        %s244 = smul.addr %s240, 54
        %s245 = sadd.s32 %s243, %s244
        %s246 = smul.addr %s245, 4
        %s247 = scalar_lea.vmem %s0, %s246
        %s248 = smul.u32 8, %s22
        %s249 = ssub.s32 18, %s248
        %p250 = scmp.lt.s32.totalorder %s249, 8
        %s251 = scalar_select %p250, %s249, 8
        %s252 = smul.u32 64, %s251
        %s253 = smul.u32 %s252, 3
        %s254 = smul.u32 %s21, 2
        %s255 = sadd.s32 %s254, %s22
        %p256 = scmp.lt.s32.totalorder %s255, 3
        %s257 = scalar_select %p256, %s255, 3
        %s258 = smul.addr %s257, 6
        %s259 = smul.addr %s258, 4
        %s260 = scalar_lea.vmem %s1, %s259
        %s261 = smul.u32 %s21, 2
        %s262 = sadd.s32 %s261, %s22
        %s263 = smul.u32 %s21, 2
        %s264 = sadd.s32 %s263, %s22
        %266 = vst [vmem:[#allocation2] sm:$0xff] 0.0
        %267 = vst [vmem:[#allocation2 + $0x8] sm:$0xff] 0.0
        %268 = vst [vmem:[#allocation2 + $0x10] sm:$0xff] 0.0
        %269 = vst [vmem:[#allocation2 + $0x18] sm:$0xff] 0.0
        %270 = vst [vmem:[#allocation2 + $0x20] sm:$0xff] 0.0
        %271 = vst [vmem:[#allocation2 + $0x28] sm:$0xff] 0.0
        %272 = vst [vmem:[#allocation2 + $0x30] sm:$0xff] 0.0
        %273 = vst [vmem:[#allocation2 + $0x38] sm:$0xff] 0.0
        %274 = vst [vmem:[#allocation2 + $0x40] sm:$0xff] 0.0
        %275 = vst [vmem:[#allocation2 + $0x48] sm:$0xff] 0.0
        %276 = vst [vmem:[#allocation2 + $0x50] sm:$0xff] 0.0
        %277 = vst [vmem:[#allocation2 + $0x58] sm:$0xff] 0.0
        %278 = vst [vmem:[#allocation2 + $0x60] sm:$0xff] 0.0
        %279 = vst [vmem:[#allocation2 + $0x68] sm:$0xff] 0.0
        %280 = vst [vmem:[#allocation2 + $0x70] sm:$0xff] 0.0
        %281 = vst [vmem:[#allocation2 + $0x78] sm:$0xff] 0.0
        %v282 = vld [vmem:[%s2] sm:$0x3]
        %v283 = vld [vmem:[%s247] sm:$0xf]
        %v284 = vld [vmem:[%s247 + $0x4] sm:$0xf]
        %v285 = vld [vmem:[%s247 + $0xc] sm:$0xf]
        %v286 = vld [vmem:[%s247 + $0x10] sm:$0xf]
        %v287 = vld [vmem:[%s247 + $0x18] sm:$0xf]
        %v288 = vld [vmem:[%s247 + $0x1c] sm:$0xf]
        %v289 = vld [vmem:[%s247 + $0x24] sm:$0xf]
        %v290 = vld [vmem:[%s247 + $0x28] sm:$0xf]
        %v291 = vld [vmem:[%s247 + $0x30] sm:$0xf]
        %v292 = vld [vmem:[%s247 + $0x34] sm:$0xf]
        %v293 = vld [vmem:[%s247 + $0x3c] sm:$0xf]
        %v294 = vld [vmem:[%s247 + $0x40] sm:$0xf]
        %v295 = vld [vmem:[%s247 + $0x48] sm:$0xf]
        %v296 = vld [vmem:[%s247 + $0x4c] sm:$0xf]
        %v297 = vld [vmem:[%s247 + $0x54] sm:$0xf]
        %v298 = vld [vmem:[%s247 + $0x58] sm:$0xf]
        %v299 = vld [vmem:[#allocation2] sm:$0xff]
        %v300 = vld [vmem:[#allocation2 + $0x8] sm:$0xff]
        %v301 = vld [vmem:[#allocation2 + $0x10] sm:$0xff]
        %v302 = vld [vmem:[#allocation2 + $0x18] sm:$0xff]
        %v303 = vld [vmem:[#allocation2 + $0x20] sm:$0xff]
        %v304 = vld [vmem:[#allocation2 + $0x28] sm:$0xff]
        %v305 = vld [vmem:[#allocation2 + $0x30] sm:$0xff]
        %v306 = vld [vmem:[#allocation2 + $0x38] sm:$0xff]
        %v307 = vld [vmem:[#allocation2 + $0x40] sm:$0xff]
        %v308 = vld [vmem:[#allocation2 + $0x48] sm:$0xff]
        %v309 = vld [vmem:[#allocation2 + $0x50] sm:$0xff]
        %v310 = vld [vmem:[#allocation2 + $0x58] sm:$0xff]
        %v311 = vld [vmem:[#allocation2 + $0x60] sm:$0xff]
        %v312 = vld [vmem:[#allocation2 + $0x68] sm:$0xff]
        %v313 = vld [vmem:[#allocation2 + $0x70] sm:$0xff]
        %v314 = vld [vmem:[#allocation2 + $0x78] sm:$0xff]
        %v331 = vunpack.c.l.b16 %v283
        %v332 = vunpack.c.l.b16 %v284
        %v333 = vunpack.c.l.b16 %v285
        %v334 = vunpack.c.l.b16 %v286
        %v335 = vunpack.c.l.b16 %v287
        %v336 = vunpack.c.l.b16 %v288
        %v337 = vunpack.c.l.b16 %v289
        %v338 = vunpack.c.l.b16 %v290
        %v339 = vunpack.c.l.b16 %v291
        %v340 = vunpack.c.l.b16 %v292
        %v341 = vunpack.c.l.b16 %v293
        %v342 = vunpack.c.l.b16 %v294
        %v343 = vunpack.c.l.b16 %v295
        %v344 = vunpack.c.l.b16 %v296
        %v345 = vunpack.c.l.b16 %v297
        %v346 = vunpack.c.l.b16 %v298
        %v347 = vpack.c.b16 %v332, %v331
        %v348 = vpack.c.b16 %v334, %v333
        %v349 = vpack.c.b16 %v336, %v335
        %v350 = vpack.c.b16 %v338, %v337
        %v351 = vpack.c.b16 %v340, %v339
        %v352 = vpack.c.b16 %v342, %v341
        %v353 = vpack.c.b16 %v344, %v343
        %v354 = vpack.c.b16 %v346, %v345
        %vm355 = vcmask 31744
        %v357 = vsel %vm355, %v347, 0
        %v360 = vsel %vm355, %v348, 0
        %v363 = vsel %vm355, %v349, 0
        %v366 = vsel %vm355, %v350, 0
        %v369 = vsel %vm355, %v351, 0
        %v372 = vsel %vm355, %v352, 0
        %v375 = vsel %vm355, %v353, 0
        %v378 = vsel %vm355, %v354, 0
        %vm380 = vcmask 1041408
        %v382 = vsel %vm380, %v282, 0
        %384 = vmatprep.subr.bf16.mxu0 0
        %385 = vmatpush1.bf16.msra.mxu0 %v382
        %386 = vmatprep.subr.bf16.mxu0 0
        %387 = vmatpush1.bf16.msra.mxu0 0
        %388 = vmatprep.subr.bf16.mxu0 0
        %389 = vmatpush1.bf16.msra.mxu0 0
        %390 = vmatprep.subr.bf16.mxu0 0
        %391 = vmatpush1.bf16.msra.mxu0 0
        %392 = vmatprep.subr.bf16.mxu0 0
        %393 = vmatpush1.bf16.msra.mxu0 0
        %394 = vmatprep.subr.bf16.mxu0 0
        %395 = vmatpush1.bf16.msra.mxu0 0
        %396 = vmatprep.subr.bf16.mxu0 0
        %397 = vmatpush1.bf16.msra.mxu0 0
        %398 = vmatprep.subr.bf16.mxu0 0
        %399 = vmatpush1.bf16.msra.mxu0 0
        %400 = vmatprep.subr.bf16.mxu0 0
        %401 = vmatpush1.bf16.msra.mxu0 0
        %402 = vmatprep.subr.bf16.mxu0 0
        %403 = vmatpush1.bf16.msra.mxu0 0
        %404 = vmatprep.subr.bf16.mxu0 0
        %405 = vmatpush1.bf16.msra.mxu0 0
        %406 = vmatprep.subr.bf16.mxu0 0
        %407 = vmatpush1.bf16.msra.mxu0 0
        %408 = vmatprep.subr.bf16.mxu0 0
        %409 = vmatpush1.bf16.msra.mxu0 0
        %410 = vmatprep.subr.bf16.mxu0 0
        %411 = vmatpush1.bf16.msra.mxu0 0
        %412 = vmatprep.subr.bf16.mxu0 0
        %413 = vmatpush1.bf16.msra.mxu0 0
        %414 = vmatprep.subr.bf16.mxu0 0
        %415 = vmatpush1.bf16.msra.mxu0 0
        %416 = vmatprep.mubr.bf16.mxu0 0
        %417 = vmatmul.mubr.bf16.gmra.mrb[0].mxu0 %v357
        %v418 = vpop.f32.mrb[0].mxu0
        %v419 = vadd.f32 0.0, %v418
        %v420 = vpop.f32.mrb[0].mxu0
        %v421 = vpop.f32.mrb[0].mxu0
        %v422 = vadd.f32 0.0, %v421
        %v423 = vpop.f32.mrb[0].mxu0
        %424 = vmatprep.mubr.bf16.mxu0 0
        %425 = vmatmul.mubr.bf16.gmra.mrb[0].mxu0 %v360
        %v426 = vpop.f32.mrb[0].mxu0
        %v427 = vadd.f32 0.0, %v426
        %v428 = vpop.f32.mrb[0].mxu0
        %v429 = vpop.f32.mrb[0].mxu0
        %v430 = vadd.f32 0.0, %v429
        %v431 = vpop.f32.mrb[0].mxu0
        %432 = vmatprep.mubr.bf16.mxu0 0
        %433 = vmatmul.mubr.bf16.gmra.mrb[0].mxu0 %v363
        %v434 = vpop.f32.mrb[0].mxu0
        %v435 = vadd.f32 0.0, %v434
        %v436 = vpop.f32.mrb[0].mxu0
        %v437 = vpop.f32.mrb[0].mxu0
        %v438 = vadd.f32 0.0, %v437
        %v439 = vpop.f32.mrb[0].mxu0
        %440 = vmatprep.mubr.bf16.mxu0 0
        %441 = vmatmul.mubr.bf16.gmra.mrb[0].mxu0 %v366
        %v442 = vpop.f32.mrb[0].mxu0
        %v443 = vadd.f32 0.0, %v442
        %v444 = vpop.f32.mrb[0].mxu0
        %v445 = vpop.f32.mrb[0].mxu0
        %v446 = vadd.f32 0.0, %v445
        %v447 = vpop.f32.mrb[0].mxu0
        %448 = vmatprep.mubr.bf16.mxu0 0
        %449 = vmatmul.mubr.bf16.gmra.mrb[0].mxu0 %v369
        %v450 = vpop.f32.mrb[0].mxu0
        %v451 = vadd.f32 0.0, %v450
        %v452 = vpop.f32.mrb[0].mxu0
        %v453 = vpop.f32.mrb[0].mxu0
        %v454 = vadd.f32 0.0, %v453
        %v455 = vpop.f32.mrb[0].mxu0
        %456 = vmatprep.mubr.bf16.mxu0 0
        %457 = vmatmul.mubr.bf16.gmra.mrb[0].mxu0 %v372
        %v458 = vpop.f32.mrb[0].mxu0
        %v459 = vadd.f32 0.0, %v458
        %v460 = vpop.f32.mrb[0].mxu0
        %v461 = vpop.f32.mrb[0].mxu0
        %v462 = vadd.f32 0.0, %v461
        %v463 = vpop.f32.mrb[0].mxu0
        %464 = vmatprep.mubr.bf16.mxu0 0
        %465 = vmatmul.mubr.bf16.gmra.mrb[0].mxu0 %v375
        %v466 = vpop.f32.mrb[0].mxu0
        %v467 = vadd.f32 0.0, %v466
        %v468 = vpop.f32.mrb[0].mxu0
        %v469 = vpop.f32.mrb[0].mxu0
        %v470 = vadd.f32 0.0, %v469
        %v471 = vpop.f32.mrb[0].mxu0
        %472 = vmatprep.mubr.bf16.mxu0 0
        %473 = vmatmul.mubr.bf16.gmra.mrb[0].mxu0 %v378
        %v474 = vpop.f32.mrb[0].mxu0
        %v475 = vadd.f32 0.0, %v474
        %v476 = vpop.f32.mrb[0].mxu0
        %v477 = vpop.f32.mrb[0].mxu0
        %v478 = vadd.f32 0.0, %v477
        %v479 = vpop.f32.mrb[0].mxu0
        %480 = vdwg.mxu0
        %v481 = vadd.f32 %v299, %v419
        %v482 = vadd.f32 %v300, %v422
        %v483 = vadd.f32 %v301, %v427
        %v484 = vadd.f32 %v302, %v430
        %v485 = vadd.f32 %v303, %v435
        %v486 = vadd.f32 %v304, %v438
        %v487 = vadd.f32 %v305, %v443
        %v488 = vadd.f32 %v306, %v446
        %v489 = vadd.f32 %v307, %v451
        %v490 = vadd.f32 %v308, %v454
        %v491 = vadd.f32 %v309, %v459
        %v492 = vadd.f32 %v310, %v462
        %v493 = vadd.f32 %v311, %v467
        %v494 = vadd.f32 %v312, %v470
        %v495 = vadd.f32 %v313, %v475
        %v496 = vadd.f32 %v314, %v478
        %497 = vst [vmem:[#allocation2] sm:$0xff] %v481
        %498 = vst [vmem:[#allocation2 + $0x8] sm:$0xff] %v482
        %499 = vst [vmem:[#allocation2 + $0x10] sm:$0xff] %v483
        %500 = vst [vmem:[#allocation2 + $0x18] sm:$0xff] %v484
        %501 = vst [vmem:[#allocation2 + $0x20] sm:$0xff] %v485
        %502 = vst [vmem:[#allocation2 + $0x28] sm:$0xff] %v486
        %503 = vst [vmem:[#allocation2 + $0x30] sm:$0xff] %v487
        %504 = vst [vmem:[#allocation2 + $0x38] sm:$0xff] %v488
        %505 = vst [vmem:[#allocation2 + $0x40] sm:$0xff] %v489
        %506 = vst [vmem:[#allocation2 + $0x48] sm:$0xff] %v490
        %507 = vst [vmem:[#allocation2 + $0x50] sm:$0xff] %v491
        %508 = vst [vmem:[#allocation2 + $0x58] sm:$0xff] %v492
        %509 = vst [vmem:[#allocation2 + $0x60] sm:$0xff] %v493
        %510 = vst [vmem:[#allocation2 + $0x68] sm:$0xff] %v494
        %511 = vst [vmem:[#allocation2 + $0x70] sm:$0xff] %v495
        %512 = vst [vmem:[#allocation2 + $0x78] sm:$0xff] %v496
        %s513 = scalar_lea.vmem %s2, 2
        %v514 = vld [vmem:[%s513] sm:$0x3]
        %v515 = vld [vmem:[%s247] sm:$0xf]
        %v516 = vld [vmem:[%s247 + $0x4] sm:$0xf]
        %v517 = vld [vmem:[%s247 + $0x8] sm:$0x1]
        %v518 = vld [vmem:[%s247 + $0xc] sm:$0xf]
        %v519 = vld [vmem:[%s247 + $0x10] sm:$0xf]
        %v520 = vld [vmem:[%s247 + $0x14] sm:$0x1]
        %v521 = vld [vmem:[%s247 + $0x18] sm:$0xf]
        %v522 = vld [vmem:[%s247 + $0x1c] sm:$0xf]
        %v523 = vld [vmem:[%s247 + $0x20] sm:$0x1]
        %v524 = vld [vmem:[%s247 + $0x24] sm:$0xf]
        %v525 = vld [vmem:[%s247 + $0x28] sm:$0xf]
        %v526 = vld [vmem:[%s247 + $0x2c] sm:$0x1]
        %v527 = vld [vmem:[%s247 + $0x30] sm:$0xf]
        %v528 = vld [vmem:[%s247 + $0x34] sm:$0xf]
        %v529 = vld [vmem:[%s247 + $0x38] sm:$0x1]
        %v530 = vld [vmem:[%s247 + $0x3c] sm:$0xf]
        %v531 = vld [vmem:[%s247 + $0x40] sm:$0xf]
        %v532 = vld [vmem:[%s247 + $0x44] sm:$0x1]
        %v533 = vld [vmem:[%s247 + $0x48] sm:$0xf]
        %v534 = vld [vmem:[%s247 + $0x4c] sm:$0xf]
        %v535 = vld [vmem:[%s247 + $0x50] sm:$0x1]
        %v536 = vld [vmem:[%s247 + $0x54] sm:$0xf]
        %v537 = vld [vmem:[%s247 + $0x58] sm:$0xf]
        %v538 = vld [vmem:[%s247 + $0x5c] sm:$0x1]
        %vm539 = vsmask.f32 3328
        %vm540 = vsmask.f32 7440
        %vm541 = vmor %vm539, %vm540
        %v543 = vshrl.u32 %v515, 16
        %v545 = vrot.slane %v543, 4
        %v546 = vshll.u32 %v515, 16
        %v548 = vrot.slane %v546, 5
        %v549 = vor.u32 %v545, %v548
        %v550 = vrot.slane %v549, 4
        %v552 = vshll.u32 %v516, 16
        %v554 = vrot.slane %v552, 5
        %v555 = vsel %vm541, %v550, %v554
        %v556 = vshrl.u32 %v516, 16
        %v558 = vrot.slane %v556, 4
        %v559 = vor.u32 %v558, %v554
        %v560 = vrot.slane %v559, 4
        %v562 = vshll.u32 %v517, 16
        %v564 = vrot.slane %v562, 5
        %v565 = vsel %vm541, %v560, %v564
        %v567 = vshrl.u32 %v518, 16
        %v569 = vrot.slane %v567, 4
        %v570 = vshll.u32 %v518, 16
        %v572 = vrot.slane %v570, 5
        %v573 = vor.u32 %v569, %v572
        %v574 = vrot.slane %v573, 4
        %v576 = vshll.u32 %v519, 16
        %v578 = vrot.slane %v576, 5
        %v579 = vsel %vm541, %v574, %v578
        %v580 = vshrl.u32 %v519, 16
        %v582 = vrot.slane %v580, 4
        %v583 = vor.u32 %v582, %v578
        %v584 = vrot.slane %v583, 4
        %v586 = vshll.u32 %v520, 16
        %v588 = vrot.slane %v586, 5
        %v589 = vsel %vm541, %v584, %v588
        %v591 = vshrl.u32 %v521, 16
        %v593 = vrot.slane %v591, 4
        %v594 = vshll.u32 %v521, 16
        %v596 = vrot.slane %v594, 5
        %v597 = vor.u32 %v593, %v596
        %v598 = vrot.slane %v597, 4
        %v600 = vshll.u32 %v522, 16
        %v602 = vrot.slane %v600, 5
        %v603 = vsel %vm541, %v598, %v602
        %v604 = vshrl.u32 %v522, 16
        %v606 = vrot.slane %v604, 4
        %v607 = vor.u32 %v606, %v602
        %v608 = vrot.slane %v607, 4
        %v610 = vshll.u32 %v523, 16
        %v612 = vrot.slane %v610, 5
        %v613 = vsel %vm541, %v608, %v612
        %v615 = vshrl.u32 %v524, 16
        %v617 = vrot.slane %v615, 4
        %v618 = vshll.u32 %v524, 16
        %v620 = vrot.slane %v618, 5
        %v621 = vor.u32 %v617, %v620
        %v622 = vrot.slane %v621, 4
        %v624 = vshll.u32 %v525, 16
        %v626 = vrot.slane %v624, 5
        %v627 = vsel %vm541, %v622, %v626
        %v628 = vshrl.u32 %v525, 16
        %v630 = vrot.slane %v628, 4
        %v631 = vor.u32 %v630, %v626
        %v632 = vrot.slane %v631, 4
        %v634 = vshll.u32 %v526, 16
        %v636 = vrot.slane %v634, 5
        %v637 = vsel %vm541, %v632, %v636
        %v639 = vshrl.u32 %v527, 16
        %v641 = vrot.slane %v639, 4
        %v642 = vshll.u32 %v527, 16
        %v644 = vrot.slane %v642, 5
        %v645 = vor.u32 %v641, %v644
        %v646 = vrot.slane %v645, 4
        %v648 = vshll.u32 %v528, 16
        %v650 = vrot.slane %v648, 5
        %v651 = vsel %vm541, %v646, %v650
        %v652 = vshrl.u32 %v528, 16
        %v654 = vrot.slane %v652, 4
        %v655 = vor.u32 %v654, %v650
        %v656 = vrot.slane %v655, 4
        %v658 = vshll.u32 %v529, 16
        %v660 = vrot.slane %v658, 5
        %v661 = vsel %vm541, %v656, %v660
        %v663 = vshrl.u32 %v530, 16
        %v665 = vrot.slane %v663, 4
        %v666 = vshll.u32 %v530, 16
        %v668 = vrot.slane %v666, 5
        %v669 = vor.u32 %v665, %v668
        %v670 = vrot.slane %v669, 4
        %v672 = vshll.u32 %v531, 16
        %v674 = vrot.slane %v672, 5
        %v675 = vsel %vm541, %v670, %v674
        %v676 = vshrl.u32 %v531, 16
        %v678 = vrot.slane %v676, 4
        %v679 = vor.u32 %v678, %v674
        %v680 = vrot.slane %v679, 4
        %v682 = vshll.u32 %v532, 16
        %v684 = vrot.slane %v682, 5
        %v685 = vsel %vm541, %v680, %v684
        %v687 = vshrl.u32 %v533, 16
        %v689 = vrot.slane %v687, 4
        %v690 = vshll.u32 %v533, 16
        %v692 = vrot.slane %v690, 5
        %v693 = vor.u32 %v689, %v692
        %v694 = vrot.slane %v693, 4
        %v696 = vshll.u32 %v534, 16
        %v698 = vrot.slane %v696, 5
        %v699 = vsel %vm541, %v694, %v698
        %v700 = vshrl.u32 %v534, 16
        %v702 = vrot.slane %v700, 4
        %v703 = vor.u32 %v702, %v698
        %v704 = vrot.slane %v703, 4
        %v706 = vshll.u32 %v535, 16
        %v708 = vrot.slane %v706, 5
        %v709 = vsel %vm541, %v704, %v708
        %v711 = vshrl.u32 %v536, 16
        %v713 = vrot.slane %v711, 4
        %v714 = vshll.u32 %v536, 16
        %v716 = vrot.slane %v714, 5
        %v717 = vor.u32 %v713, %v716
        %v718 = vrot.slane %v717, 4
        %v720 = vshll.u32 %v537, 16
        %v722 = vrot.slane %v720, 5
        %v723 = vsel %vm541, %v718, %v722
        %v724 = vshrl.u32 %v537, 16
        %v726 = vrot.slane %v724, 4
        %v727 = vor.u32 %v726, %v722
        %v728 = vrot.slane %v727, 4
        %v730 = vshll.u32 %v538, 16
        %v732 = vrot.slane %v730, 5
        %v733 = vsel %vm541, %v728, %v732
        %v734 = vld [vmem:[#allocation2] sm:$0xff]
        %v735 = vld [vmem:[#allocation2 + $0x8] sm:$0xff]
        %v736 = vld [vmem:[#allocation2 + $0x10] sm:$0xff]
        %v737 = vld [vmem:[#allocation2 + $0x18] sm:$0xff]
        %v738 = vld [vmem:[#allocation2 + $0x20] sm:$0xff]
        %v739 = vld [vmem:[#allocation2 + $0x28] sm:$0xff]
        %v740 = vld [vmem:[#allocation2 + $0x30] sm:$0xff]
        %v741 = vld [vmem:[#allocation2 + $0x38] sm:$0xff]
        %v742 = vld [vmem:[#allocation2 + $0x40] sm:$0xff]
        %v743 = vld [vmem:[#allocation2 + $0x48] sm:$0xff]
        %v744 = vld [vmem:[#allocation2 + $0x50] sm:$0xff]
        %v745 = vld [vmem:[#allocation2 + $0x58] sm:$0xff]
        %v746 = vld [vmem:[#allocation2 + $0x60] sm:$0xff]
        %v747 = vld [vmem:[#allocation2 + $0x68] sm:$0xff]
        %v748 = vld [vmem:[#allocation2 + $0x70] sm:$0xff]
        %v749 = vld [vmem:[#allocation2 + $0x78] sm:$0xff]
        %v750 = vunpack.c.l.b16 %v555
        %v751 = vunpack.c.l.b16 %v565
        %v752 = vunpack.c.l.b16 %v579
        %v753 = vunpack.c.l.b16 %v589
        %v754 = vunpack.c.l.b16 %v603
        %v755 = vunpack.c.l.b16 %v613
        %v756 = vunpack.c.l.b16 %v627
        %v757 = vunpack.c.l.b16 %v637
        %v758 = vunpack.c.l.b16 %v651
        %v759 = vunpack.c.l.b16 %v661
        %v760 = vunpack.c.l.b16 %v675
        %v761 = vunpack.c.l.b16 %v685
        %v762 = vunpack.c.l.b16 %v699
        %v763 = vunpack.c.l.b16 %v709
        %v764 = vunpack.c.l.b16 %v723
        %v765 = vunpack.c.l.b16 %v733
        %v766 = vpack.c.b16 %v751, %v750
        %v767 = vpack.c.b16 %v753, %v752
        %v768 = vpack.c.b16 %v755, %v754
        %v769 = vpack.c.b16 %v757, %v756
        %v770 = vpack.c.b16 %v759, %v758
        %v771 = vpack.c.b16 %v761, %v760
        %v772 = vpack.c.b16 %v763, %v762
        %v773 = vpack.c.b16 %v765, %v764
        %v775 = vsel %vm355, %v766, 0
        %v778 = vsel %vm355, %v767, 0
        %v781 = vsel %vm355, %v768, 0
        %v784 = vsel %vm355, %v769, 0
        %v787 = vsel %vm355, %v770, 0
        %v790 = vsel %vm355, %v771, 0
        %v793 = vsel %vm355, %v772, 0
        %v796 = vsel %vm355, %v773, 0
        %v799 = vsel %vm380, %v514, 0
        %801 = vmatprep.subr.bf16.mxu0 0
        %802 = vmatpush1.bf16.msra.mxu0 %v799
        %803 = vmatprep.subr.bf16.mxu0 0
        %804 = vmatpush1.bf16.msra.mxu0 0
        %805 = vmatprep.subr.bf16.mxu0 0
        %806 = vmatpush1.bf16.msra.mxu0 0
        %807 = vmatprep.subr.bf16.mxu0 0
        %808 = vmatpush1.bf16.msra.mxu0 0
        %809 = vmatprep.subr.bf16.mxu0 0
        %810 = vmatpush1.bf16.msra.mxu0 0
        %811 = vmatprep.subr.bf16.mxu0 0
        %812 = vmatpush1.bf16.msra.mxu0 0
        %813 = vmatprep.subr.bf16.mxu0 0
        %814 = vmatpush1.bf16.msra.mxu0 0
        %815 = vmatprep.subr.bf16.mxu0 0
        %816 = vmatpush1.bf16.msra.mxu0 0
        %817 = vmatprep.subr.bf16.mxu0 0
        %818 = vmatpush1.bf16.msra.mxu0 0
        %819 = vmatprep.subr.bf16.mxu0 0
        %820 = vmatpush1.bf16.msra.mxu0 0
        %821 = vmatprep.subr.bf16.mxu0 0
        %822 = vmatpush1.bf16.msra.mxu0 0
        %823 = vmatprep.subr.bf16.mxu0 0
        %824 = vmatpush1.bf16.msra.mxu0 0
        %825 = vmatprep.subr.bf16.mxu0 0
        %826 = vmatpush1.bf16.msra.mxu0 0
        %827 = vmatprep.subr.bf16.mxu0 0
        %828 = vmatpush1.bf16.msra.mxu0 0
        %829 = vmatprep.subr.bf16.mxu0 0
        %830 = vmatpush1.bf16.msra.mxu0 0
        %831 = vmatprep.subr.bf16.mxu0 0
        %832 = vmatpush1.bf16.msra.mxu0 0
        %833 = vmatprep.mubr.bf16.mxu0 0
        %834 = vmatmul.mubr.bf16.gmra.mrb[0].mxu0 %v775
        %v835 = vpop.f32.mrb[0].mxu0
        %v836 = vadd.f32 0.0, %v835
        %v837 = vpop.f32.mrb[0].mxu0
        %v838 = vpop.f32.mrb[0].mxu0
        %v839 = vadd.f32 0.0, %v838
        %v840 = vpop.f32.mrb[0].mxu0
        %841 = vmatprep.mubr.bf16.mxu0 0
        %842 = vmatmul.mubr.bf16.gmra.mrb[0].mxu0 %v778
        %v843 = vpop.f32.mrb[0].mxu0
        %v844 = vadd.f32 0.0, %v843
        %v845 = vpop.f32.mrb[0].mxu0
        %v846 = vpop.f32.mrb[0].mxu0
        %v847 = vadd.f32 0.0, %v846
        %v848 = vpop.f32.mrb[0].mxu0
        %849 = vmatprep.mubr.bf16.mxu0 0
        %850 = vmatmul.mubr.bf16.gmra.mrb[0].mxu0 %v781
        %v851 = vpop.f32.mrb[0].mxu0
        %v852 = vadd.f32 0.0, %v851
        %v853 = vpop.f32.mrb[0].mxu0
        %v854 = vpop.f32.mrb[0].mxu0
        %v855 = vadd.f32 0.0, %v854
        %v856 = vpop.f32.mrb[0].mxu0
        %857 = vmatprep.mubr.bf16.mxu0 0
        %858 = vmatmul.mubr.bf16.gmra.mrb[0].mxu0 %v784
        %v859 = vpop.f32.mrb[0].mxu0
        %v860 = vadd.f32 0.0, %v859
        %v861 = vpop.f32.mrb[0].mxu0
        %v862 = vpop.f32.mrb[0].mxu0
        %v863 = vadd.f32 0.0, %v862
        %v864 = vpop.f32.mrb[0].mxu0
        %865 = vmatprep.mubr.bf16.mxu0 0
        %866 = vmatmul.mubr.bf16.gmra.mrb[0].mxu0 %v787
        %v867 = vpop.f32.mrb[0].mxu0
        %v868 = vadd.f32 0.0, %v867
        %v869 = vpop.f32.mrb[0].mxu0
        %v870 = vpop.f32.mrb[0].mxu0
        %v871 = vadd.f32 0.0, %v870
        %v872 = vpop.f32.mrb[0].mxu0
        %873 = vmatprep.mubr.bf16.mxu0 0
        %874 = vmatmul.mubr.bf16.gmra.mrb[0].mxu0 %v790
        %v875 = vpop.f32.mrb[0].mxu0
        %v876 = vadd.f32 0.0, %v875
        %v877 = vpop.f32.mrb[0].mxu0
        %v878 = vpop.f32.mrb[0].mxu0
        %v879 = vadd.f32 0.0, %v878
        %v880 = vpop.f32.mrb[0].mxu0
        %881 = vmatprep.mubr.bf16.mxu0 0
        %882 = vmatmul.mubr.bf16.gmra.mrb[0].mxu0 %v793
        %v883 = vpop.f32.mrb[0].mxu0
        %v884 = vadd.f32 0.0, %v883
        %v885 = vpop.f32.mrb[0].mxu0
        %v886 = vpop.f32.mrb[0].mxu0
        %v887 = vadd.f32 0.0, %v886
        %v888 = vpop.f32.mrb[0].mxu0
        %889 = vmatprep.mubr.bf16.mxu0 0
        %890 = vmatmul.mubr.bf16.gmra.mrb[0].mxu0 %v796
        %v891 = vpop.f32.mrb[0].mxu0
        %v892 = vadd.f32 0.0, %v891
        %v893 = vpop.f32.mrb[0].mxu0
        %v894 = vpop.f32.mrb[0].mxu0
        %v895 = vadd.f32 0.0, %v894
        %v896 = vpop.f32.mrb[0].mxu0
        %897 = vdwg.mxu0
        %v898 = vadd.f32 %v734, %v836
        %v899 = vadd.f32 %v735, %v839
        %v900 = vadd.f32 %v736, %v844
        %v901 = vadd.f32 %v737, %v847
        %v902 = vadd.f32 %v738, %v852
        %v903 = vadd.f32 %v739, %v855
        %v904 = vadd.f32 %v740, %v860
        %v905 = vadd.f32 %v741, %v863
        %v906 = vadd.f32 %v742, %v868
        %v907 = vadd.f32 %v743, %v871
        %v908 = vadd.f32 %v744, %v876
        %v909 = vadd.f32 %v745, %v879
        %v910 = vadd.f32 %v746, %v884
        %v911 = vadd.f32 %v747, %v887
        %v912 = vadd.f32 %v748, %v892
        %v913 = vadd.f32 %v749, %v895
        %914 = vst [vmem:[#allocation2] sm:$0xff] %v898
        %915 = vst [vmem:[#allocation2 + $0x8] sm:$0xff] %v899
        %916 = vst [vmem:[#allocation2 + $0x10] sm:$0xff] %v900
        %917 = vst [vmem:[#allocation2 + $0x18] sm:$0xff] %v901
        %918 = vst [vmem:[#allocation2 + $0x20] sm:$0xff] %v902
        %919 = vst [vmem:[#allocation2 + $0x28] sm:$0xff] %v903
        %920 = vst [vmem:[#allocation2 + $0x30] sm:$0xff] %v904
        %921 = vst [vmem:[#allocation2 + $0x38] sm:$0xff] %v905
        %922 = vst [vmem:[#allocation2 + $0x40] sm:$0xff] %v906
        %923 = vst [vmem:[#allocation2 + $0x48] sm:$0xff] %v907
        %924 = vst [vmem:[#allocation2 + $0x50] sm:$0xff] %v908
        %925 = vst [vmem:[#allocation2 + $0x58] sm:$0xff] %v909
        %926 = vst [vmem:[#allocation2 + $0x60] sm:$0xff] %v910
        %927 = vst [vmem:[#allocation2 + $0x68] sm:$0xff] %v911
        %928 = vst [vmem:[#allocation2 + $0x70] sm:$0xff] %v912
        %929 = vst [vmem:[#allocation2 + $0x78] sm:$0xff] %v913
        %s930 = scalar_lea.vmem %s2, 4
        %v931 = vld [vmem:[%s930] sm:$0x3]
        %v932 = vld [vmem:[%s247] sm:$0xe]
        %v933 = vld [vmem:[%s247 + $0x4] sm:$0xf]
        %v934 = vld [vmem:[%s247 + $0x8] sm:$0x1]
        %v935 = vld [vmem:[%s247 + $0xc] sm:$0xe]
        %v936 = vld [vmem:[%s247 + $0x10] sm:$0xf]
        %v937 = vld [vmem:[%s247 + $0x14] sm:$0x1]
        %v938 = vld [vmem:[%s247 + $0x18] sm:$0xe]
        %v939 = vld [vmem:[%s247 + $0x1c] sm:$0xf]
        %v940 = vld [vmem:[%s247 + $0x20] sm:$0x1]
        %v941 = vld [vmem:[%s247 + $0x24] sm:$0xe]
        %v942 = vld [vmem:[%s247 + $0x28] sm:$0xf]
        %v943 = vld [vmem:[%s247 + $0x2c] sm:$0x1]
        %v944 = vld [vmem:[%s247 + $0x30] sm:$0xe]
        %v945 = vld [vmem:[%s247 + $0x34] sm:$0xf]
        %v946 = vld [vmem:[%s247 + $0x38] sm:$0x1]
        %v947 = vld [vmem:[%s247 + $0x3c] sm:$0xe]
        %v948 = vld [vmem:[%s247 + $0x40] sm:$0xf]
        %v949 = vld [vmem:[%s247 + $0x44] sm:$0x1]
        %v950 = vld [vmem:[%s247 + $0x48] sm:$0xe]
        %v951 = vld [vmem:[%s247 + $0x4c] sm:$0xf]
        %v952 = vld [vmem:[%s247 + $0x50] sm:$0x1]
        %v953 = vld [vmem:[%s247 + $0x54] sm:$0xe]
        %v954 = vld [vmem:[%s247 + $0x58] sm:$0xf]
        %v955 = vld [vmem:[%s247 + $0x5c] sm:$0x1]
        %vm980 = vcmask 1042432
        %vm981 = vcmask 1046532
        %vm982 = vmor %vm980, %vm981
        %v983 = vrot.slane %v932, 5
        %v984 = vrot.slane %v983, 4
        %v985 = vrot.slane %v933, 5
        %v986 = vsel %vm982, %v984, %v985
        %v987 = vrot.slane %v985, 4
        %v988 = vrot.slane %v934, 5
        %v989 = vsel %vm982, %v987, %v988
        %v990 = vrot.slane %v935, 5
        %v991 = vrot.slane %v990, 4
        %v992 = vrot.slane %v936, 5
        %v993 = vsel %vm982, %v991, %v992
        %v994 = vrot.slane %v992, 4
        %v995 = vrot.slane %v937, 5
        %v996 = vsel %vm982, %v994, %v995
        %v997 = vrot.slane %v938, 5
        %v998 = vrot.slane %v997, 4
        %v999 = vrot.slane %v939, 5
        %v1000 = vsel %vm982, %v998, %v999
        %v1001 = vrot.slane %v999, 4
        %v1002 = vrot.slane %v940, 5
        %v1003 = vsel %vm982, %v1001, %v1002
        %v1004 = vrot.slane %v941, 5
        %v1005 = vrot.slane %v1004, 4
        %v1006 = vrot.slane %v942, 5
        %v1007 = vsel %vm982, %v1005, %v1006
        %v1008 = vrot.slane %v1006, 4
        %v1009 = vrot.slane %v943, 5
        %v1010 = vsel %vm982, %v1008, %v1009
        %v1011 = vrot.slane %v944, 5
        %v1012 = vrot.slane %v1011, 4
        %v1013 = vrot.slane %v945, 5
        %v1014 = vsel %vm982, %v1012, %v1013
        %v1015 = vrot.slane %v1013, 4
        %v1016 = vrot.slane %v946, 5
        %v1017 = vsel %vm982, %v1015, %v1016
        %v1018 = vrot.slane %v947, 5
        %v1019 = vrot.slane %v1018, 4
        %v1020 = vrot.slane %v948, 5
        %v1021 = vsel %vm982, %v1019, %v1020
        %v1022 = vrot.slane %v1020, 4
        %v1023 = vrot.slane %v949, 5
        %v1024 = vsel %vm982, %v1022, %v1023
        %v1025 = vrot.slane %v950, 5
        %v1026 = vrot.slane %v1025, 4
        %v1027 = vrot.slane %v951, 5
        %v1028 = vsel %vm982, %v1026, %v1027
        %v1029 = vrot.slane %v1027, 4
        %v1030 = vrot.slane %v952, 5
        %v1031 = vsel %vm982, %v1029, %v1030
        %v1032 = vrot.slane %v953, 5
        %v1033 = vrot.slane %v1032, 4
        %v1034 = vrot.slane %v954, 5
        %v1035 = vsel %vm982, %v1033, %v1034
        %v1036 = vrot.slane %v1034, 4
        %v1037 = vrot.slane %v955, 5
        %v1038 = vsel %vm982, %v1036, %v1037
        %v1039 = vld [vmem:[#allocation2] sm:$0xff]
        %v1040 = vld [vmem:[#allocation2 + $0x8] sm:$0xff]
        %v1041 = vld [vmem:[#allocation2 + $0x10] sm:$0xff]
        %v1042 = vld [vmem:[#allocation2 + $0x18] sm:$0xff]
        %v1043 = vld [vmem:[#allocation2 + $0x20] sm:$0xff]
        %v1044 = vld [vmem:[#allocation2 + $0x28] sm:$0xff]
        %v1045 = vld [vmem:[#allocation2 + $0x30] sm:$0xff]
        %v1046 = vld [vmem:[#allocation2 + $0x38] sm:$0xff]
        %v1047 = vld [vmem:[#allocation2 + $0x40] sm:$0xff]
        %v1048 = vld [vmem:[#allocation2 + $0x48] sm:$0xff]
        %v1049 = vld [vmem:[#allocation2 + $0x50] sm:$0xff]
        %v1050 = vld [vmem:[#allocation2 + $0x58] sm:$0xff]
        %v1051 = vld [vmem:[#allocation2 + $0x60] sm:$0xff]
        %v1052 = vld [vmem:[#allocation2 + $0x68] sm:$0xff]
        %v1053 = vld [vmem:[#allocation2 + $0x70] sm:$0xff]
        %v1054 = vld [vmem:[#allocation2 + $0x78] sm:$0xff]
        %v1055 = vunpack.c.l.b16 %v986
        %v1056 = vunpack.c.l.b16 %v989
        %v1057 = vunpack.c.l.b16 %v993
        %v1058 = vunpack.c.l.b16 %v996
        %v1059 = vunpack.c.l.b16 %v1000
        %v1060 = vunpack.c.l.b16 %v1003
        %v1061 = vunpack.c.l.b16 %v1007
        %v1062 = vunpack.c.l.b16 %v1010
        %v1063 = vunpack.c.l.b16 %v1014
        %v1064 = vunpack.c.l.b16 %v1017
        %v1065 = vunpack.c.l.b16 %v1021
        %v1066 = vunpack.c.l.b16 %v1024
        %v1067 = vunpack.c.l.b16 %v1028
        %v1068 = vunpack.c.l.b16 %v1031
        %v1069 = vunpack.c.l.b16 %v1035
        %v1070 = vunpack.c.l.b16 %v1038
        %v1071 = vpack.c.b16 %v1056, %v1055
        %v1072 = vpack.c.b16 %v1058, %v1057
        %v1073 = vpack.c.b16 %v1060, %v1059
        %v1074 = vpack.c.b16 %v1062, %v1061
        %v1075 = vpack.c.b16 %v1064, %v1063
        %v1076 = vpack.c.b16 %v1066, %v1065
        %v1077 = vpack.c.b16 %v1068, %v1067
        %v1078 = vpack.c.b16 %v1070, %v1069
        %v1080 = vsel %vm355, %v1071, 0
        %v1083 = vsel %vm355, %v1072, 0
        %v1086 = vsel %vm355, %v1073, 0
        %v1089 = vsel %vm355, %v1074, 0
        %v1092 = vsel %vm355, %v1075, 0
        %v1095 = vsel %vm355, %v1076, 0
        %v1098 = vsel %vm355, %v1077, 0
        %v1101 = vsel %vm355, %v1078, 0
        %v1104 = vsel %vm380, %v931, 0
        %1106 = vmatprep.subr.bf16.mxu0 0
        %1107 = vmatpush1.bf16.msra.mxu0 %v1104
        %1108 = vmatprep.subr.bf16.mxu0 0
        %1109 = vmatpush1.bf16.msra.mxu0 0
        %1110 = vmatprep.subr.bf16.mxu0 0
        %1111 = vmatpush1.bf16.msra.mxu0 0
        %1112 = vmatprep.subr.bf16.mxu0 0
        %1113 = vmatpush1.bf16.msra.mxu0 0
        %1114 = vmatprep.subr.bf16.mxu0 0
        %1115 = vmatpush1.bf16.msra.mxu0 0
        %1116 = vmatprep.subr.bf16.mxu0 0
        %1117 = vmatpush1.bf16.msra.mxu0 0
        %1118 = vmatprep.subr.bf16.mxu0 0
        %1119 = vmatpush1.bf16.msra.mxu0 0
        %1120 = vmatprep.subr.bf16.mxu0 0
        %1121 = vmatpush1.bf16.msra.mxu0 0
        %1122 = vmatprep.subr.bf16.mxu0 0
        %1123 = vmatpush1.bf16.msra.mxu0 0
        %1124 = vmatprep.subr.bf16.mxu0 0
        %1125 = vmatpush1.bf16.msra.mxu0 0
        %1126 = vmatprep.subr.bf16.mxu0 0
        %1127 = vmatpush1.bf16.msra.mxu0 0
        %1128 = vmatprep.subr.bf16.mxu0 0
        %1129 = vmatpush1.bf16.msra.mxu0 0
        %1130 = vmatprep.subr.bf16.mxu0 0
        %1131 = vmatpush1.bf16.msra.mxu0 0
        %1132 = vmatprep.subr.bf16.mxu0 0
        %1133 = vmatpush1.bf16.msra.mxu0 0
        %1134 = vmatprep.subr.bf16.mxu0 0
        %1135 = vmatpush1.bf16.msra.mxu0 0
        %1136 = vmatprep.subr.bf16.mxu0 0
        %1137 = vmatpush1.bf16.msra.mxu0 0
        %1138 = vmatprep.mubr.bf16.mxu0 0
        %1139 = vmatmul.mubr.bf16.gmra.mrb[0].mxu0 %v1080
        %v1140 = vpop.f32.mrb[0].mxu0
        %v1141 = vadd.f32 0.0, %v1140
        %v1142 = vpop.f32.mrb[0].mxu0
        %v1143 = vpop.f32.mrb[0].mxu0
        %v1144 = vadd.f32 0.0, %v1143
        %v1145 = vpop.f32.mrb[0].mxu0
        %1146 = vmatprep.mubr.bf16.mxu0 0
        %1147 = vmatmul.mubr.bf16.gmra.mrb[0].mxu0 %v1083
        %v1148 = vpop.f32.mrb[0].mxu0
        %v1149 = vadd.f32 0.0, %v1148
        %v1150 = vpop.f32.mrb[0].mxu0
        %v1151 = vpop.f32.mrb[0].mxu0
        %v1152 = vadd.f32 0.0, %v1151
        %v1153 = vpop.f32.mrb[0].mxu0
        %1154 = vmatprep.mubr.bf16.mxu0 0
        %1155 = vmatmul.mubr.bf16.gmra.mrb[0].mxu0 %v1086
        %v1156 = vpop.f32.mrb[0].mxu0
        %v1157 = vadd.f32 0.0, %v1156
        %v1158 = vpop.f32.mrb[0].mxu0
        %v1159 = vpop.f32.mrb[0].mxu0
        %v1160 = vadd.f32 0.0, %v1159
        %v1161 = vpop.f32.mrb[0].mxu0
        %1162 = vmatprep.mubr.bf16.mxu0 0
        %1163 = vmatmul.mubr.bf16.gmra.mrb[0].mxu0 %v1089
        %v1164 = vpop.f32.mrb[0].mxu0
        %v1165 = vadd.f32 0.0, %v1164
        %v1166 = vpop.f32.mrb[0].mxu0
        %v1167 = vpop.f32.mrb[0].mxu0
        %v1168 = vadd.f32 0.0, %v1167
        %v1169 = vpop.f32.mrb[0].mxu0
        %1170 = vmatprep.mubr.bf16.mxu0 0
        %1171 = vmatmul.mubr.bf16.gmra.mrb[0].mxu0 %v1092
        %v1172 = vpop.f32.mrb[0].mxu0
        %v1173 = vadd.f32 0.0, %v1172
        %v1174 = vpop.f32.mrb[0].mxu0
        %v1175 = vpop.f32.mrb[0].mxu0
        %v1176 = vadd.f32 0.0, %v1175
        %v1177 = vpop.f32.mrb[0].mxu0
        %1178 = vmatprep.mubr.bf16.mxu0 0
        %1179 = vmatmul.mubr.bf16.gmra.mrb[0].mxu0 %v1095
        %v1180 = vpop.f32.mrb[0].mxu0
        %v1181 = vadd.f32 0.0, %v1180
        %v1182 = vpop.f32.mrb[0].mxu0
        %v1183 = vpop.f32.mrb[0].mxu0
        %v1184 = vadd.f32 0.0, %v1183
        %v1185 = vpop.f32.mrb[0].mxu0
        %1186 = vmatprep.mubr.bf16.mxu0 0
        %1187 = vmatmul.mubr.bf16.gmra.mrb[0].mxu0 %v1098
        %v1188 = vpop.f32.mrb[0].mxu0
        %v1189 = vadd.f32 0.0, %v1188
        %v1190 = vpop.f32.mrb[0].mxu0
        %v1191 = vpop.f32.mrb[0].mxu0
        %v1192 = vadd.f32 0.0, %v1191
        %v1193 = vpop.f32.mrb[0].mxu0
        %1194 = vmatprep.mubr.bf16.mxu0 0
        %1195 = vmatmul.mubr.bf16.gmra.mrb[0].mxu0 %v1101
        %v1196 = vpop.f32.mrb[0].mxu0
        %v1197 = vadd.f32 0.0, %v1196
        %v1198 = vpop.f32.mrb[0].mxu0
        %v1199 = vpop.f32.mrb[0].mxu0
        %v1200 = vadd.f32 0.0, %v1199
        %v1201 = vpop.f32.mrb[0].mxu0
        %1202 = vdwg.mxu0
        %v1203 = vadd.f32 %v1039, %v1141
        %v1204 = vadd.f32 %v1040, %v1144
        %v1205 = vadd.f32 %v1041, %v1149
        %v1206 = vadd.f32 %v1042, %v1152
        %v1207 = vadd.f32 %v1043, %v1157
        %v1208 = vadd.f32 %v1044, %v1160
        %v1209 = vadd.f32 %v1045, %v1165
        %v1210 = vadd.f32 %v1046, %v1168
        %v1211 = vadd.f32 %v1047, %v1173
        %v1212 = vadd.f32 %v1048, %v1176
        %v1213 = vadd.f32 %v1049, %v1181
        %v1214 = vadd.f32 %v1050, %v1184
        %v1215 = vadd.f32 %v1051, %v1189
        %v1216 = vadd.f32 %v1052, %v1192
        %v1217 = vadd.f32 %v1053, %v1197
        %v1218 = vadd.f32 %v1054, %v1200
        %1219 = vst [vmem:[#allocation2] sm:$0xff] %v1203
        %1220 = vst [vmem:[#allocation2 + $0x8] sm:$0xff] %v1204
        %1221 = vst [vmem:[#allocation2 + $0x10] sm:$0xff] %v1205
        %1222 = vst [vmem:[#allocation2 + $0x18] sm:$0xff] %v1206
        %1223 = vst [vmem:[#allocation2 + $0x20] sm:$0xff] %v1207
        %1224 = vst [vmem:[#allocation2 + $0x28] sm:$0xff] %v1208
        %1225 = vst [vmem:[#allocation2 + $0x30] sm:$0xff] %v1209
        %1226 = vst [vmem:[#allocation2 + $0x38] sm:$0xff] %v1210
        %1227 = vst [vmem:[#allocation2 + $0x40] sm:$0xff] %v1211
        %1228 = vst [vmem:[#allocation2 + $0x48] sm:$0xff] %v1212
        %1229 = vst [vmem:[#allocation2 + $0x50] sm:$0xff] %v1213
        %1230 = vst [vmem:[#allocation2 + $0x58] sm:$0xff] %v1214
        %1231 = vst [vmem:[#allocation2 + $0x60] sm:$0xff] %v1215
        %1232 = vst [vmem:[#allocation2 + $0x68] sm:$0xff] %v1216
        %1233 = vst [vmem:[#allocation2 + $0x70] sm:$0xff] %v1217
        %1234 = vst [vmem:[#allocation2 + $0x78] sm:$0xff] %v1218
        %s1235 = scalar_lea.vmem %s2, 6
        %v1236 = vld [vmem:[%s1235] sm:$0x3]
        %s1237 = scalar_lea.vmem %s247, 12
        %v1238 = vld [vmem:[%s1237] sm:$0xf]
        %v1239 = vld [vmem:[%s1237 + $0x4] sm:$0xf]
        %v1240 = vld [vmem:[%s1237 + $0xc] sm:$0xf]
        %v1241 = vld [vmem:[%s1237 + $0x10] sm:$0xf]
        %v1242 = vld [vmem:[%s1237 + $0x18] sm:$0xf]
        %v1243 = vld [vmem:[%s1237 + $0x1c] sm:$0xf]
        %v1244 = vld [vmem:[%s1237 + $0x24] sm:$0xf]
        %v1245 = vld [vmem:[%s1237 + $0x28] sm:$0xf]
        %v1246 = vld [vmem:[%s1237 + $0x30] sm:$0xf]
        %v1247 = vld [vmem:[%s1237 + $0x34] sm:$0xf]
        %v1248 = vld [vmem:[%s1237 + $0x3c] sm:$0xf]
        %v1249 = vld [vmem:[%s1237 + $0x40] sm:$0xf]
        %v1250 = vld [vmem:[%s1237 + $0x48] sm:$0xf]
        %v1251 = vld [vmem:[%s1237 + $0x4c] sm:$0xf]
        %v1252 = vld [vmem:[#allocation2] sm:$0xff]
        %v1253 = vld [vmem:[#allocation2 + $0x8] sm:$0xff]
        %v1254 = vld [vmem:[#allocation2 + $0x10] sm:$0xff]
        %v1255 = vld [vmem:[#allocation2 + $0x18] sm:$0xff]
        %v1256 = vld [vmem:[#allocation2 + $0x20] sm:$0xff]
        %v1257 = vld [vmem:[#allocation2 + $0x28] sm:$0xff]
        %v1258 = vld [vmem:[#allocation2 + $0x30] sm:$0xff]
        %v1259 = vld [vmem:[#allocation2 + $0x38] sm:$0xff]
        %v1260 = vld [vmem:[#allocation2 + $0x40] sm:$0xff]
        %v1261 = vld [vmem:[#allocation2 + $0x48] sm:$0xff]
        %v1262 = vld [vmem:[#allocation2 + $0x50] sm:$0xff]
        %v1263 = vld [vmem:[#allocation2 + $0x58] sm:$0xff]
        %v1264 = vld [vmem:[#allocation2 + $0x60] sm:$0xff]
        %v1265 = vld [vmem:[#allocation2 + $0x68] sm:$0xff]
        %v1280 = vunpack.c.l.b16 %v1238
        %v1281 = vunpack.c.l.b16 %v1239
        %v1282 = vunpack.c.l.b16 %v1240
        %v1283 = vunpack.c.l.b16 %v1241
        %v1284 = vunpack.c.l.b16 %v1242
        %v1285 = vunpack.c.l.b16 %v1243
        %v1286 = vunpack.c.l.b16 %v1244
        %v1287 = vunpack.c.l.b16 %v1245
        %v1288 = vunpack.c.l.b16 %v1246
        %v1289 = vunpack.c.l.b16 %v1247
        %v1290 = vunpack.c.l.b16 %v1248
        %v1291 = vunpack.c.l.b16 %v1249
        %v1292 = vunpack.c.l.b16 %v1250
        %v1293 = vunpack.c.l.b16 %v1251
        %v1294 = vpack.c.b16 %v1281, %v1280
        %v1295 = vpack.c.b16 %v1283, %v1282
        %v1296 = vpack.c.b16 %v1285, %v1284
        %v1297 = vpack.c.b16 %v1287, %v1286
        %v1298 = vpack.c.b16 %v1289, %v1288
        %v1299 = vpack.c.b16 %v1291, %v1290
        %v1300 = vpack.c.b16 %v1293, %v1292
        %v1302 = vsel %vm355, %v1294, 0
        %v1305 = vsel %vm355, %v1295, 0
        %v1308 = vsel %vm355, %v1296, 0
        %v1311 = vsel %vm355, %v1297, 0
        %v1314 = vsel %vm355, %v1298, 0
        %v1317 = vsel %vm355, %v1299, 0
        %v1320 = vsel %vm355, %v1300, 0
        %v1323 = vsel %vm380, %v1236, 0
        %1325 = vmatprep.subr.bf16.mxu0 0
        %1326 = vmatpush1.bf16.msra.mxu0 %v1323
        %1327 = vmatprep.subr.bf16.mxu0 0
        %1328 = vmatpush1.bf16.msra.mxu0 0
        %1329 = vmatprep.subr.bf16.mxu0 0
        %1330 = vmatpush1.bf16.msra.mxu0 0
        %1331 = vmatprep.subr.bf16.mxu0 0
        %1332 = vmatpush1.bf16.msra.mxu0 0
        %1333 = vmatprep.subr.bf16.mxu0 0
        %1334 = vmatpush1.bf16.msra.mxu0 0
        %1335 = vmatprep.subr.bf16.mxu0 0
        %1336 = vmatpush1.bf16.msra.mxu0 0
        %1337 = vmatprep.subr.bf16.mxu0 0
        %1338 = vmatpush1.bf16.msra.mxu0 0
        %1339 = vmatprep.subr.bf16.mxu0 0
        %1340 = vmatpush1.bf16.msra.mxu0 0
        %1341 = vmatprep.subr.bf16.mxu0 0
        %1342 = vmatpush1.bf16.msra.mxu0 0
        %1343 = vmatprep.subr.bf16.mxu0 0
        %1344 = vmatpush1.bf16.msra.mxu0 0
        %1345 = vmatprep.subr.bf16.mxu0 0
        %1346 = vmatpush1.bf16.msra.mxu0 0
        %1347 = vmatprep.subr.bf16.mxu0 0
        %1348 = vmatpush1.bf16.msra.mxu0 0
        %1349 = vmatprep.subr.bf16.mxu0 0
        %1350 = vmatpush1.bf16.msra.mxu0 0
        %1351 = vmatprep.subr.bf16.mxu0 0
        %1352 = vmatpush1.bf16.msra.mxu0 0
        %1353 = vmatprep.subr.bf16.mxu0 0
        %1354 = vmatpush1.bf16.msra.mxu0 0
        %1355 = vmatprep.subr.bf16.mxu0 0
        %1356 = vmatpush1.bf16.msra.mxu0 0
        %1357 = vmatprep.mubr.bf16.mxu0 0
        %1358 = vmatmul.mubr.bf16.gmra.mrb[0].mxu0 %v1302
        %v1359 = vpop.f32.mrb[0].mxu0
        %v1360 = vadd.f32 0.0, %v1359
        %v1361 = vpop.f32.mrb[0].mxu0
        %v1362 = vpop.f32.mrb[0].mxu0
        %v1363 = vadd.f32 0.0, %v1362
        %v1364 = vpop.f32.mrb[0].mxu0
        %1365 = vmatprep.mubr.bf16.mxu0 0
        %1366 = vmatmul.mubr.bf16.gmra.mrb[0].mxu0 %v1305
        %v1367 = vpop.f32.mrb[0].mxu0
        %v1368 = vadd.f32 0.0, %v1367
        %v1369 = vpop.f32.mrb[0].mxu0
        %v1370 = vpop.f32.mrb[0].mxu0
        %v1371 = vadd.f32 0.0, %v1370
        %v1372 = vpop.f32.mrb[0].mxu0
        %1373 = vmatprep.mubr.bf16.mxu0 0
        %1374 = vmatmul.mubr.bf16.gmra.mrb[0].mxu0 %v1308
        %v1375 = vpop.f32.mrb[0].mxu0
        %v1376 = vadd.f32 0.0, %v1375
        %v1377 = vpop.f32.mrb[0].mxu0
        %v1378 = vpop.f32.mrb[0].mxu0
        %v1379 = vadd.f32 0.0, %v1378
        %v1380 = vpop.f32.mrb[0].mxu0
        %1381 = vmatprep.mubr.bf16.mxu0 0
        %1382 = vmatmul.mubr.bf16.gmra.mrb[0].mxu0 %v1311
        %v1383 = vpop.f32.mrb[0].mxu0
        %v1384 = vadd.f32 0.0, %v1383
        %v1385 = vpop.f32.mrb[0].mxu0
        %v1386 = vpop.f32.mrb[0].mxu0
        %v1387 = vadd.f32 0.0, %v1386
        %v1388 = vpop.f32.mrb[0].mxu0
        %1389 = vmatprep.mubr.bf16.mxu0 0
        %1390 = vmatmul.mubr.bf16.gmra.mrb[0].mxu0 %v1314
        %v1391 = vpop.f32.mrb[0].mxu0
        %v1392 = vadd.f32 0.0, %v1391
        %v1393 = vpop.f32.mrb[0].mxu0
        %v1394 = vpop.f32.mrb[0].mxu0
        %v1395 = vadd.f32 0.0, %v1394
        %v1396 = vpop.f32.mrb[0].mxu0
        %1397 = vmatprep.mubr.bf16.mxu0 0
        %1398 = vmatmul.mubr.bf16.gmra.mrb[0].mxu0 %v1317
        %v1399 = vpop.f32.mrb[0].mxu0
        %v1400 = vadd.f32 0.0, %v1399
        %v1401 = vpop.f32.mrb[0].mxu0
        %v1402 = vpop.f32.mrb[0].mxu0
        %v1403 = vadd.f32 0.0, %v1402
        %v1404 = vpop.f32.mrb[0].mxu0
        %1405 = vmatprep.mubr.bf16.mxu0 0
        %1406 = vmatmul.mubr.bf16.gmra.mrb[0].mxu0 %v1320
        %v1407 = vpop.f32.mrb[0].mxu0
        %v1408 = vadd.f32 0.0, %v1407
        %v1409 = vpop.f32.mrb[0].mxu0
        %v1410 = vpop.f32.mrb[0].mxu0
        %v1411 = vadd.f32 0.0, %v1410
        %v1412 = vpop.f32.mrb[0].mxu0
        %1413 = vdwg.mxu0
        %v1414 = vadd.f32 %v1252, %v1360
        %v1415 = vadd.f32 %v1253, %v1363
        %v1416 = vadd.f32 %v1254, %v1368
        %v1417 = vadd.f32 %v1255, %v1371
        %v1418 = vadd.f32 %v1256, %v1376
        %v1419 = vadd.f32 %v1257, %v1379
        %v1420 = vadd.f32 %v1258, %v1384
        %v1421 = vadd.f32 %v1259, %v1387
        %v1422 = vadd.f32 %v1260, %v1392
        %v1423 = vadd.f32 %v1261, %v1395
        %v1424 = vadd.f32 %v1262, %v1400
        %v1425 = vadd.f32 %v1263, %v1403
        %v1426 = vadd.f32 %v1264, %v1408
        %v1427 = vadd.f32 %v1265, %v1411
        %1428 = vst [vmem:[#allocation2] sm:$0xff] %v1414
        %1429 = vst [vmem:[#allocation2 + $0x8] sm:$0xff] %v1415
        %1430 = vst [vmem:[#allocation2 + $0x10] sm:$0xff] %v1416
        %1431 = vst [vmem:[#allocation2 + $0x18] sm:$0xff] %v1417
        %1432 = vst [vmem:[#allocation2 + $0x20] sm:$0xff] %v1418
        %1433 = vst [vmem:[#allocation2 + $0x28] sm:$0xff] %v1419
        %1434 = vst [vmem:[#allocation2 + $0x30] sm:$0xff] %v1420
        %1435 = vst [vmem:[#allocation2 + $0x38] sm:$0xff] %v1421
        %1436 = vst [vmem:[#allocation2 + $0x40] sm:$0xff] %v1422
        %1437 = vst [vmem:[#allocation2 + $0x48] sm:$0xff] %v1423
        %1438 = vst [vmem:[#allocation2 + $0x50] sm:$0xff] %v1424
        %1439 = vst [vmem:[#allocation2 + $0x58] sm:$0xff] %v1425
        %1440 = vst [vmem:[#allocation2 + $0x60] sm:$0xff] %v1426
        %1441 = vst [vmem:[#allocation2 + $0x68] sm:$0xff] %v1427
        %v1442 = vld [vmem:[%s260] sm:$0xf]
        %v1443 = vld [vmem:[%s260 + $0x4] sm:$0xf]
        %v1444 = vld [vmem:[#allocation2 + $0x70] sm:$0xff]
        %v1445 = vld [vmem:[#allocation2 + $0x78] sm:$0xff]
        %v1448 = vunpack.c.l.b16 %v1442
        %v1449 = vunpack.c.l.b16 %v1443
        %v1450 = vpack.c.b16 %v1449, %v1448
        %v1452 = vsel %vm355, %v1450, 0
        %1454 = vmatprep.subr.bf16.mxu0 0
        %1455 = vmatpush1.bf16.msra.mxu0 %v1323
        %1456 = vmatprep.subr.bf16.mxu0 0
        %1457 = vmatpush1.bf16.msra.mxu0 0
        %1458 = vmatprep.subr.bf16.mxu0 0
        %1459 = vmatpush1.bf16.msra.mxu0 0
        %1460 = vmatprep.subr.bf16.mxu0 0
        %1461 = vmatpush1.bf16.msra.mxu0 0
        %1462 = vmatprep.subr.bf16.mxu0 0
        %1463 = vmatpush1.bf16.msra.mxu0 0
        %1464 = vmatprep.subr.bf16.mxu0 0
        %1465 = vmatpush1.bf16.msra.mxu0 0
        %1466 = vmatprep.subr.bf16.mxu0 0
        %1467 = vmatpush1.bf16.msra.mxu0 0
        %1468 = vmatprep.subr.bf16.mxu0 0
        %1469 = vmatpush1.bf16.msra.mxu0 0
        %1470 = vmatprep.subr.bf16.mxu0 0
        %1471 = vmatpush1.bf16.msra.mxu0 0
        %1472 = vmatprep.subr.bf16.mxu0 0
        %1473 = vmatpush1.bf16.msra.mxu0 0
        %1474 = vmatprep.subr.bf16.mxu0 0
        %1475 = vmatpush1.bf16.msra.mxu0 0
        %1476 = vmatprep.subr.bf16.mxu0 0
        %1477 = vmatpush1.bf16.msra.mxu0 0
        %1478 = vmatprep.subr.bf16.mxu0 0
        %1479 = vmatpush1.bf16.msra.mxu0 0
        %1480 = vmatprep.subr.bf16.mxu0 0
        %1481 = vmatpush1.bf16.msra.mxu0 0
        %1482 = vmatprep.subr.bf16.mxu0 0
        %1483 = vmatpush1.bf16.msra.mxu0 0
        %1484 = vmatprep.subr.bf16.mxu0 0
        %1485 = vmatpush1.bf16.msra.mxu0 0
        %1486 = vmatprep.mubr.bf16.mxu0 0
        %1487 = vmatmul.mubr.bf16.gmra.mrb[0].mxu0 %v1452
        %v1488 = vpop.f32.mrb[0].mxu0
        %v1489 = vadd.f32 0.0, %v1488
        %v1490 = vpop.f32.mrb[0].mxu0
        %v1491 = vpop.f32.mrb[0].mxu0
        %v1492 = vadd.f32 0.0, %v1491
        %v1493 = vpop.f32.mrb[0].mxu0
        %1494 = vdwg.mxu0
        %v1495 = vadd.f32 %v1444, %v1489
        %v1496 = vadd.f32 %v1445, %v1492
        %1497 = vst [vmem:[#allocation2 + $0x70] sm:$0xff] %v1495
        %1498 = vst [vmem:[#allocation2 + $0x78] sm:$0xff] %v1496
        %s1499 = scalar_lea.vmem %s2, 8
        %v1500 = vld [vmem:[%s1499] sm:$0x3]
        %v1501 = vld [vmem:[%s1237] sm:$0xf]
        %v1502 = vld [vmem:[%s1237 + $0x4] sm:$0xf]
        %v1503 = vld [vmem:[%s1237 + $0x8] sm:$0x1]
        %v1504 = vld [vmem:[%s1237 + $0xc] sm:$0xf]
        %v1505 = vld [vmem:[%s1237 + $0x10] sm:$0xf]
        %v1506 = vld [vmem:[%s1237 + $0x14] sm:$0x1]
        %v1507 = vld [vmem:[%s1237 + $0x18] sm:$0xf]
        %v1508 = vld [vmem:[%s1237 + $0x1c] sm:$0xf]
        %v1509 = vld [vmem:[%s1237 + $0x20] sm:$0x1]
        %v1510 = vld [vmem:[%s1237 + $0x24] sm:$0xf]
        %v1511 = vld [vmem:[%s1237 + $0x28] sm:$0xf]
        %v1512 = vld [vmem:[%s1237 + $0x2c] sm:$0x1]
        %v1513 = vld [vmem:[%s1237 + $0x30] sm:$0xf]
        %v1514 = vld [vmem:[%s1237 + $0x34] sm:$0xf]
        %v1515 = vld [vmem:[%s1237 + $0x38] sm:$0x1]
        %v1516 = vld [vmem:[%s1237 + $0x3c] sm:$0xf]
        %v1517 = vld [vmem:[%s1237 + $0x40] sm:$0xf]
        %v1518 = vld [vmem:[%s1237 + $0x44] sm:$0x1]
        %v1519 = vld [vmem:[%s1237 + $0x48] sm:$0xf]
        %v1520 = vld [vmem:[%s1237 + $0x4c] sm:$0xf]
        %v1521 = vld [vmem:[%s1237 + $0x50] sm:$0x1]
        %v1523 = vshrl.u32 %v1501, 16
        %v1525 = vrot.slane %v1523, 4
        %v1526 = vshll.u32 %v1501, 16
        %v1528 = vrot.slane %v1526, 5
        %v1529 = vor.u32 %v1525, %v1528
        %v1530 = vrot.slane %v1529, 4
        %v1532 = vshll.u32 %v1502, 16
        %v1534 = vrot.slane %v1532, 5
        %v1535 = vsel %vm541, %v1530, %v1534
        %v1536 = vshrl.u32 %v1502, 16
        %v1538 = vrot.slane %v1536, 4
        %v1539 = vor.u32 %v1538, %v1534
        %v1540 = vrot.slane %v1539, 4
        %v1542 = vshll.u32 %v1503, 16
        %v1544 = vrot.slane %v1542, 5
        %v1545 = vsel %vm541, %v1540, %v1544
        %v1547 = vshrl.u32 %v1504, 16
        %v1549 = vrot.slane %v1547, 4
        %v1550 = vshll.u32 %v1504, 16
        %v1552 = vrot.slane %v1550, 5
        %v1553 = vor.u32 %v1549, %v1552
        %v1554 = vrot.slane %v1553, 4
        %v1556 = vshll.u32 %v1505, 16
        %v1558 = vrot.slane %v1556, 5
        %v1559 = vsel %vm541, %v1554, %v1558
        %v1560 = vshrl.u32 %v1505, 16
        %v1562 = vrot.slane %v1560, 4
        %v1563 = vor.u32 %v1562, %v1558
        %v1564 = vrot.slane %v1563, 4
        %v1566 = vshll.u32 %v1506, 16
        %v1568 = vrot.slane %v1566, 5
        %v1569 = vsel %vm541, %v1564, %v1568
        %v1571 = vshrl.u32 %v1507, 16
        %v1573 = vrot.slane %v1571, 4
        %v1574 = vshll.u32 %v1507, 16
        %v1576 = vrot.slane %v1574, 5
        %v1577 = vor.u32 %v1573, %v1576
        %v1578 = vrot.slane %v1577, 4
        %v1580 = vshll.u32 %v1508, 16
        %v1582 = vrot.slane %v1580, 5
        %v1583 = vsel %vm541, %v1578, %v1582
        %v1584 = vshrl.u32 %v1508, 16
        %v1586 = vrot.slane %v1584, 4
        %v1587 = vor.u32 %v1586, %v1582
        %v1588 = vrot.slane %v1587, 4
        %v1590 = vshll.u32 %v1509, 16
        %v1592 = vrot.slane %v1590, 5
        %v1593 = vsel %vm541, %v1588, %v1592
        %v1595 = vshrl.u32 %v1510, 16
        %v1597 = vrot.slane %v1595, 4
        %v1598 = vshll.u32 %v1510, 16
        %v1600 = vrot.slane %v1598, 5
        %v1601 = vor.u32 %v1597, %v1600
        %v1602 = vrot.slane %v1601, 4
        %v1604 = vshll.u32 %v1511, 16
        %v1606 = vrot.slane %v1604, 5
        %v1607 = vsel %vm541, %v1602, %v1606
        %v1608 = vshrl.u32 %v1511, 16
        %v1610 = vrot.slane %v1608, 4
        %v1611 = vor.u32 %v1610, %v1606
        %v1612 = vrot.slane %v1611, 4
        %v1614 = vshll.u32 %v1512, 16
        %v1616 = vrot.slane %v1614, 5
        %v1617 = vsel %vm541, %v1612, %v1616
        %v1619 = vshrl.u32 %v1513, 16
        %v1621 = vrot.slane %v1619, 4
        %v1622 = vshll.u32 %v1513, 16
        %v1624 = vrot.slane %v1622, 5
        %v1625 = vor.u32 %v1621, %v1624
        %v1626 = vrot.slane %v1625, 4
        %v1628 = vshll.u32 %v1514, 16
        %v1630 = vrot.slane %v1628, 5
        %v1631 = vsel %vm541, %v1626, %v1630
        %v1632 = vshrl.u32 %v1514, 16
        %v1634 = vrot.slane %v1632, 4
        %v1635 = vor.u32 %v1634, %v1630
        %v1636 = vrot.slane %v1635, 4
        %v1638 = vshll.u32 %v1515, 16
        %v1640 = vrot.slane %v1638, 5
        %v1641 = vsel %vm541, %v1636, %v1640
        %v1643 = vshrl.u32 %v1516, 16
        %v1645 = vrot.slane %v1643, 4
        %v1646 = vshll.u32 %v1516, 16
        %v1648 = vrot.slane %v1646, 5
        %v1649 = vor.u32 %v1645, %v1648
        %v1650 = vrot.slane %v1649, 4
        %v1652 = vshll.u32 %v1517, 16
        %v1654 = vrot.slane %v1652, 5
        %v1655 = vsel %vm541, %v1650, %v1654
        %v1656 = vshrl.u32 %v1517, 16
        %v1658 = vrot.slane %v1656, 4
        %v1659 = vor.u32 %v1658, %v1654
        %v1660 = vrot.slane %v1659, 4
        %v1662 = vshll.u32 %v1518, 16
        %v1664 = vrot.slane %v1662, 5
        %v1665 = vsel %vm541, %v1660, %v1664
        %v1667 = vshrl.u32 %v1519, 16
        %v1669 = vrot.slane %v1667, 4
        %v1670 = vshll.u32 %v1519, 16
        %v1672 = vrot.slane %v1670, 5
        %v1673 = vor.u32 %v1669, %v1672
        %v1674 = vrot.slane %v1673, 4
        %v1676 = vshll.u32 %v1520, 16
        %v1678 = vrot.slane %v1676, 5
        %v1679 = vsel %vm541, %v1674, %v1678
        %v1680 = vshrl.u32 %v1520, 16
        %v1682 = vrot.slane %v1680, 4
        %v1683 = vor.u32 %v1682, %v1678
        %v1684 = vrot.slane %v1683, 4
        %v1686 = vshll.u32 %v1521, 16
        %v1688 = vrot.slane %v1686, 5
        %v1689 = vsel %vm541, %v1684, %v1688
        %v1690 = vld [vmem:[#allocation2] sm:$0xff]
        %v1691 = vld [vmem:[#allocation2 + $0x8] sm:$0xff]
        %v1692 = vld [vmem:[#allocation2 + $0x10] sm:$0xff]
        %v1693 = vld [vmem:[#allocation2 + $0x18] sm:$0xff]
        %v1694 = vld [vmem:[#allocation2 + $0x20] sm:$0xff]
        %v1695 = vld [vmem:[#allocation2 + $0x28] sm:$0xff]
        %v1696 = vld [vmem:[#allocation2 + $0x30] sm:$0xff]
        %v1697 = vld [vmem:[#allocation2 + $0x38] sm:$0xff]
        %v1698 = vld [vmem:[#allocation2 + $0x40] sm:$0xff]
        %v1699 = vld [vmem:[#allocation2 + $0x48] sm:$0xff]
        %v1700 = vld [vmem:[#allocation2 + $0x50] sm:$0xff]
        %v1701 = vld [vmem:[#allocation2 + $0x58] sm:$0xff]
        %v1702 = vld [vmem:[#allocation2 + $0x60] sm:$0xff]
        %v1703 = vld [vmem:[#allocation2 + $0x68] sm:$0xff]
        %v1704 = vunpack.c.l.b16 %v1535
        %v1705 = vunpack.c.l.b16 %v1545
        %v1706 = vunpack.c.l.b16 %v1559
        %v1707 = vunpack.c.l.b16 %v1569
        %v1708 = vunpack.c.l.b16 %v1583
        %v1709 = vunpack.c.l.b16 %v1593
        %v1710 = vunpack.c.l.b16 %v1607
        %v1711 = vunpack.c.l.b16 %v1617
        %v1712 = vunpack.c.l.b16 %v1631
        %v1713 = vunpack.c.l.b16 %v1641
        %v1714 = vunpack.c.l.b16 %v1655
        %v1715 = vunpack.c.l.b16 %v1665
        %v1716 = vunpack.c.l.b16 %v1679
        %v1717 = vunpack.c.l.b16 %v1689
        %v1718 = vpack.c.b16 %v1705, %v1704
        %v1719 = vpack.c.b16 %v1707, %v1706
        %v1720 = vpack.c.b16 %v1709, %v1708
        %v1721 = vpack.c.b16 %v1711, %v1710
        %v1722 = vpack.c.b16 %v1713, %v1712
        %v1723 = vpack.c.b16 %v1715, %v1714
        %v1724 = vpack.c.b16 %v1717, %v1716
        %v1726 = vsel %vm355, %v1718, 0
        %v1729 = vsel %vm355, %v1719, 0
        %v1732 = vsel %vm355, %v1720, 0
        %v1735 = vsel %vm355, %v1721, 0
        %v1738 = vsel %vm355, %v1722, 0
        %v1741 = vsel %vm355, %v1723, 0
        %v1744 = vsel %vm355, %v1724, 0
        %v1747 = vsel %vm380, %v1500, 0
        %1749 = vmatprep.subr.bf16.mxu0 0
        %1750 = vmatpush1.bf16.msra.mxu0 %v1747
        %1751 = vmatprep.subr.bf16.mxu0 0
        %1752 = vmatpush1.bf16.msra.mxu0 0
        %1753 = vmatprep.subr.bf16.mxu0 0
        %1754 = vmatpush1.bf16.msra.mxu0 0
        %1755 = vmatprep.subr.bf16.mxu0 0
        %1756 = vmatpush1.bf16.msra.mxu0 0
        %1757 = vmatprep.subr.bf16.mxu0 0
        %1758 = vmatpush1.bf16.msra.mxu0 0
        %1759 = vmatprep.subr.bf16.mxu0 0
        %1760 = vmatpush1.bf16.msra.mxu0 0
        %1761 = vmatprep.subr.bf16.mxu0 0
        %1762 = vmatpush1.bf16.msra.mxu0 0
        %1763 = vmatprep.subr.bf16.mxu0 0
        %1764 = vmatpush1.bf16.msra.mxu0 0
        %1765 = vmatprep.subr.bf16.mxu0 0
        %1766 = vmatpush1.bf16.msra.mxu0 0
        %1767 = vmatprep.subr.bf16.mxu0 0
        %1768 = vmatpush1.bf16.msra.mxu0 0
        %1769 = vmatprep.subr.bf16.mxu0 0
        %1770 = vmatpush1.bf16.msra.mxu0 0
        %1771 = vmatprep.subr.bf16.mxu0 0
        %1772 = vmatpush1.bf16.msra.mxu0 0
        %1773 = vmatprep.subr.bf16.mxu0 0
        %1774 = vmatpush1.bf16.msra.mxu0 0
        %1775 = vmatprep.subr.bf16.mxu0 0
        %1776 = vmatpush1.bf16.msra.mxu0 0
        %1777 = vmatprep.subr.bf16.mxu0 0
        %1778 = vmatpush1.bf16.msra.mxu0 0
        %1779 = vmatprep.subr.bf16.mxu0 0
        %1780 = vmatpush1.bf16.msra.mxu0 0
        %1781 = vmatprep.mubr.bf16.mxu0 0
        %1782 = vmatmul.mubr.bf16.gmra.mrb[0].mxu0 %v1726
        %v1783 = vpop.f32.mrb[0].mxu0
        %v1784 = vadd.f32 0.0, %v1783
        %v1785 = vpop.f32.mrb[0].mxu0
        %v1786 = vpop.f32.mrb[0].mxu0
        %v1787 = vadd.f32 0.0, %v1786
        %v1788 = vpop.f32.mrb[0].mxu0
        %1789 = vmatprep.mubr.bf16.mxu0 0
        %1790 = vmatmul.mubr.bf16.gmra.mrb[0].mxu0 %v1729
        %v1791 = vpop.f32.mrb[0].mxu0
        %v1792 = vadd.f32 0.0, %v1791
        %v1793 = vpop.f32.mrb[0].mxu0
        %v1794 = vpop.f32.mrb[0].mxu0
        %v1795 = vadd.f32 0.0, %v1794
        %v1796 = vpop.f32.mrb[0].mxu0
        %1797 = vmatprep.mubr.bf16.mxu0 0
        %1798 = vmatmul.mubr.bf16.gmra.mrb[0].mxu0 %v1732
        %v1799 = vpop.f32.mrb[0].mxu0
        %v1800 = vadd.f32 0.0, %v1799
        %v1801 = vpop.f32.mrb[0].mxu0
        %v1802 = vpop.f32.mrb[0].mxu0
        %v1803 = vadd.f32 0.0, %v1802
        %v1804 = vpop.f32.mrb[0].mxu0
        %1805 = vmatprep.mubr.bf16.mxu0 0
        %1806 = vmatmul.mubr.bf16.gmra.mrb[0].mxu0 %v1735
        %v1807 = vpop.f32.mrb[0].mxu0
        %v1808 = vadd.f32 0.0, %v1807
        %v1809 = vpop.f32.mrb[0].mxu0
        %v1810 = vpop.f32.mrb[0].mxu0
        %v1811 = vadd.f32 0.0, %v1810
        %v1812 = vpop.f32.mrb[0].mxu0
        %1813 = vmatprep.mubr.bf16.mxu0 0
        %1814 = vmatmul.mubr.bf16.gmra.mrb[0].mxu0 %v1738
        %v1815 = vpop.f32.mrb[0].mxu0
        %v1816 = vadd.f32 0.0, %v1815
        %v1817 = vpop.f32.mrb[0].mxu0
        %v1818 = vpop.f32.mrb[0].mxu0
        %v1819 = vadd.f32 0.0, %v1818
        %v1820 = vpop.f32.mrb[0].mxu0
        %1821 = vmatprep.mubr.bf16.mxu0 0
        %1822 = vmatmul.mubr.bf16.gmra.mrb[0].mxu0 %v1741
        %v1823 = vpop.f32.mrb[0].mxu0
        %v1824 = vadd.f32 0.0, %v1823
        %v1825 = vpop.f32.mrb[0].mxu0
        %v1826 = vpop.f32.mrb[0].mxu0
        %v1827 = vadd.f32 0.0, %v1826
        %v1828 = vpop.f32.mrb[0].mxu0
        %1829 = vmatprep.mubr.bf16.mxu0 0
        %1830 = vmatmul.mubr.bf16.gmra.mrb[0].mxu0 %v1744
        %v1831 = vpop.f32.mrb[0].mxu0
        %v1832 = vadd.f32 0.0, %v1831
        %v1833 = vpop.f32.mrb[0].mxu0
        %v1834 = vpop.f32.mrb[0].mxu0
        %v1835 = vadd.f32 0.0, %v1834
        %v1836 = vpop.f32.mrb[0].mxu0
        %1837 = vdwg.mxu0
        %v1838 = vadd.f32 %v1690, %v1784
        %v1839 = vadd.f32 %v1691, %v1787
        %v1840 = vadd.f32 %v1692, %v1792
        %v1841 = vadd.f32 %v1693, %v1795
        %v1842 = vadd.f32 %v1694, %v1800
        %v1843 = vadd.f32 %v1695, %v1803
        %v1844 = vadd.f32 %v1696, %v1808
        %v1845 = vadd.f32 %v1697, %v1811
        %v1846 = vadd.f32 %v1698, %v1816
        %v1847 = vadd.f32 %v1699, %v1819
        %v1848 = vadd.f32 %v1700, %v1824
        %v1849 = vadd.f32 %v1701, %v1827
        %v1850 = vadd.f32 %v1702, %v1832
        %v1851 = vadd.f32 %v1703, %v1835
        %1852 = vst [vmem:[#allocation2] sm:$0xff] %v1838
        %1853 = vst [vmem:[#allocation2 + $0x8] sm:$0xff] %v1839
        %1854 = vst [vmem:[#allocation2 + $0x10] sm:$0xff] %v1840
        %1855 = vst [vmem:[#allocation2 + $0x18] sm:$0xff] %v1841
        %1856 = vst [vmem:[#allocation2 + $0x20] sm:$0xff] %v1842
        %1857 = vst [vmem:[#allocation2 + $0x28] sm:$0xff] %v1843
        %1858 = vst [vmem:[#allocation2 + $0x30] sm:$0xff] %v1844
        %1859 = vst [vmem:[#allocation2 + $0x38] sm:$0xff] %v1845
        %1860 = vst [vmem:[#allocation2 + $0x40] sm:$0xff] %v1846
        %1861 = vst [vmem:[#allocation2 + $0x48] sm:$0xff] %v1847
        %1862 = vst [vmem:[#allocation2 + $0x50] sm:$0xff] %v1848
        %1863 = vst [vmem:[#allocation2 + $0x58] sm:$0xff] %v1849
        %1864 = vst [vmem:[#allocation2 + $0x60] sm:$0xff] %v1850
        %1865 = vst [vmem:[#allocation2 + $0x68] sm:$0xff] %v1851
        %v1866 = vld [vmem:[%s260] sm:$0xf]
        %v1867 = vld [vmem:[%s260 + $0x4] sm:$0xf]
        %v1868 = vld [vmem:[%s260 + $0x8] sm:$0x1]
        %v1869 = vld [vmem:[#allocation2 + $0x70] sm:$0xff]
        %v1870 = vld [vmem:[#allocation2 + $0x78] sm:$0xff]
        %v1874 = vunpack.c.l.b16 %v1866
        %v1875 = vunpack.c.l.b16 %v1867
        %v1876 = vunpack.c.l.b16 %v1868
        %v1877 = vpack.c.b16 %v1875, %v1874
        %v1878 = vpack.c.b16 %v1876, %v1876
        %vm1879 = vsmask.f32 7424
        %v1881 = vshrl.u32 %v1877, 16
        %v1883 = vshll.u32 %v1877, 16
        %v1885 = vrot.slane %v1883, 1
        %v1886 = vor.u32 %v1881, %v1885
        %v1888 = vshll.u32 %v1878, 16
        %v1890 = vrot.slane %v1888, 1
        %v1891 = vsel %vm1879, %v1886, %v1890
        %v1893 = vsel %vm355, %v1891, 0
        %1895 = vmatprep.subr.bf16.mxu0 0
        %1896 = vmatpush1.bf16.msra.mxu0 %v1747
        %1897 = vmatprep.subr.bf16.mxu0 0
        %1898 = vmatpush1.bf16.msra.mxu0 0
        %1899 = vmatprep.subr.bf16.mxu0 0
        %1900 = vmatpush1.bf16.msra.mxu0 0
        %1901 = vmatprep.subr.bf16.mxu0 0
        %1902 = vmatpush1.bf16.msra.mxu0 0
        %1903 = vmatprep.subr.bf16.mxu0 0
        %1904 = vmatpush1.bf16.msra.mxu0 0
        %1905 = vmatprep.subr.bf16.mxu0 0
        %1906 = vmatpush1.bf16.msra.mxu0 0
        %1907 = vmatprep.subr.bf16.mxu0 0
        %1908 = vmatpush1.bf16.msra.mxu0 0
        %1909 = vmatprep.subr.bf16.mxu0 0
        %1910 = vmatpush1.bf16.msra.mxu0 0
        %1911 = vmatprep.subr.bf16.mxu0 0
        %1912 = vmatpush1.bf16.msra.mxu0 0
        %1913 = vmatprep.subr.bf16.mxu0 0
        %1914 = vmatpush1.bf16.msra.mxu0 0
        %1915 = vmatprep.subr.bf16.mxu0 0
        %1916 = vmatpush1.bf16.msra.mxu0 0
        %1917 = vmatprep.subr.bf16.mxu0 0
        %1918 = vmatpush1.bf16.msra.mxu0 0
        %1919 = vmatprep.subr.bf16.mxu0 0
        %1920 = vmatpush1.bf16.msra.mxu0 0
        %1921 = vmatprep.subr.bf16.mxu0 0
        %1922 = vmatpush1.bf16.msra.mxu0 0
        %1923 = vmatprep.subr.bf16.mxu0 0
        %1924 = vmatpush1.bf16.msra.mxu0 0
        %1925 = vmatprep.subr.bf16.mxu0 0
        %1926 = vmatpush1.bf16.msra.mxu0 0
        %1927 = vmatprep.mubr.bf16.mxu0 0
        %1928 = vmatmul.mubr.bf16.gmra.mrb[0].mxu0 %v1893
        %v1929 = vpop.f32.mrb[0].mxu0
        %v1930 = vadd.f32 0.0, %v1929
        %v1931 = vpop.f32.mrb[0].mxu0
        %v1932 = vpop.f32.mrb[0].mxu0
        %v1933 = vadd.f32 0.0, %v1932
        %v1934 = vpop.f32.mrb[0].mxu0
        %1935 = vdwg.mxu0
        %v1936 = vadd.f32 %v1869, %v1930
        %v1937 = vadd.f32 %v1870, %v1933
        %1938 = vst [vmem:[#allocation2 + $0x70] sm:$0xff] %v1936
        %1939 = vst [vmem:[#allocation2 + $0x78] sm:$0xff] %v1937
        %s1940 = scalar_lea.vmem %s2, 10
        %v1941 = vld [vmem:[%s1940] sm:$0x3]
        %v1942 = vld [vmem:[%s1237] sm:$0xe]
        %v1943 = vld [vmem:[%s1237 + $0x4] sm:$0xf]
        %v1944 = vld [vmem:[%s1237 + $0x8] sm:$0x1]
        %v1945 = vld [vmem:[%s1237 + $0xc] sm:$0xe]
        %v1946 = vld [vmem:[%s1237 + $0x10] sm:$0xf]
        %v1947 = vld [vmem:[%s1237 + $0x14] sm:$0x1]
        %v1948 = vld [vmem:[%s1237 + $0x18] sm:$0xe]
        %v1949 = vld [vmem:[%s1237 + $0x1c] sm:$0xf]
        %v1950 = vld [vmem:[%s1237 + $0x20] sm:$0x1]
        %v1951 = vld [vmem:[%s1237 + $0x24] sm:$0xe]
        %v1952 = vld [vmem:[%s1237 + $0x28] sm:$0xf]
        %v1953 = vld [vmem:[%s1237 + $0x2c] sm:$0x1]
        %v1954 = vld [vmem:[%s1237 + $0x30] sm:$0xe]
        %v1955 = vld [vmem:[%s1237 + $0x34] sm:$0xf]
        %v1956 = vld [vmem:[%s1237 + $0x38] sm:$0x1]
        %v1957 = vld [vmem:[%s1237 + $0x3c] sm:$0xe]
        %v1958 = vld [vmem:[%s1237 + $0x40] sm:$0xf]
        %v1959 = vld [vmem:[%s1237 + $0x44] sm:$0x1]
        %v1960 = vld [vmem:[%s1237 + $0x48] sm:$0xe]
        %v1961 = vld [vmem:[%s1237 + $0x4c] sm:$0xf]
        %v1962 = vld [vmem:[%s1237 + $0x50] sm:$0x1]
        %v1984 = vrot.slane %v1942, 5
        %v1985 = vrot.slane %v1984, 4
        %v1986 = vrot.slane %v1943, 5
        %v1987 = vsel %vm982, %v1985, %v1986
        %v1988 = vrot.slane %v1986, 4
        %v1989 = vrot.slane %v1944, 5
        %v1990 = vsel %vm982, %v1988, %v1989
        %v1991 = vrot.slane %v1945, 5
        %v1992 = vrot.slane %v1991, 4
        %v1993 = vrot.slane %v1946, 5
        %v1994 = vsel %vm982, %v1992, %v1993
        %v1995 = vrot.slane %v1993, 4
        %v1996 = vrot.slane %v1947, 5
        %v1997 = vsel %vm982, %v1995, %v1996
        %v1998 = vrot.slane %v1948, 5
        %v1999 = vrot.slane %v1998, 4
        %v2000 = vrot.slane %v1949, 5
        %v2001 = vsel %vm982, %v1999, %v2000
        %v2002 = vrot.slane %v2000, 4
        %v2003 = vrot.slane %v1950, 5
        %v2004 = vsel %vm982, %v2002, %v2003
        %v2005 = vrot.slane %v1951, 5
        %v2006 = vrot.slane %v2005, 4
        %v2007 = vrot.slane %v1952, 5
        %v2008 = vsel %vm982, %v2006, %v2007
        %v2009 = vrot.slane %v2007, 4
        %v2010 = vrot.slane %v1953, 5
        %v2011 = vsel %vm982, %v2009, %v2010
        %v2012 = vrot.slane %v1954, 5
        %v2013 = vrot.slane %v2012, 4
        %v2014 = vrot.slane %v1955, 5
        %v2015 = vsel %vm982, %v2013, %v2014
        %v2016 = vrot.slane %v2014, 4
        %v2017 = vrot.slane %v1956, 5
        %v2018 = vsel %vm982, %v2016, %v2017
        %v2019 = vrot.slane %v1957, 5
        %v2020 = vrot.slane %v2019, 4
        %v2021 = vrot.slane %v1958, 5
        %v2022 = vsel %vm982, %v2020, %v2021
        %v2023 = vrot.slane %v2021, 4
        %v2024 = vrot.slane %v1959, 5
        %v2025 = vsel %vm982, %v2023, %v2024
        %v2026 = vrot.slane %v1960, 5
        %v2027 = vrot.slane %v2026, 4
        %v2028 = vrot.slane %v1961, 5
        %v2029 = vsel %vm982, %v2027, %v2028
        %v2030 = vrot.slane %v2028, 4
        %v2031 = vrot.slane %v1962, 5
        %v2032 = vsel %vm982, %v2030, %v2031
        %v2033 = vld [vmem:[#allocation2] sm:$0xff]
        %v2034 = vld [vmem:[#allocation2 + $0x8] sm:$0xff]
        %v2035 = vld [vmem:[#allocation2 + $0x10] sm:$0xff]
        %v2036 = vld [vmem:[#allocation2 + $0x18] sm:$0xff]
        %v2037 = vld [vmem:[#allocation2 + $0x20] sm:$0xff]
        %v2038 = vld [vmem:[#allocation2 + $0x28] sm:$0xff]
        %v2039 = vld [vmem:[#allocation2 + $0x30] sm:$0xff]
        %v2040 = vld [vmem:[#allocation2 + $0x38] sm:$0xff]
        %v2041 = vld [vmem:[#allocation2 + $0x40] sm:$0xff]
        %v2042 = vld [vmem:[#allocation2 + $0x48] sm:$0xff]
        %v2043 = vld [vmem:[#allocation2 + $0x50] sm:$0xff]
        %v2044 = vld [vmem:[#allocation2 + $0x58] sm:$0xff]
        %v2045 = vld [vmem:[#allocation2 + $0x60] sm:$0xff]
        %v2046 = vld [vmem:[#allocation2 + $0x68] sm:$0xff]
        %v2047 = vunpack.c.l.b16 %v1987
        %v2048 = vunpack.c.l.b16 %v1990
        %v2049 = vunpack.c.l.b16 %v1994
        %v2050 = vunpack.c.l.b16 %v1997
        %v2051 = vunpack.c.l.b16 %v2001
        %v2052 = vunpack.c.l.b16 %v2004
        %v2053 = vunpack.c.l.b16 %v2008
        %v2054 = vunpack.c.l.b16 %v2011
        %v2055 = vunpack.c.l.b16 %v2015
        %v2056 = vunpack.c.l.b16 %v2018
        %v2057 = vunpack.c.l.b16 %v2022
        %v2058 = vunpack.c.l.b16 %v2025
        %v2059 = vunpack.c.l.b16 %v2029
        %v2060 = vunpack.c.l.b16 %v2032
        %v2061 = vpack.c.b16 %v2048, %v2047
        %v2062 = vpack.c.b16 %v2050, %v2049
        %v2063 = vpack.c.b16 %v2052, %v2051
        %v2064 = vpack.c.b16 %v2054, %v2053
        %v2065 = vpack.c.b16 %v2056, %v2055
        %v2066 = vpack.c.b16 %v2058, %v2057
        %v2067 = vpack.c.b16 %v2060, %v2059
        %v2069 = vsel %vm355, %v2061, 0
        %v2072 = vsel %vm355, %v2062, 0
        %v2075 = vsel %vm355, %v2063, 0
        %v2078 = vsel %vm355, %v2064, 0
        %v2081 = vsel %vm355, %v2065, 0
        %v2084 = vsel %vm355, %v2066, 0
        %v2087 = vsel %vm355, %v2067, 0
        %v2090 = vsel %vm380, %v1941, 0
        %2092 = vmatprep.subr.bf16.mxu0 0
        %2093 = vmatpush1.bf16.msra.mxu0 %v2090
        %2094 = vmatprep.subr.bf16.mxu0 0
        %2095 = vmatpush1.bf16.msra.mxu0 0
        %2096 = vmatprep.subr.bf16.mxu0 0
        %2097 = vmatpush1.bf16.msra.mxu0 0
        %2098 = vmatprep.subr.bf16.mxu0 0
        %2099 = vmatpush1.bf16.msra.mxu0 0
        %2100 = vmatprep.subr.bf16.mxu0 0
        %2101 = vmatpush1.bf16.msra.mxu0 0
        %2102 = vmatprep.subr.bf16.mxu0 0
        %2103 = vmatpush1.bf16.msra.mxu0 0
        %2104 = vmatprep.subr.bf16.mxu0 0
        %2105 = vmatpush1.bf16.msra.mxu0 0
        %2106 = vmatprep.subr.bf16.mxu0 0
        %2107 = vmatpush1.bf16.msra.mxu0 0
        %2108 = vmatprep.subr.bf16.mxu0 0
        %2109 = vmatpush1.bf16.msra.mxu0 0
        %2110 = vmatprep.subr.bf16.mxu0 0
        %2111 = vmatpush1.bf16.msra.mxu0 0
        %2112 = vmatprep.subr.bf16.mxu0 0
        %2113 = vmatpush1.bf16.msra.mxu0 0
        %2114 = vmatprep.subr.bf16.mxu0 0
        %2115 = vmatpush1.bf16.msra.mxu0 0
        %2116 = vmatprep.subr.bf16.mxu0 0
        %2117 = vmatpush1.bf16.msra.mxu0 0
        %2118 = vmatprep.subr.bf16.mxu0 0
        %2119 = vmatpush1.bf16.msra.mxu0 0
        %2120 = vmatprep.subr.bf16.mxu0 0
        %2121 = vmatpush1.bf16.msra.mxu0 0
        %2122 = vmatprep.subr.bf16.mxu0 0
        %2123 = vmatpush1.bf16.msra.mxu0 0
        %2124 = vmatprep.mubr.bf16.mxu0 0
        %2125 = vmatmul.mubr.bf16.gmra.mrb[0].mxu0 %v2069
        %v2126 = vpop.f32.mrb[0].mxu0
        %v2127 = vadd.f32 0.0, %v2126
        %v2128 = vpop.f32.mrb[0].mxu0
        %v2129 = vpop.f32.mrb[0].mxu0
        %v2130 = vadd.f32 0.0, %v2129
        %v2131 = vpop.f32.mrb[0].mxu0
        %2132 = vmatprep.mubr.bf16.mxu0 0
        %2133 = vmatmul.mubr.bf16.gmra.mrb[0].mxu0 %v2072
        %v2134 = vpop.f32.mrb[0].mxu0
        %v2135 = vadd.f32 0.0, %v2134
        %v2136 = vpop.f32.mrb[0].mxu0
        %v2137 = vpop.f32.mrb[0].mxu0
        %v2138 = vadd.f32 0.0, %v2137
        %v2139 = vpop.f32.mrb[0].mxu0
        %2140 = vmatprep.mubr.bf16.mxu0 0
        %2141 = vmatmul.mubr.bf16.gmra.mrb[0].mxu0 %v2075
        %v2142 = vpop.f32.mrb[0].mxu0
        %v2143 = vadd.f32 0.0, %v2142
        %v2144 = vpop.f32.mrb[0].mxu0
        %v2145 = vpop.f32.mrb[0].mxu0
        %v2146 = vadd.f32 0.0, %v2145
        %v2147 = vpop.f32.mrb[0].mxu0
        %2148 = vmatprep.mubr.bf16.mxu0 0
        %2149 = vmatmul.mubr.bf16.gmra.mrb[0].mxu0 %v2078
        %v2150 = vpop.f32.mrb[0].mxu0
        %v2151 = vadd.f32 0.0, %v2150
        %v2152 = vpop.f32.mrb[0].mxu0
        %v2153 = vpop.f32.mrb[0].mxu0
        %v2154 = vadd.f32 0.0, %v2153
        %v2155 = vpop.f32.mrb[0].mxu0
        %2156 = vmatprep.mubr.bf16.mxu0 0
        %2157 = vmatmul.mubr.bf16.gmra.mrb[0].mxu0 %v2081
        %v2158 = vpop.f32.mrb[0].mxu0
        %v2159 = vadd.f32 0.0, %v2158
        %v2160 = vpop.f32.mrb[0].mxu0
        %v2161 = vpop.f32.mrb[0].mxu0
        %v2162 = vadd.f32 0.0, %v2161
        %v2163 = vpop.f32.mrb[0].mxu0
        %2164 = vmatprep.mubr.bf16.mxu0 0
        %2165 = vmatmul.mubr.bf16.gmra.mrb[0].mxu0 %v2084
        %v2166 = vpop.f32.mrb[0].mxu0
        %v2167 = vadd.f32 0.0, %v2166
        %v2168 = vpop.f32.mrb[0].mxu0
        %v2169 = vpop.f32.mrb[0].mxu0
        %v2170 = vadd.f32 0.0, %v2169
        %v2171 = vpop.f32.mrb[0].mxu0
        %2172 = vmatprep.mubr.bf16.mxu0 0
        %2173 = vmatmul.mubr.bf16.gmra.mrb[0].mxu0 %v2087
        %v2174 = vpop.f32.mrb[0].mxu0
        %v2175 = vadd.f32 0.0, %v2174
        %v2176 = vpop.f32.mrb[0].mxu0
        %v2177 = vpop.f32.mrb[0].mxu0
        %v2178 = vadd.f32 0.0, %v2177
        %v2179 = vpop.f32.mrb[0].mxu0
        %2180 = vdwg.mxu0
        %v2181 = vadd.f32 %v2033, %v2127
        %v2182 = vadd.f32 %v2034, %v2130
        %v2183 = vadd.f32 %v2035, %v2135
        %v2184 = vadd.f32 %v2036, %v2138
        %v2185 = vadd.f32 %v2037, %v2143
        %v2186 = vadd.f32 %v2038, %v2146
        %v2187 = vadd.f32 %v2039, %v2151
        %v2188 = vadd.f32 %v2040, %v2154
        %v2189 = vadd.f32 %v2041, %v2159
        %v2190 = vadd.f32 %v2042, %v2162
        %v2191 = vadd.f32 %v2043, %v2167
        %v2192 = vadd.f32 %v2044, %v2170
        %v2193 = vadd.f32 %v2045, %v2175
        %v2194 = vadd.f32 %v2046, %v2178
        %2195 = vst [vmem:[#allocation2] sm:$0xff] %v2181
        %2196 = vst [vmem:[#allocation2 + $0x8] sm:$0xff] %v2182
        %2197 = vst [vmem:[#allocation2 + $0x10] sm:$0xff] %v2183
        %2198 = vst [vmem:[#allocation2 + $0x18] sm:$0xff] %v2184
        %2199 = vst [vmem:[#allocation2 + $0x20] sm:$0xff] %v2185
        %2200 = vst [vmem:[#allocation2 + $0x28] sm:$0xff] %v2186
        %2201 = vst [vmem:[#allocation2 + $0x30] sm:$0xff] %v2187
        %2202 = vst [vmem:[#allocation2 + $0x38] sm:$0xff] %v2188
        %2203 = vst [vmem:[#allocation2 + $0x40] sm:$0xff] %v2189
        %2204 = vst [vmem:[#allocation2 + $0x48] sm:$0xff] %v2190
        %2205 = vst [vmem:[#allocation2 + $0x50] sm:$0xff] %v2191
        %2206 = vst [vmem:[#allocation2 + $0x58] sm:$0xff] %v2192
        %2207 = vst [vmem:[#allocation2 + $0x60] sm:$0xff] %v2193
        %2208 = vst [vmem:[#allocation2 + $0x68] sm:$0xff] %v2194
        %v2209 = vld [vmem:[%s260] sm:$0xe]
        %v2210 = vld [vmem:[%s260 + $0x4] sm:$0xf]
        %v2211 = vld [vmem:[%s260 + $0x8] sm:$0x1]
        %v2212 = vld [vmem:[#allocation2 + $0x70] sm:$0xff]
        %v2213 = vld [vmem:[#allocation2 + $0x78] sm:$0xff]
        %v2217 = vunpack.c.l.b16 %v2209
        %v2218 = vunpack.c.l.b16 %v2210
        %v2219 = vunpack.c.l.b16 %v2211
        %v2220 = vpack.c.b16 %v2218, %v2217
        %v2221 = vpack.c.b16 %v2219, %v2219
        %vm2222 = vcmask 1046528
        %v2223 = vrot.slane %v2220, 1
        %v2224 = vrot.slane %v2221, 1
        %v2225 = vsel %vm2222, %v2223, %v2224
        %v2227 = vsel %vm355, %v2225, 0
        %2229 = vmatprep.subr.bf16.mxu0 0
        %2230 = vmatpush1.bf16.msra.mxu0 %v2090
        %2231 = vmatprep.subr.bf16.mxu0 0
        %2232 = vmatpush1.bf16.msra.mxu0 0
        %2233 = vmatprep.subr.bf16.mxu0 0
        %2234 = vmatpush1.bf16.msra.mxu0 0
        %2235 = vmatprep.subr.bf16.mxu0 0
        %2236 = vmatpush1.bf16.msra.mxu0 0
        %2237 = vmatprep.subr.bf16.mxu0 0
        %2238 = vmatpush1.bf16.msra.mxu0 0
        %2239 = vmatprep.subr.bf16.mxu0 0
        %2240 = vmatpush1.bf16.msra.mxu0 0
        %2241 = vmatprep.subr.bf16.mxu0 0
        %2242 = vmatpush1.bf16.msra.mxu0 0
        %2243 = vmatprep.subr.bf16.mxu0 0
        %2244 = vmatpush1.bf16.msra.mxu0 0
        %2245 = vmatprep.subr.bf16.mxu0 0
        %2246 = vmatpush1.bf16.msra.mxu0 0
        %2247 = vmatprep.subr.bf16.mxu0 0
        %2248 = vmatpush1.bf16.msra.mxu0 0
        %2249 = vmatprep.subr.bf16.mxu0 0
        %2250 = vmatpush1.bf16.msra.mxu0 0
        %2251 = vmatprep.subr.bf16.mxu0 0
        %2252 = vmatpush1.bf16.msra.mxu0 0
        %2253 = vmatprep.subr.bf16.mxu0 0
        %2254 = vmatpush1.bf16.msra.mxu0 0
        %2255 = vmatprep.subr.bf16.mxu0 0
        %2256 = vmatpush1.bf16.msra.mxu0 0
        %2257 = vmatprep.subr.bf16.mxu0 0
        %2258 = vmatpush1.bf16.msra.mxu0 0
        %2259 = vmatprep.subr.bf16.mxu0 0
        %2260 = vmatpush1.bf16.msra.mxu0 0
        %2261 = vmatprep.mubr.bf16.mxu0 0
        %2262 = vmatmul.mubr.bf16.gmra.mrb[0].mxu0 %v2227
        %v2263 = vpop.f32.mrb[0].mxu0
        %v2264 = vadd.f32 0.0, %v2263
        %v2265 = vpop.f32.mrb[0].mxu0
        %v2266 = vpop.f32.mrb[0].mxu0
        %v2267 = vadd.f32 0.0, %v2266
        %v2268 = vpop.f32.mrb[0].mxu0
        %2269 = vdwg.mxu0
        %v2270 = vadd.f32 %v2212, %v2264
        %v2271 = vadd.f32 %v2213, %v2267
        %2272 = vst [vmem:[#allocation2 + $0x70] sm:$0xff] %v2270
        %2273 = vst [vmem:[#allocation2 + $0x78] sm:$0xff] %v2271
        %s2274 = scalar_lea.vmem %s2, 12
        %v2275 = vld [vmem:[%s2274] sm:$0x3]
        %s2276 = scalar_lea.vmem %s247, 24
        %v2277 = vld [vmem:[%s2276] sm:$0xf]
        %v2278 = vld [vmem:[%s2276 + $0x4] sm:$0xf]
        %v2279 = vld [vmem:[%s2276 + $0xc] sm:$0xf]
        %v2280 = vld [vmem:[%s2276 + $0x10] sm:$0xf]
        %v2281 = vld [vmem:[%s2276 + $0x18] sm:$0xf]
        %v2282 = vld [vmem:[%s2276 + $0x1c] sm:$0xf]
        %v2283 = vld [vmem:[%s2276 + $0x24] sm:$0xf]
        %v2284 = vld [vmem:[%s2276 + $0x28] sm:$0xf]
        %v2285 = vld [vmem:[%s2276 + $0x30] sm:$0xf]
        %v2286 = vld [vmem:[%s2276 + $0x34] sm:$0xf]
        %v2287 = vld [vmem:[%s2276 + $0x3c] sm:$0xf]
        %v2288 = vld [vmem:[%s2276 + $0x40] sm:$0xf]
        %v2289 = vld [vmem:[#allocation2] sm:$0xff]
        %v2290 = vld [vmem:[#allocation2 + $0x8] sm:$0xff]
        %v2291 = vld [vmem:[#allocation2 + $0x10] sm:$0xff]
        %v2292 = vld [vmem:[#allocation2 + $0x18] sm:$0xff]
        %v2293 = vld [vmem:[#allocation2 + $0x20] sm:$0xff]
        %v2294 = vld [vmem:[#allocation2 + $0x28] sm:$0xff]
        %v2295 = vld [vmem:[#allocation2 + $0x30] sm:$0xff]
        %v2296 = vld [vmem:[#allocation2 + $0x38] sm:$0xff]
        %v2297 = vld [vmem:[#allocation2 + $0x40] sm:$0xff]
        %v2298 = vld [vmem:[#allocation2 + $0x48] sm:$0xff]
        %v2299 = vld [vmem:[#allocation2 + $0x50] sm:$0xff]
        %v2300 = vld [vmem:[#allocation2 + $0x58] sm:$0xff]
        %v2313 = vunpack.c.l.b16 %v2277
        %v2314 = vunpack.c.l.b16 %v2278
        %v2315 = vunpack.c.l.b16 %v2279
        %v2316 = vunpack.c.l.b16 %v2280
        %v2317 = vunpack.c.l.b16 %v2281
        %v2318 = vunpack.c.l.b16 %v2282
        %v2319 = vunpack.c.l.b16 %v2283
        %v2320 = vunpack.c.l.b16 %v2284
        %v2321 = vunpack.c.l.b16 %v2285
        %v2322 = vunpack.c.l.b16 %v2286
        %v2323 = vunpack.c.l.b16 %v2287
        %v2324 = vunpack.c.l.b16 %v2288
        %v2325 = vpack.c.b16 %v2314, %v2313
        %v2326 = vpack.c.b16 %v2316, %v2315
        %v2327 = vpack.c.b16 %v2318, %v2317
        %v2328 = vpack.c.b16 %v2320, %v2319
        %v2329 = vpack.c.b16 %v2322, %v2321
        %v2330 = vpack.c.b16 %v2324, %v2323
        %v2332 = vsel %vm355, %v2325, 0
        %v2335 = vsel %vm355, %v2326, 0
        %v2338 = vsel %vm355, %v2327, 0
        %v2341 = vsel %vm355, %v2328, 0
        %v2344 = vsel %vm355, %v2329, 0
        %v2347 = vsel %vm355, %v2330, 0
        %v2350 = vsel %vm380, %v2275, 0
        %2352 = vmatprep.subr.bf16.mxu0 0
        %2353 = vmatpush1.bf16.msra.mxu0 %v2350
        %2354 = vmatprep.subr.bf16.mxu0 0
        %2355 = vmatpush1.bf16.msra.mxu0 0
        %2356 = vmatprep.subr.bf16.mxu0 0
        %2357 = vmatpush1.bf16.msra.mxu0 0
        %2358 = vmatprep.subr.bf16.mxu0 0
        %2359 = vmatpush1.bf16.msra.mxu0 0
        %2360 = vmatprep.subr.bf16.mxu0 0
        %2361 = vmatpush1.bf16.msra.mxu0 0
        %2362 = vmatprep.subr.bf16.mxu0 0
        %2363 = vmatpush1.bf16.msra.mxu0 0
        %2364 = vmatprep.subr.bf16.mxu0 0
        %2365 = vmatpush1.bf16.msra.mxu0 0
        %2366 = vmatprep.subr.bf16.mxu0 0
        %2367 = vmatpush1.bf16.msra.mxu0 0
        %2368 = vmatprep.subr.bf16.mxu0 0
        %2369 = vmatpush1.bf16.msra.mxu0 0
        %2370 = vmatprep.subr.bf16.mxu0 0
        %2371 = vmatpush1.bf16.msra.mxu0 0
        %2372 = vmatprep.subr.bf16.mxu0 0
        %2373 = vmatpush1.bf16.msra.mxu0 0
        %2374 = vmatprep.subr.bf16.mxu0 0
        %2375 = vmatpush1.bf16.msra.mxu0 0
        %2376 = vmatprep.subr.bf16.mxu0 0
        %2377 = vmatpush1.bf16.msra.mxu0 0
        %2378 = vmatprep.subr.bf16.mxu0 0
        %2379 = vmatpush1.bf16.msra.mxu0 0
        %2380 = vmatprep.subr.bf16.mxu0 0
        %2381 = vmatpush1.bf16.msra.mxu0 0
        %2382 = vmatprep.subr.bf16.mxu0 0
        %2383 = vmatpush1.bf16.msra.mxu0 0
        %2384 = vmatprep.mubr.bf16.mxu0 0
        %2385 = vmatmul.mubr.bf16.gmra.mrb[0].mxu0 %v2332
        %v2386 = vpop.f32.mrb[0].mxu0
        %v2387 = vadd.f32 0.0, %v2386
        %v2388 = vpop.f32.mrb[0].mxu0
        %v2389 = vpop.f32.mrb[0].mxu0
        %v2390 = vadd.f32 0.0, %v2389
        %v2391 = vpop.f32.mrb[0].mxu0
        %2392 = vmatprep.mubr.bf16.mxu0 0
        %2393 = vmatmul.mubr.bf16.gmra.mrb[0].mxu0 %v2335
        %v2394 = vpop.f32.mrb[0].mxu0
        %v2395 = vadd.f32 0.0, %v2394
        %v2396 = vpop.f32.mrb[0].mxu0
        %v2397 = vpop.f32.mrb[0].mxu0
        %v2398 = vadd.f32 0.0, %v2397
        %v2399 = vpop.f32.mrb[0].mxu0
        %2400 = vmatprep.mubr.bf16.mxu0 0
        %2401 = vmatmul.mubr.bf16.gmra.mrb[0].mxu0 %v2338
        %v2402 = vpop.f32.mrb[0].mxu0
        %v2403 = vadd.f32 0.0, %v2402
        %v2404 = vpop.f32.mrb[0].mxu0
        %v2405 = vpop.f32.mrb[0].mxu0
        %v2406 = vadd.f32 0.0, %v2405
        %v2407 = vpop.f32.mrb[0].mxu0
        %2408 = vmatprep.mubr.bf16.mxu0 0
        %2409 = vmatmul.mubr.bf16.gmra.mrb[0].mxu0 %v2341
        %v2410 = vpop.f32.mrb[0].mxu0
        %v2411 = vadd.f32 0.0, %v2410
        %v2412 = vpop.f32.mrb[0].mxu0
        %v2413 = vpop.f32.mrb[0].mxu0
        %v2414 = vadd.f32 0.0, %v2413
        %v2415 = vpop.f32.mrb[0].mxu0
        %2416 = vmatprep.mubr.bf16.mxu0 0
        %2417 = vmatmul.mubr.bf16.gmra.mrb[0].mxu0 %v2344
        %v2418 = vpop.f32.mrb[0].mxu0
        %v2419 = vadd.f32 0.0, %v2418
        %v2420 = vpop.f32.mrb[0].mxu0
        %v2421 = vpop.f32.mrb[0].mxu0
        %v2422 = vadd.f32 0.0, %v2421
        %v2423 = vpop.f32.mrb[0].mxu0
        %2424 = vmatprep.mubr.bf16.mxu0 0
        %2425 = vmatmul.mubr.bf16.gmra.mrb[0].mxu0 %v2347
        %v2426 = vpop.f32.mrb[0].mxu0
        %v2427 = vadd.f32 0.0, %v2426
        %v2428 = vpop.f32.mrb[0].mxu0
        %v2429 = vpop.f32.mrb[0].mxu0
        %v2430 = vadd.f32 0.0, %v2429
        %v2431 = vpop.f32.mrb[0].mxu0
        %2432 = vdwg.mxu0
        %v2433 = vadd.f32 %v2289, %v2387
        %v2434 = vadd.f32 %v2290, %v2390
        %v2435 = vadd.f32 %v2291, %v2395
        %v2436 = vadd.f32 %v2292, %v2398
        %v2437 = vadd.f32 %v2293, %v2403
        %v2438 = vadd.f32 %v2294, %v2406
        %v2439 = vadd.f32 %v2295, %v2411
        %v2440 = vadd.f32 %v2296, %v2414
        %v2441 = vadd.f32 %v2297, %v2419
        %v2442 = vadd.f32 %v2298, %v2422
        %v2443 = vadd.f32 %v2299, %v2427
        %v2444 = vadd.f32 %v2300, %v2430
        %2445 = vst [vmem:[#allocation2] sm:$0xff] %v2433
        %2446 = vst [vmem:[#allocation2 + $0x8] sm:$0xff] %v2434
        %2447 = vst [vmem:[#allocation2 + $0x10] sm:$0xff] %v2435
        %2448 = vst [vmem:[#allocation2 + $0x18] sm:$0xff] %v2436
        %2449 = vst [vmem:[#allocation2 + $0x20] sm:$0xff] %v2437
        %2450 = vst [vmem:[#allocation2 + $0x28] sm:$0xff] %v2438
        %2451 = vst [vmem:[#allocation2 + $0x30] sm:$0xff] %v2439
        %2452 = vst [vmem:[#allocation2 + $0x38] sm:$0xff] %v2440
        %2453 = vst [vmem:[#allocation2 + $0x40] sm:$0xff] %v2441
        %2454 = vst [vmem:[#allocation2 + $0x48] sm:$0xff] %v2442
        %2455 = vst [vmem:[#allocation2 + $0x50] sm:$0xff] %v2443
        %2456 = vst [vmem:[#allocation2 + $0x58] sm:$0xff] %v2444
        %v2457 = vld [vmem:[%s260] sm:$0xf]
        %v2458 = vld [vmem:[%s260 + $0x4] sm:$0xf]
        %v2459 = vld [vmem:[%s260 + $0xc] sm:$0xf]
        %v2460 = vld [vmem:[%s260 + $0x10] sm:$0xf]
        %v2461 = vld [vmem:[#allocation2 + $0x60] sm:$0xff]
        %v2462 = vld [vmem:[#allocation2 + $0x68] sm:$0xff]
        %v2463 = vld [vmem:[#allocation2 + $0x70] sm:$0xff]
        %v2464 = vld [vmem:[#allocation2 + $0x78] sm:$0xff]
        %v2469 = vunpack.c.l.b16 %v2457
        %v2470 = vunpack.c.l.b16 %v2458
        %v2471 = vunpack.c.l.b16 %v2459
        %v2472 = vunpack.c.l.b16 %v2460
        %v2473 = vpack.c.b16 %v2470, %v2469
        %v2474 = vpack.c.b16 %v2472, %v2471
        %v2476 = vsel %vm355, %v2473, 0
        %v2479 = vsel %vm355, %v2474, 0
        %2481 = vmatprep.subr.bf16.mxu0 0
        %2482 = vmatpush1.bf16.msra.mxu0 %v2350
        %2483 = vmatprep.subr.bf16.mxu0 0
        %2484 = vmatpush1.bf16.msra.mxu0 0
        %2485 = vmatprep.subr.bf16.mxu0 0
        %2486 = vmatpush1.bf16.msra.mxu0 0
        %2487 = vmatprep.subr.bf16.mxu0 0
        %2488 = vmatpush1.bf16.msra.mxu0 0
        %2489 = vmatprep.subr.bf16.mxu0 0
        %2490 = vmatpush1.bf16.msra.mxu0 0
        %2491 = vmatprep.subr.bf16.mxu0 0
        %2492 = vmatpush1.bf16.msra.mxu0 0
        %2493 = vmatprep.subr.bf16.mxu0 0
        %2494 = vmatpush1.bf16.msra.mxu0 0
        %2495 = vmatprep.subr.bf16.mxu0 0
        %2496 = vmatpush1.bf16.msra.mxu0 0
        %2497 = vmatprep.subr.bf16.mxu0 0
        %2498 = vmatpush1.bf16.msra.mxu0 0
        %2499 = vmatprep.subr.bf16.mxu0 0
        %2500 = vmatpush1.bf16.msra.mxu0 0
        %2501 = vmatprep.subr.bf16.mxu0 0
        %2502 = vmatpush1.bf16.msra.mxu0 0
        %2503 = vmatprep.subr.bf16.mxu0 0
        %2504 = vmatpush1.bf16.msra.mxu0 0
        %2505 = vmatprep.subr.bf16.mxu0 0
        %2506 = vmatpush1.bf16.msra.mxu0 0
        %2507 = vmatprep.subr.bf16.mxu0 0
        %2508 = vmatpush1.bf16.msra.mxu0 0
        %2509 = vmatprep.subr.bf16.mxu0 0
        %2510 = vmatpush1.bf16.msra.mxu0 0
        %2511 = vmatprep.subr.bf16.mxu0 0
        %2512 = vmatpush1.bf16.msra.mxu0 0
        %2513 = vmatprep.mubr.bf16.mxu0 0
        %2514 = vmatmul.mubr.bf16.gmra.mrb[0].mxu0 %v2476
        %v2515 = vpop.f32.mrb[0].mxu0
        %v2516 = vadd.f32 0.0, %v2515
        %v2517 = vpop.f32.mrb[0].mxu0
        %v2518 = vpop.f32.mrb[0].mxu0
        %v2519 = vadd.f32 0.0, %v2518
        %v2520 = vpop.f32.mrb[0].mxu0
        %2521 = vmatprep.mubr.bf16.mxu0 0
        %2522 = vmatmul.mubr.bf16.gmra.mrb[0].mxu0 %v2479
        %v2523 = vpop.f32.mrb[0].mxu0
        %v2524 = vadd.f32 0.0, %v2523
        %v2525 = vpop.f32.mrb[0].mxu0
        %v2526 = vpop.f32.mrb[0].mxu0
        %v2527 = vadd.f32 0.0, %v2526
        %v2528 = vpop.f32.mrb[0].mxu0
        %2529 = vdwg.mxu0
        %v2530 = vadd.f32 %v2461, %v2516
        %v2531 = vadd.f32 %v2462, %v2519
        %v2532 = vadd.f32 %v2463, %v2524
        %v2533 = vadd.f32 %v2464, %v2527
        %2534 = vst [vmem:[#allocation2 + $0x60] sm:$0xff] %v2530
        %2535 = vst [vmem:[#allocation2 + $0x68] sm:$0xff] %v2531
        %2536 = vst [vmem:[#allocation2 + $0x70] sm:$0xff] %v2532
        %2537 = vst [vmem:[#allocation2 + $0x78] sm:$0xff] %v2533
        %s2538 = scalar_lea.vmem %s2, 14
        %v2539 = vld [vmem:[%s2538] sm:$0x3]
        %v2540 = vld [vmem:[%s2276] sm:$0xf]
        %v2541 = vld [vmem:[%s2276 + $0x4] sm:$0xf]
        %v2542 = vld [vmem:[%s2276 + $0x8] sm:$0x1]
        %v2543 = vld [vmem:[%s2276 + $0xc] sm:$0xf]
        %v2544 = vld [vmem:[%s2276 + $0x10] sm:$0xf]
        %v2545 = vld [vmem:[%s2276 + $0x14] sm:$0x1]
        %v2546 = vld [vmem:[%s2276 + $0x18] sm:$0xf]
        %v2547 = vld [vmem:[%s2276 + $0x1c] sm:$0xf]
        %v2548 = vld [vmem:[%s2276 + $0x20] sm:$0x1]
        %v2549 = vld [vmem:[%s2276 + $0x24] sm:$0xf]
        %v2550 = vld [vmem:[%s2276 + $0x28] sm:$0xf]
        %v2551 = vld [vmem:[%s2276 + $0x2c] sm:$0x1]
        %v2552 = vld [vmem:[%s2276 + $0x30] sm:$0xf]
        %v2553 = vld [vmem:[%s2276 + $0x34] sm:$0xf]
        %v2554 = vld [vmem:[%s2276 + $0x38] sm:$0x1]
        %v2555 = vld [vmem:[%s2276 + $0x3c] sm:$0xf]
        %v2556 = vld [vmem:[%s2276 + $0x40] sm:$0xf]
        %v2557 = vld [vmem:[%s2276 + $0x44] sm:$0x1]
        %v2559 = vshrl.u32 %v2540, 16
        %v2561 = vrot.slane %v2559, 4
        %v2562 = vshll.u32 %v2540, 16
        %v2564 = vrot.slane %v2562, 5
        %v2565 = vor.u32 %v2561, %v2564
        %v2566 = vrot.slane %v2565, 4
        %v2568 = vshll.u32 %v2541, 16
        %v2570 = vrot.slane %v2568, 5
        %v2571 = vsel %vm541, %v2566, %v2570
        %v2572 = vshrl.u32 %v2541, 16
        %v2574 = vrot.slane %v2572, 4
        %v2575 = vor.u32 %v2574, %v2570
        %v2576 = vrot.slane %v2575, 4
        %v2578 = vshll.u32 %v2542, 16
        %v2580 = vrot.slane %v2578, 5
        %v2581 = vsel %vm541, %v2576, %v2580
        %v2583 = vshrl.u32 %v2543, 16
        %v2585 = vrot.slane %v2583, 4
        %v2586 = vshll.u32 %v2543, 16
        %v2588 = vrot.slane %v2586, 5
        %v2589 = vor.u32 %v2585, %v2588
        %v2590 = vrot.slane %v2589, 4
        %v2592 = vshll.u32 %v2544, 16
        %v2594 = vrot.slane %v2592, 5
        %v2595 = vsel %vm541, %v2590, %v2594
        %v2596 = vshrl.u32 %v2544, 16
        %v2598 = vrot.slane %v2596, 4
        %v2599 = vor.u32 %v2598, %v2594
        %v2600 = vrot.slane %v2599, 4
        %v2602 = vshll.u32 %v2545, 16
        %v2604 = vrot.slane %v2602, 5
        %v2605 = vsel %vm541, %v2600, %v2604
        %v2607 = vshrl.u32 %v2546, 16
        %v2609 = vrot.slane %v2607, 4
        %v2610 = vshll.u32 %v2546, 16
        %v2612 = vrot.slane %v2610, 5
        %v2613 = vor.u32 %v2609, %v2612
        %v2614 = vrot.slane %v2613, 4
        %v2616 = vshll.u32 %v2547, 16
        %v2618 = vrot.slane %v2616, 5
        %v2619 = vsel %vm541, %v2614, %v2618
        %v2620 = vshrl.u32 %v2547, 16
        %v2622 = vrot.slane %v2620, 4
        %v2623 = vor.u32 %v2622, %v2618
        %v2624 = vrot.slane %v2623, 4
        %v2626 = vshll.u32 %v2548, 16
        %v2628 = vrot.slane %v2626, 5
        %v2629 = vsel %vm541, %v2624, %v2628
        %v2631 = vshrl.u32 %v2549, 16
        %v2633 = vrot.slane %v2631, 4
        %v2634 = vshll.u32 %v2549, 16
        %v2636 = vrot.slane %v2634, 5
        %v2637 = vor.u32 %v2633, %v2636
        %v2638 = vrot.slane %v2637, 4
        %v2640 = vshll.u32 %v2550, 16
        %v2642 = vrot.slane %v2640, 5
        %v2643 = vsel %vm541, %v2638, %v2642
        %v2644 = vshrl.u32 %v2550, 16
        %v2646 = vrot.slane %v2644, 4
        %v2647 = vor.u32 %v2646, %v2642
        %v2648 = vrot.slane %v2647, 4
        %v2650 = vshll.u32 %v2551, 16
        %v2652 = vrot.slane %v2650, 5
        %v2653 = vsel %vm541, %v2648, %v2652
        %v2655 = vshrl.u32 %v2552, 16
        %v2657 = vrot.slane %v2655, 4
        %v2658 = vshll.u32 %v2552, 16
        %v2660 = vrot.slane %v2658, 5
        %v2661 = vor.u32 %v2657, %v2660
        %v2662 = vrot.slane %v2661, 4
        %v2664 = vshll.u32 %v2553, 16
        %v2666 = vrot.slane %v2664, 5
        %v2667 = vsel %vm541, %v2662, %v2666
        %v2668 = vshrl.u32 %v2553, 16
        %v2670 = vrot.slane %v2668, 4
        %v2671 = vor.u32 %v2670, %v2666
        %v2672 = vrot.slane %v2671, 4
        %v2674 = vshll.u32 %v2554, 16
        %v2676 = vrot.slane %v2674, 5
        %v2677 = vsel %vm541, %v2672, %v2676
        %v2679 = vshrl.u32 %v2555, 16
        %v2681 = vrot.slane %v2679, 4
        %v2682 = vshll.u32 %v2555, 16
        %v2684 = vrot.slane %v2682, 5
        %v2685 = vor.u32 %v2681, %v2684
        %v2686 = vrot.slane %v2685, 4
        %v2688 = vshll.u32 %v2556, 16
        %v2690 = vrot.slane %v2688, 5
        %v2691 = vsel %vm541, %v2686, %v2690
        %v2692 = vshrl.u32 %v2556, 16
        %v2694 = vrot.slane %v2692, 4
        %v2695 = vor.u32 %v2694, %v2690
        %v2696 = vrot.slane %v2695, 4
        %v2698 = vshll.u32 %v2557, 16
        %v2700 = vrot.slane %v2698, 5
        %v2701 = vsel %vm541, %v2696, %v2700
        %v2702 = vld [vmem:[#allocation2] sm:$0xff]
        %v2703 = vld [vmem:[#allocation2 + $0x8] sm:$0xff]
        %v2704 = vld [vmem:[#allocation2 + $0x10] sm:$0xff]
        %v2705 = vld [vmem:[#allocation2 + $0x18] sm:$0xff]
        %v2706 = vld [vmem:[#allocation2 + $0x20] sm:$0xff]
        %v2707 = vld [vmem:[#allocation2 + $0x28] sm:$0xff]
        %v2708 = vld [vmem:[#allocation2 + $0x30] sm:$0xff]
        %v2709 = vld [vmem:[#allocation2 + $0x38] sm:$0xff]
        %v2710 = vld [vmem:[#allocation2 + $0x40] sm:$0xff]
        %v2711 = vld [vmem:[#allocation2 + $0x48] sm:$0xff]
        %v2712 = vld [vmem:[#allocation2 + $0x50] sm:$0xff]
        %v2713 = vld [vmem:[#allocation2 + $0x58] sm:$0xff]
        %v2714 = vunpack.c.l.b16 %v2571
        %v2715 = vunpack.c.l.b16 %v2581
        %v2716 = vunpack.c.l.b16 %v2595
        %v2717 = vunpack.c.l.b16 %v2605
        %v2718 = vunpack.c.l.b16 %v2619
        %v2719 = vunpack.c.l.b16 %v2629
        %v2720 = vunpack.c.l.b16 %v2643
        %v2721 = vunpack.c.l.b16 %v2653
        %v2722 = vunpack.c.l.b16 %v2667
        %v2723 = vunpack.c.l.b16 %v2677
        %v2724 = vunpack.c.l.b16 %v2691
        %v2725 = vunpack.c.l.b16 %v2701
        %v2726 = vpack.c.b16 %v2715, %v2714
        %v2727 = vpack.c.b16 %v2717, %v2716
        %v2728 = vpack.c.b16 %v2719, %v2718
        %v2729 = vpack.c.b16 %v2721, %v2720
        %v2730 = vpack.c.b16 %v2723, %v2722
        %v2731 = vpack.c.b16 %v2725, %v2724
        %v2733 = vsel %vm355, %v2726, 0
        %v2736 = vsel %vm355, %v2727, 0
        %v2739 = vsel %vm355, %v2728, 0
        %v2742 = vsel %vm355, %v2729, 0
        %v2745 = vsel %vm355, %v2730, 0
        %v2748 = vsel %vm355, %v2731, 0
        %v2751 = vsel %vm380, %v2539, 0
        %2753 = vmatprep.subr.bf16.mxu0 0
        %2754 = vmatpush1.bf16.msra.mxu0 %v2751
        %2755 = vmatprep.subr.bf16.mxu0 0
        %2756 = vmatpush1.bf16.msra.mxu0 0
        %2757 = vmatprep.subr.bf16.mxu0 0
        %2758 = vmatpush1.bf16.msra.mxu0 0
        %2759 = vmatprep.subr.bf16.mxu0 0
        %2760 = vmatpush1.bf16.msra.mxu0 0
        %2761 = vmatprep.subr.bf16.mxu0 0
        %2762 = vmatpush1.bf16.msra.mxu0 0
        %2763 = vmatprep.subr.bf16.mxu0 0
        %2764 = vmatpush1.bf16.msra.mxu0 0
        %2765 = vmatprep.subr.bf16.mxu0 0
        %2766 = vmatpush1.bf16.msra.mxu0 0
        %2767 = vmatprep.subr.bf16.mxu0 0
        %2768 = vmatpush1.bf16.msra.mxu0 0
        %2769 = vmatprep.subr.bf16.mxu0 0
        %2770 = vmatpush1.bf16.msra.mxu0 0
        %2771 = vmatprep.subr.bf16.mxu0 0
        %2772 = vmatpush1.bf16.msra.mxu0 0
        %2773 = vmatprep.subr.bf16.mxu0 0
        %2774 = vmatpush1.bf16.msra.mxu0 0
        %2775 = vmatprep.subr.bf16.mxu0 0
        %2776 = vmatpush1.bf16.msra.mxu0 0
        %2777 = vmatprep.subr.bf16.mxu0 0
        %2778 = vmatpush1.bf16.msra.mxu0 0
        %2779 = vmatprep.subr.bf16.mxu0 0
        %2780 = vmatpush1.bf16.msra.mxu0 0
        %2781 = vmatprep.subr.bf16.mxu0 0
        %2782 = vmatpush1.bf16.msra.mxu0 0
        %2783 = vmatprep.subr.bf16.mxu0 0
        %2784 = vmatpush1.bf16.msra.mxu0 0
        %2785 = vmatprep.mubr.bf16.mxu0 0
        %2786 = vmatmul.mubr.bf16.gmra.mrb[0].mxu0 %v2733
        %v2787 = vpop.f32.mrb[0].mxu0
        %v2788 = vadd.f32 0.0, %v2787
        %v2789 = vpop.f32.mrb[0].mxu0
        %v2790 = vpop.f32.mrb[0].mxu0
        %v2791 = vadd.f32 0.0, %v2790
        %v2792 = vpop.f32.mrb[0].mxu0
        %2793 = vmatprep.mubr.bf16.mxu0 0
        %2794 = vmatmul.mubr.bf16.gmra.mrb[0].mxu0 %v2736
        %v2795 = vpop.f32.mrb[0].mxu0
        %v2796 = vadd.f32 0.0, %v2795
        %v2797 = vpop.f32.mrb[0].mxu0
        %v2798 = vpop.f32.mrb[0].mxu0
        %v2799 = vadd.f32 0.0, %v2798
        %v2800 = vpop.f32.mrb[0].mxu0
        %2801 = vmatprep.mubr.bf16.mxu0 0
        %2802 = vmatmul.mubr.bf16.gmra.mrb[0].mxu0 %v2739
        %v2803 = vpop.f32.mrb[0].mxu0
        %v2804 = vadd.f32 0.0, %v2803
        %v2805 = vpop.f32.mrb[0].mxu0
        %v2806 = vpop.f32.mrb[0].mxu0
        %v2807 = vadd.f32 0.0, %v2806
        %v2808 = vpop.f32.mrb[0].mxu0
        %2809 = vmatprep.mubr.bf16.mxu0 0
        %2810 = vmatmul.mubr.bf16.gmra.mrb[0].mxu0 %v2742
        %v2811 = vpop.f32.mrb[0].mxu0
        %v2812 = vadd.f32 0.0, %v2811
        %v2813 = vpop.f32.mrb[0].mxu0
        %v2814 = vpop.f32.mrb[0].mxu0
        %v2815 = vadd.f32 0.0, %v2814
        %v2816 = vpop.f32.mrb[0].mxu0
        %2817 = vmatprep.mubr.bf16.mxu0 0
        %2818 = vmatmul.mubr.bf16.gmra.mrb[0].mxu0 %v2745
        %v2819 = vpop.f32.mrb[0].mxu0
        %v2820 = vadd.f32 0.0, %v2819
        %v2821 = vpop.f32.mrb[0].mxu0
        %v2822 = vpop.f32.mrb[0].mxu0
        %v2823 = vadd.f32 0.0, %v2822
        %v2824 = vpop.f32.mrb[0].mxu0
        %2825 = vmatprep.mubr.bf16.mxu0 0
        %2826 = vmatmul.mubr.bf16.gmra.mrb[0].mxu0 %v2748
        %v2827 = vpop.f32.mrb[0].mxu0
        %v2828 = vadd.f32 0.0, %v2827
        %v2829 = vpop.f32.mrb[0].mxu0
        %v2830 = vpop.f32.mrb[0].mxu0
        %v2831 = vadd.f32 0.0, %v2830
        %v2832 = vpop.f32.mrb[0].mxu0
        %2833 = vdwg.mxu0
        %v2834 = vadd.f32 %v2702, %v2788
        %v2835 = vadd.f32 %v2703, %v2791
        %v2836 = vadd.f32 %v2704, %v2796
        %v2837 = vadd.f32 %v2705, %v2799
        %v2838 = vadd.f32 %v2706, %v2804
        %v2839 = vadd.f32 %v2707, %v2807
        %v2840 = vadd.f32 %v2708, %v2812
        %v2841 = vadd.f32 %v2709, %v2815
        %v2842 = vadd.f32 %v2710, %v2820
        %v2843 = vadd.f32 %v2711, %v2823
        %v2844 = vadd.f32 %v2712, %v2828
        %v2845 = vadd.f32 %v2713, %v2831
        %2846 = vst [vmem:[#allocation2] sm:$0xff] %v2834
        %2847 = vst [vmem:[#allocation2 + $0x8] sm:$0xff] %v2835
        %2848 = vst [vmem:[#allocation2 + $0x10] sm:$0xff] %v2836
        %2849 = vst [vmem:[#allocation2 + $0x18] sm:$0xff] %v2837
        %2850 = vst [vmem:[#allocation2 + $0x20] sm:$0xff] %v2838
        %2851 = vst [vmem:[#allocation2 + $0x28] sm:$0xff] %v2839
        %2852 = vst [vmem:[#allocation2 + $0x30] sm:$0xff] %v2840
        %2853 = vst [vmem:[#allocation2 + $0x38] sm:$0xff] %v2841
        %2854 = vst [vmem:[#allocation2 + $0x40] sm:$0xff] %v2842
        %2855 = vst [vmem:[#allocation2 + $0x48] sm:$0xff] %v2843
        %2856 = vst [vmem:[#allocation2 + $0x50] sm:$0xff] %v2844
        %2857 = vst [vmem:[#allocation2 + $0x58] sm:$0xff] %v2845
        %v2858 = vld [vmem:[%s260] sm:$0xf]
        %v2859 = vld [vmem:[%s260 + $0x4] sm:$0xf]
        %v2860 = vld [vmem:[%s260 + $0x8] sm:$0x1]
        %v2861 = vld [vmem:[%s260 + $0xc] sm:$0xf]
        %v2862 = vld [vmem:[%s260 + $0x10] sm:$0xf]
        %v2863 = vld [vmem:[%s260 + $0x14] sm:$0x1]
        %v2865 = vshrl.u32 %v2858, 16
        %v2867 = vrot.slane %v2865, 4
        %v2868 = vshll.u32 %v2858, 16
        %v2870 = vrot.slane %v2868, 5
        %v2871 = vor.u32 %v2867, %v2870
        %v2872 = vrot.slane %v2871, 4
        %v2874 = vshll.u32 %v2859, 16
        %v2876 = vrot.slane %v2874, 5
        %v2877 = vsel %vm541, %v2872, %v2876
        %v2878 = vshrl.u32 %v2859, 16
        %v2880 = vrot.slane %v2878, 4
        %v2881 = vor.u32 %v2880, %v2876
        %v2882 = vrot.slane %v2881, 4
        %v2884 = vshll.u32 %v2860, 16
        %v2886 = vrot.slane %v2884, 5
        %v2887 = vsel %vm541, %v2882, %v2886
        %v2889 = vshrl.u32 %v2861, 16
        %v2891 = vrot.slane %v2889, 4
        %v2892 = vshll.u32 %v2861, 16
        %v2894 = vrot.slane %v2892, 5
        %v2895 = vor.u32 %v2891, %v2894
        %v2896 = vrot.slane %v2895, 4
        %v2898 = vshll.u32 %v2862, 16
        %v2900 = vrot.slane %v2898, 5
        %v2901 = vsel %vm541, %v2896, %v2900
        %v2902 = vshrl.u32 %v2862, 16
        %v2904 = vrot.slane %v2902, 4
        %v2905 = vor.u32 %v2904, %v2900
        %v2906 = vrot.slane %v2905, 4
        %v2908 = vshll.u32 %v2863, 16
        %v2910 = vrot.slane %v2908, 5
        %v2911 = vsel %vm541, %v2906, %v2910
        %v2912 = vld [vmem:[#allocation2 + $0x60] sm:$0xff]
        %v2913 = vld [vmem:[#allocation2 + $0x68] sm:$0xff]
        %v2914 = vld [vmem:[#allocation2 + $0x70] sm:$0xff]
        %v2915 = vld [vmem:[#allocation2 + $0x78] sm:$0xff]
        %v2916 = vunpack.c.l.b16 %v2877
        %v2917 = vunpack.c.l.b16 %v2887
        %v2918 = vunpack.c.l.b16 %v2901
        %v2919 = vunpack.c.l.b16 %v2911
        %v2920 = vpack.c.b16 %v2917, %v2916
        %v2921 = vpack.c.b16 %v2919, %v2918
        %v2923 = vsel %vm355, %v2920, 0
        %v2926 = vsel %vm355, %v2921, 0
        %2928 = vmatprep.subr.bf16.mxu0 0
        %2929 = vmatpush1.bf16.msra.mxu0 %v2751
        %2930 = vmatprep.subr.bf16.mxu0 0
        %2931 = vmatpush1.bf16.msra.mxu0 0
        %2932 = vmatprep.subr.bf16.mxu0 0
        %2933 = vmatpush1.bf16.msra.mxu0 0
        %2934 = vmatprep.subr.bf16.mxu0 0
        %2935 = vmatpush1.bf16.msra.mxu0 0
        %2936 = vmatprep.subr.bf16.mxu0 0
        %2937 = vmatpush1.bf16.msra.mxu0 0
        %2938 = vmatprep.subr.bf16.mxu0 0
        %2939 = vmatpush1.bf16.msra.mxu0 0
        %2940 = vmatprep.subr.bf16.mxu0 0
        %2941 = vmatpush1.bf16.msra.mxu0 0
        %2942 = vmatprep.subr.bf16.mxu0 0
        %2943 = vmatpush1.bf16.msra.mxu0 0
        %2944 = vmatprep.subr.bf16.mxu0 0
        %2945 = vmatpush1.bf16.msra.mxu0 0
        %2946 = vmatprep.subr.bf16.mxu0 0
        %2947 = vmatpush1.bf16.msra.mxu0 0
        %2948 = vmatprep.subr.bf16.mxu0 0
        %2949 = vmatpush1.bf16.msra.mxu0 0
        %2950 = vmatprep.subr.bf16.mxu0 0
        %2951 = vmatpush1.bf16.msra.mxu0 0
        %2952 = vmatprep.subr.bf16.mxu0 0
        %2953 = vmatpush1.bf16.msra.mxu0 0
        %2954 = vmatprep.subr.bf16.mxu0 0
        %2955 = vmatpush1.bf16.msra.mxu0 0
        %2956 = vmatprep.subr.bf16.mxu0 0
        %2957 = vmatpush1.bf16.msra.mxu0 0
        %2958 = vmatprep.subr.bf16.mxu0 0
        %2959 = vmatpush1.bf16.msra.mxu0 0
        %2960 = vmatprep.mubr.bf16.mxu0 0
        %2961 = vmatmul.mubr.bf16.gmra.mrb[0].mxu0 %v2923
        %v2962 = vpop.f32.mrb[0].mxu0
        %v2963 = vadd.f32 0.0, %v2962
        %v2964 = vpop.f32.mrb[0].mxu0
        %v2965 = vpop.f32.mrb[0].mxu0
        %v2966 = vadd.f32 0.0, %v2965
        %v2967 = vpop.f32.mrb[0].mxu0
        %2968 = vmatprep.mubr.bf16.mxu0 0
        %2969 = vmatmul.mubr.bf16.gmra.mrb[0].mxu0 %v2926
        %v2970 = vpop.f32.mrb[0].mxu0
        %v2971 = vadd.f32 0.0, %v2970
        %v2972 = vpop.f32.mrb[0].mxu0
        %v2973 = vpop.f32.mrb[0].mxu0
        %v2974 = vadd.f32 0.0, %v2973
        %v2975 = vpop.f32.mrb[0].mxu0
        %2976 = vdwg.mxu0
        %v2977 = vadd.f32 %v2912, %v2963
        %v2978 = vadd.f32 %v2913, %v2966
        %v2979 = vadd.f32 %v2914, %v2971
        %v2980 = vadd.f32 %v2915, %v2974
        %2981 = vst [vmem:[#allocation2 + $0x60] sm:$0xff] %v2977
        %2982 = vst [vmem:[#allocation2 + $0x68] sm:$0xff] %v2978
        %2983 = vst [vmem:[#allocation2 + $0x70] sm:$0xff] %v2979
        %2984 = vst [vmem:[#allocation2 + $0x78] sm:$0xff] %v2980
        %s2985 = scalar_lea.vmem %s2, 16
        %v2986 = vld [vmem:[%s2985] sm:$0x3]
        %v2987 = vld [vmem:[%s2276] sm:$0xe]
        %v2988 = vld [vmem:[%s2276 + $0x4] sm:$0xf]
        %v2989 = vld [vmem:[%s2276 + $0x8] sm:$0x1]
        %v2990 = vld [vmem:[%s2276 + $0xc] sm:$0xe]
        %v2991 = vld [vmem:[%s2276 + $0x10] sm:$0xf]
        %v2992 = vld [vmem:[%s2276 + $0x14] sm:$0x1]
        %v2993 = vld [vmem:[%s2276 + $0x18] sm:$0xe]
        %v2994 = vld [vmem:[%s2276 + $0x1c] sm:$0xf]
        %v2995 = vld [vmem:[%s2276 + $0x20] sm:$0x1]
        %v2996 = vld [vmem:[%s2276 + $0x24] sm:$0xe]
        %v2997 = vld [vmem:[%s2276 + $0x28] sm:$0xf]
        %v2998 = vld [vmem:[%s2276 + $0x2c] sm:$0x1]
        %v2999 = vld [vmem:[%s2276 + $0x30] sm:$0xe]
        %v3000 = vld [vmem:[%s2276 + $0x34] sm:$0xf]
        %v3001 = vld [vmem:[%s2276 + $0x38] sm:$0x1]
        %v3002 = vld [vmem:[%s2276 + $0x3c] sm:$0xe]
        %v3003 = vld [vmem:[%s2276 + $0x40] sm:$0xf]
        %v3004 = vld [vmem:[%s2276 + $0x44] sm:$0x1]
        %v3023 = vrot.slane %v2987, 5
        %v3024 = vrot.slane %v3023, 4
        %v3025 = vrot.slane %v2988, 5
        %v3026 = vsel %vm982, %v3024, %v3025
        %v3027 = vrot.slane %v3025, 4
        %v3028 = vrot.slane %v2989, 5
        %v3029 = vsel %vm982, %v3027, %v3028
        %v3030 = vrot.slane %v2990, 5
        %v3031 = vrot.slane %v3030, 4
        %v3032 = vrot.slane %v2991, 5
        %v3033 = vsel %vm982, %v3031, %v3032
        %v3034 = vrot.slane %v3032, 4
        %v3035 = vrot.slane %v2992, 5
        %v3036 = vsel %vm982, %v3034, %v3035
        %v3037 = vrot.slane %v2993, 5
        %v3038 = vrot.slane %v3037, 4
        %v3039 = vrot.slane %v2994, 5
        %v3040 = vsel %vm982, %v3038, %v3039
        %v3041 = vrot.slane %v3039, 4
        %v3042 = vrot.slane %v2995, 5
        %v3043 = vsel %vm982, %v3041, %v3042
        %v3044 = vrot.slane %v2996, 5
        %v3045 = vrot.slane %v3044, 4
        %v3046 = vrot.slane %v2997, 5
        %v3047 = vsel %vm982, %v3045, %v3046
        %v3048 = vrot.slane %v3046, 4
        %v3049 = vrot.slane %v2998, 5
        %v3050 = vsel %vm982, %v3048, %v3049
        %v3051 = vrot.slane %v2999, 5
        %v3052 = vrot.slane %v3051, 4
        %v3053 = vrot.slane %v3000, 5
        %v3054 = vsel %vm982, %v3052, %v3053
        %v3055 = vrot.slane %v3053, 4
        %v3056 = vrot.slane %v3001, 5
        %v3057 = vsel %vm982, %v3055, %v3056
        %v3058 = vrot.slane %v3002, 5
        %v3059 = vrot.slane %v3058, 4
        %v3060 = vrot.slane %v3003, 5
        %v3061 = vsel %vm982, %v3059, %v3060
        %v3062 = vrot.slane %v3060, 4
        %v3063 = vrot.slane %v3004, 5
        %v3064 = vsel %vm982, %v3062, %v3063
        %v3065 = vld [vmem:[#allocation2] sm:$0xff]
        %v3066 = vld [vmem:[#allocation2 + $0x8] sm:$0xff]
        %v3067 = vld [vmem:[#allocation2 + $0x10] sm:$0xff]
        %v3068 = vld [vmem:[#allocation2 + $0x18] sm:$0xff]
        %v3069 = vld [vmem:[#allocation2 + $0x20] sm:$0xff]
        %v3070 = vld [vmem:[#allocation2 + $0x28] sm:$0xff]
        %v3071 = vld [vmem:[#allocation2 + $0x30] sm:$0xff]
        %v3072 = vld [vmem:[#allocation2 + $0x38] sm:$0xff]
        %v3073 = vld [vmem:[#allocation2 + $0x40] sm:$0xff]
        %v3074 = vld [vmem:[#allocation2 + $0x48] sm:$0xff]
        %v3075 = vld [vmem:[#allocation2 + $0x50] sm:$0xff]
        %v3076 = vld [vmem:[#allocation2 + $0x58] sm:$0xff]
        %v3077 = vunpack.c.l.b16 %v3026
        %v3078 = vunpack.c.l.b16 %v3029
        %v3079 = vunpack.c.l.b16 %v3033
        %v3080 = vunpack.c.l.b16 %v3036
        %v3081 = vunpack.c.l.b16 %v3040
        %v3082 = vunpack.c.l.b16 %v3043
        %v3083 = vunpack.c.l.b16 %v3047
        %v3084 = vunpack.c.l.b16 %v3050
        %v3085 = vunpack.c.l.b16 %v3054
        %v3086 = vunpack.c.l.b16 %v3057
        %v3087 = vunpack.c.l.b16 %v3061
        %v3088 = vunpack.c.l.b16 %v3064
        %v3089 = vpack.c.b16 %v3078, %v3077
        %v3090 = vpack.c.b16 %v3080, %v3079
        %v3091 = vpack.c.b16 %v3082, %v3081
        %v3092 = vpack.c.b16 %v3084, %v3083
        %v3093 = vpack.c.b16 %v3086, %v3085
        %v3094 = vpack.c.b16 %v3088, %v3087
        %v3096 = vsel %vm355, %v3089, 0
        %v3099 = vsel %vm355, %v3090, 0
        %v3102 = vsel %vm355, %v3091, 0
        %v3105 = vsel %vm355, %v3092, 0
        %v3108 = vsel %vm355, %v3093, 0
        %v3111 = vsel %vm355, %v3094, 0
        %v3114 = vsel %vm380, %v2986, 0
        %3116 = vmatprep.subr.bf16.mxu0 0
        %3117 = vmatpush1.bf16.msra.mxu0 %v3114
        %3118 = vmatprep.subr.bf16.mxu0 0
        %3119 = vmatpush1.bf16.msra.mxu0 0
        %3120 = vmatprep.subr.bf16.mxu0 0
        %3121 = vmatpush1.bf16.msra.mxu0 0
        %3122 = vmatprep.subr.bf16.mxu0 0
        %3123 = vmatpush1.bf16.msra.mxu0 0
        %3124 = vmatprep.subr.bf16.mxu0 0
        %3125 = vmatpush1.bf16.msra.mxu0 0
        %3126 = vmatprep.subr.bf16.mxu0 0
        %3127 = vmatpush1.bf16.msra.mxu0 0
        %3128 = vmatprep.subr.bf16.mxu0 0
        %3129 = vmatpush1.bf16.msra.mxu0 0
        %3130 = vmatprep.subr.bf16.mxu0 0
        %3131 = vmatpush1.bf16.msra.mxu0 0
        %3132 = vmatprep.subr.bf16.mxu0 0
        %3133 = vmatpush1.bf16.msra.mxu0 0
        %3134 = vmatprep.subr.bf16.mxu0 0
        %3135 = vmatpush1.bf16.msra.mxu0 0
        %3136 = vmatprep.subr.bf16.mxu0 0
        %3137 = vmatpush1.bf16.msra.mxu0 0
        %3138 = vmatprep.subr.bf16.mxu0 0
        %3139 = vmatpush1.bf16.msra.mxu0 0
        %3140 = vmatprep.subr.bf16.mxu0 0
        %3141 = vmatpush1.bf16.msra.mxu0 0
        %3142 = vmatprep.subr.bf16.mxu0 0
        %3143 = vmatpush1.bf16.msra.mxu0 0
        %3144 = vmatprep.subr.bf16.mxu0 0
        %3145 = vmatpush1.bf16.msra.mxu0 0
        %3146 = vmatprep.subr.bf16.mxu0 0
        %3147 = vmatpush1.bf16.msra.mxu0 0
        %3148 = vmatprep.mubr.bf16.mxu0 0
        %3149 = vmatmul.mubr.bf16.gmra.mrb[0].mxu0 %v3096
        %v3150 = vpop.f32.mrb[0].mxu0
        %v3151 = vadd.f32 0.0, %v3150
        %v3152 = vpop.f32.mrb[0].mxu0
        %v3153 = vpop.f32.mrb[0].mxu0
        %v3154 = vadd.f32 0.0, %v3153
        %v3155 = vpop.f32.mrb[0].mxu0
        %3156 = vmatprep.mubr.bf16.mxu0 0
        %3157 = vmatmul.mubr.bf16.gmra.mrb[0].mxu0 %v3099
        %v3158 = vpop.f32.mrb[0].mxu0
        %v3159 = vadd.f32 0.0, %v3158
        %v3160 = vpop.f32.mrb[0].mxu0
        %v3161 = vpop.f32.mrb[0].mxu0
        %v3162 = vadd.f32 0.0, %v3161
        %v3163 = vpop.f32.mrb[0].mxu0
        %3164 = vmatprep.mubr.bf16.mxu0 0
        %3165 = vmatmul.mubr.bf16.gmra.mrb[0].mxu0 %v3102
        %v3166 = vpop.f32.mrb[0].mxu0
        %v3167 = vadd.f32 0.0, %v3166
        %v3168 = vpop.f32.mrb[0].mxu0
        %v3169 = vpop.f32.mrb[0].mxu0
        %v3170 = vadd.f32 0.0, %v3169
        %v3171 = vpop.f32.mrb[0].mxu0
        %3172 = vmatprep.mubr.bf16.mxu0 0
        %3173 = vmatmul.mubr.bf16.gmra.mrb[0].mxu0 %v3105
        %v3174 = vpop.f32.mrb[0].mxu0
        %v3175 = vadd.f32 0.0, %v3174
        %v3176 = vpop.f32.mrb[0].mxu0
        %v3177 = vpop.f32.mrb[0].mxu0
        %v3178 = vadd.f32 0.0, %v3177
        %v3179 = vpop.f32.mrb[0].mxu0
        %3180 = vmatprep.mubr.bf16.mxu0 0
        %3181 = vmatmul.mubr.bf16.gmra.mrb[0].mxu0 %v3108
        %v3182 = vpop.f32.mrb[0].mxu0
        %v3183 = vadd.f32 0.0, %v3182
        %v3184 = vpop.f32.mrb[0].mxu0
        %v3185 = vpop.f32.mrb[0].mxu0
        %v3186 = vadd.f32 0.0, %v3185
        %v3187 = vpop.f32.mrb[0].mxu0
        %3188 = vmatprep.mubr.bf16.mxu0 0
        %3189 = vmatmul.mubr.bf16.gmra.mrb[0].mxu0 %v3111
        %v3190 = vpop.f32.mrb[0].mxu0
        %v3191 = vadd.f32 0.0, %v3190
        %v3192 = vpop.f32.mrb[0].mxu0
        %v3193 = vpop.f32.mrb[0].mxu0
        %v3194 = vadd.f32 0.0, %v3193
        %v3195 = vpop.f32.mrb[0].mxu0
        %3196 = vdwg.mxu0
        %v3197 = vadd.f32 %v3065, %v3151
        %v3198 = vadd.f32 %v3066, %v3154
        %v3199 = vadd.f32 %v3067, %v3159
        %v3200 = vadd.f32 %v3068, %v3162
        %v3201 = vadd.f32 %v3069, %v3167
        %v3202 = vadd.f32 %v3070, %v3170
        %v3203 = vadd.f32 %v3071, %v3175
        %v3204 = vadd.f32 %v3072, %v3178
        %v3205 = vadd.f32 %v3073, %v3183
        %v3206 = vadd.f32 %v3074, %v3186
        %v3207 = vadd.f32 %v3075, %v3191
        %v3208 = vadd.f32 %v3076, %v3194
        %3209 = vst [vmem:[#allocation2] sm:$0xff] %v3197
        %3210 = vst [vmem:[#allocation2 + $0x8] sm:$0xff] %v3198
        %3211 = vst [vmem:[#allocation2 + $0x10] sm:$0xff] %v3199
        %3212 = vst [vmem:[#allocation2 + $0x18] sm:$0xff] %v3200
        %3213 = vst [vmem:[#allocation2 + $0x20] sm:$0xff] %v3201
        %3214 = vst [vmem:[#allocation2 + $0x28] sm:$0xff] %v3202
        %3215 = vst [vmem:[#allocation2 + $0x30] sm:$0xff] %v3203
        %3216 = vst [vmem:[#allocation2 + $0x38] sm:$0xff] %v3204
        %3217 = vst [vmem:[#allocation2 + $0x40] sm:$0xff] %v3205
        %3218 = vst [vmem:[#allocation2 + $0x48] sm:$0xff] %v3206
        %3219 = vst [vmem:[#allocation2 + $0x50] sm:$0xff] %v3207
        %3220 = vst [vmem:[#allocation2 + $0x58] sm:$0xff] %v3208
        %v3221 = vld [vmem:[%s260] sm:$0xe]
        %v3222 = vld [vmem:[%s260 + $0x4] sm:$0xf]
        %v3223 = vld [vmem:[%s260 + $0x8] sm:$0x1]
        %v3224 = vld [vmem:[%s260 + $0xc] sm:$0xe]
        %v3225 = vld [vmem:[%s260 + $0x10] sm:$0xf]
        %v3226 = vld [vmem:[%s260 + $0x14] sm:$0x1]
        %v3233 = vrot.slane %v3221, 5
        %v3234 = vrot.slane %v3233, 4
        %v3235 = vrot.slane %v3222, 5
        %v3236 = vsel %vm982, %v3234, %v3235
        %v3237 = vrot.slane %v3235, 4
        %v3238 = vrot.slane %v3223, 5
        %v3239 = vsel %vm982, %v3237, %v3238
        %v3240 = vrot.slane %v3224, 5
        %v3241 = vrot.slane %v3240, 4
        %v3242 = vrot.slane %v3225, 5
        %v3243 = vsel %vm982, %v3241, %v3242
        %v3244 = vrot.slane %v3242, 4
        %v3245 = vrot.slane %v3226, 5
        %v3246 = vsel %vm982, %v3244, %v3245
        %v3247 = vld [vmem:[#allocation2 + $0x60] sm:$0xff]
        %v3248 = vld [vmem:[#allocation2 + $0x68] sm:$0xff]
        %v3249 = vld [vmem:[#allocation2 + $0x70] sm:$0xff]
        %v3250 = vld [vmem:[#allocation2 + $0x78] sm:$0xff]
        %v3251 = vunpack.c.l.b16 %v3236
        %v3252 = vunpack.c.l.b16 %v3239
        %v3253 = vunpack.c.l.b16 %v3243
        %v3254 = vunpack.c.l.b16 %v3246
        %v3255 = vpack.c.b16 %v3252, %v3251
        %v3256 = vpack.c.b16 %v3254, %v3253
        %v3258 = vsel %vm355, %v3255, 0
        %v3261 = vsel %vm355, %v3256, 0
        %3263 = vmatprep.subr.bf16.mxu0 0
        %3264 = vmatpush1.bf16.msra.mxu0 %v3114
        %3265 = vmatprep.subr.bf16.mxu0 0
        %3266 = vmatpush1.bf16.msra.mxu0 0
        %3267 = vmatprep.subr.bf16.mxu0 0
        %3268 = vmatpush1.bf16.msra.mxu0 0
        %3269 = vmatprep.subr.bf16.mxu0 0
        %3270 = vmatpush1.bf16.msra.mxu0 0
        %3271 = vmatprep.subr.bf16.mxu0 0
        %3272 = vmatpush1.bf16.msra.mxu0 0
        %3273 = vmatprep.subr.bf16.mxu0 0
        %3274 = vmatpush1.bf16.msra.mxu0 0
        %3275 = vmatprep.subr.bf16.mxu0 0
        %3276 = vmatpush1.bf16.msra.mxu0 0
        %3277 = vmatprep.subr.bf16.mxu0 0
        %3278 = vmatpush1.bf16.msra.mxu0 0
        %3279 = vmatprep.subr.bf16.mxu0 0
        %3280 = vmatpush1.bf16.msra.mxu0 0
        %3281 = vmatprep.subr.bf16.mxu0 0
        %3282 = vmatpush1.bf16.msra.mxu0 0
        %3283 = vmatprep.subr.bf16.mxu0 0
        %3284 = vmatpush1.bf16.msra.mxu0 0
        %3285 = vmatprep.subr.bf16.mxu0 0
        %3286 = vmatpush1.bf16.msra.mxu0 0
        %3287 = vmatprep.subr.bf16.mxu0 0
        %3288 = vmatpush1.bf16.msra.mxu0 0
        %3289 = vmatprep.subr.bf16.mxu0 0
        %3290 = vmatpush1.bf16.msra.mxu0 0
        %3291 = vmatprep.subr.bf16.mxu0 0
        %3292 = vmatpush1.bf16.msra.mxu0 0
        %3293 = vmatprep.subr.bf16.mxu0 0
        %3294 = vmatpush1.bf16.msra.mxu0 0
        %3295 = vmatprep.mubr.bf16.mxu0 0
        %3296 = vmatmul.mubr.bf16.gmra.mrb[0].mxu0 %v3258
        %v3297 = vpop.f32.mrb[0].mxu0
        %v3298 = vadd.f32 0.0, %v3297
        %v3299 = vpop.f32.mrb[0].mxu0
        %v3300 = vpop.f32.mrb[0].mxu0
        %v3301 = vadd.f32 0.0, %v3300
        %v3302 = vpop.f32.mrb[0].mxu0
        %3303 = vmatprep.mubr.bf16.mxu0 0
        %3304 = vmatmul.mubr.bf16.gmra.mrb[0].mxu0 %v3261
        %v3305 = vpop.f32.mrb[0].mxu0
        %v3306 = vadd.f32 0.0, %v3305
        %v3307 = vpop.f32.mrb[0].mxu0
        %v3308 = vpop.f32.mrb[0].mxu0
        %v3309 = vadd.f32 0.0, %v3308
        %v3310 = vpop.f32.mrb[0].mxu0
        %3311 = vdwg.mxu0
        %v3312 = vadd.f32 %v3247, %v3298
        %v3313 = vadd.f32 %v3248, %v3301
        %v3314 = vadd.f32 %v3249, %v3306
        %v3315 = vadd.f32 %v3250, %v3309
        %3316 = vst [vmem:[#allocation2 + $0x60] sm:$0xff] %v3312
        %3317 = vst [vmem:[#allocation2 + $0x68] sm:$0xff] %v3313
        %3318 = vst [vmem:[#allocation2 + $0x70] sm:$0xff] %v3314
        %3319 = vst [vmem:[#allocation2 + $0x78] sm:$0xff] %v3315
        %v3320 = vld [vmem:[#allocation2] sm:$0xff]
        %v3321 = vld [vmem:[#allocation2 + $0x8] sm:$0xff]
        %v3322 = vld [vmem:[#allocation2 + $0x10] sm:$0xff]
        %v3323 = vld [vmem:[#allocation2 + $0x18] sm:$0xff]
        %v3324 = vld [vmem:[#allocation2 + $0x20] sm:$0xff]
        %v3325 = vld [vmem:[#allocation2 + $0x28] sm:$0xff]
        %v3326 = vld [vmem:[#allocation2 + $0x30] sm:$0xff]
        %v3327 = vld [vmem:[#allocation2 + $0x38] sm:$0xff]
        %v3328 = vld [vmem:[#allocation2 + $0x40] sm:$0xff]
        %v3329 = vld [vmem:[#allocation2 + $0x48] sm:$0xff]
        %v3330 = vld [vmem:[#allocation2 + $0x50] sm:$0xff]
        %v3331 = vld [vmem:[#allocation2 + $0x58] sm:$0xff]
        %v3332 = vld [vmem:[#allocation2 + $0x60] sm:$0xff]
        %v3333 = vld [vmem:[#allocation2 + $0x68] sm:$0xff]
        %v3334 = vld [vmem:[#allocation2 + $0x70] sm:$0xff]
        %v3335 = vld [vmem:[#allocation2 + $0x78] sm:$0xff]
        %v3336 = vadd.f32 %v3320, %v3321
        %v3337 = vadd.f32 %v3336, %v3322
        %v3338 = vadd.f32 %v3337, %v3323
        %v3339 = vadd.f32 %v3338, %v3324
        %v3340 = vadd.f32 %v3339, %v3325
        %v3341 = vadd.f32 %v3340, %v3326
        %v3342 = vadd.f32 %v3341, %v3327
        %v3343 = vadd.f32 %v3342, %v3328
        %v3344 = vadd.f32 %v3343, %v3329
        %v3345 = vadd.f32 %v3344, %v3330
        %v3346 = vadd.f32 %v3345, %v3331
        %v3347 = vadd.f32 %v3346, %v3332
        %v3348 = vadd.f32 %v3347, %v3333
        %v3349 = vadd.f32 %v3348, %v3334
        %v3350 = vadd.f32 %v3349, %v3335
        %v3351 = vrot.slane %v3350, 4
        %v3352 = vadd.f32 %v3350, %v3351
        %v3353 = vrot.slane %v3352, 2
        %v3354 = vadd.f32 %v3352, %v3353
        %v3355 = vrot.slane %v3354, 1
        %v3356 = vadd.f32 %v3354, %v3355
        %v3357 = vrcp.pop 128.0
        %v3358 = vmul.f32 %v3356, %v3357
        %v3359 = vsub.f32 %v3320, %v3358
        %v3360 = vsub.f32 %v3321, %v3358
        %v3361 = vsub.f32 %v3322, %v3358
        %v3362 = vsub.f32 %v3323, %v3358
        %v3363 = vsub.f32 %v3324, %v3358
        %v3364 = vsub.f32 %v3325, %v3358
        %v3365 = vsub.f32 %v3326, %v3358
        %v3366 = vsub.f32 %v3327, %v3358
        %v3367 = vsub.f32 %v3328, %v3358
        %v3368 = vsub.f32 %v3329, %v3358
        %v3369 = vsub.f32 %v3330, %v3358
        %v3370 = vsub.f32 %v3331, %v3358
        %v3371 = vsub.f32 %v3332, %v3358
        %v3372 = vsub.f32 %v3333, %v3358
        %v3373 = vsub.f32 %v3334, %v3358
        %v3374 = vsub.f32 %v3335, %v3358
        %v3375 = vmul.f32 %v3359, %v3359
        %v3376 = vmul.f32 %v3360, %v3360
        %v3377 = vmul.f32 %v3361, %v3361
        %v3378 = vmul.f32 %v3362, %v3362
        %v3379 = vmul.f32 %v3363, %v3363
        %v3380 = vmul.f32 %v3364, %v3364
        %v3381 = vmul.f32 %v3365, %v3365
        %v3382 = vmul.f32 %v3366, %v3366
        %v3383 = vmul.f32 %v3367, %v3367
        %v3384 = vmul.f32 %v3368, %v3368
        %v3385 = vmul.f32 %v3369, %v3369
        %v3386 = vmul.f32 %v3370, %v3370
        %v3387 = vmul.f32 %v3371, %v3371
        %v3388 = vmul.f32 %v3372, %v3372
        %v3389 = vmul.f32 %v3373, %v3373
        %v3390 = vmul.f32 %v3374, %v3374
        %v3391 = vadd.f32 %v3375, %v3376
        %v3392 = vadd.f32 %v3391, %v3377
        %v3393 = vadd.f32 %v3392, %v3378
        %v3394 = vadd.f32 %v3393, %v3379
        %v3395 = vadd.f32 %v3394, %v3380
        %v3396 = vadd.f32 %v3395, %v3381
        %v3397 = vadd.f32 %v3396, %v3382
        %v3398 = vadd.f32 %v3397, %v3383
        %v3399 = vadd.f32 %v3398, %v3384
        %v3400 = vadd.f32 %v3399, %v3385
        %v3401 = vadd.f32 %v3400, %v3386
        %v3402 = vadd.f32 %v3401, %v3387
        %v3403 = vadd.f32 %v3402, %v3388
        %v3404 = vadd.f32 %v3403, %v3389
        %v3405 = vadd.f32 %v3404, %v3390
        %v3406 = vrot.slane %v3405, 4
        %v3407 = vadd.f32 %v3405, %v3406
        %v3408 = vrot.slane %v3407, 2
        %v3409 = vadd.f32 %v3407, %v3408
        %v3410 = vrot.slane %v3409, 1
        %v3411 = vadd.f32 %v3409, %v3410
        %vm3412 = vcmask 1040384
        %v3413 = vsel %vm3412, %v3358, %v3411
        %v3414 = vsel %vm380, %v3413, 0.0
        %3415 = vst [vmem:[%s232] sm:$0xff] %v3414
        %s3416 = sand.u32 %s120, 1
        %s3417 = scalar_lea.sflag [#allocation4], %s3416
        %s3418 = sand.u32 %s120, 1
        %s3419 = smul.addr %s3418, 8
        %s3420 = scalar_lea.vmem [#allocation3], %s3419
        // Predicated region
        $region33: #{tpu_custom_call.1} parent=31 // pred_check
          %p3421 = pneg %p130
        $region34: #{tpu_custom_call.1} parent=31 // pred_check_branch
          %3423 = sbr.rel (%p3421) target = $region36
        $region35: #{tpu_custom_call.1} parent=31 // pred_region
          %s3424 = smul.u32 %s21, 2
          %s3425 = sadd.s32 %s3424, %s22
          %s3427 = ssub.s32 128, 128
          %3428 = vsyncadd %s3417, %s3427
          %s3429 = smul.addr %s3425, 128
          %s3430 = scalar_lea.hbm %s3, %s3429
          %s3432 = sshll.u32 %s3420, 4
          %s3433 = int_to_ptr.vmem [resolvable:$true] %s3432
          %3435 = dma.vmem_to_hbm [thread:$0]  %s3433, 128, %s3430, %s3417
        $region36: #{tpu_custom_call.1} parent=31 // pred_fallthru
          _
      $region32: #{tpu_custom_call.1} parent=5 // pred_fallthru
        _
      %p3436 = scmp.le.s32.totalorder 2, %s12
      // Predicated region
      $region37: #{tpu_custom_call.1} parent=5 // pred_check
        %p3437 = pneg %p3436
      $region38: #{tpu_custom_call.1} parent=5 // pred_check_branch
        %3439 = sbr.rel (%p3437) target = $region40
      $region39: #{tpu_custom_call.1} parent=5 // pred_region
        %s3440 = ssub.s32 %s12, 2
        // Predicated region
        $region41: #{tpu_custom_call.1} parent=39 // pred_check
          %p3441 = pneg %p136
        $region42: #{tpu_custom_call.1} parent=39 // pred_check_branch
          %3443 = sbr.rel (%p3441) target = $region44
        $region43: #{tpu_custom_call.1} parent=39 // pred_region
          %s3444 = sand.u32 %s121, 1
          %s3445 = scalar_lea.sflag [#allocation4], %s3444
          %s3446 = sand.u32 %s121, 1
          %s3447 = smul.addr %s3446, 8
          %s3448 = scalar_lea.vmem [#allocation3], %s3447
          %3449 = dma.done %s3445, 128
        $region44: #{tpu_custom_call.1} parent=39 // pred_fallthru
          _
      $region40: #{tpu_custom_call.1} parent=5 // pred_fallthru
        _
    $region6: #{tpu_custom_call.1} parent=1 // loop_footer
      %s16 = sadd.s32 1, %s12
    $region7: #{tpu_custom_call.1} parent=1 // loop_footer_branch
      %11 = sbr.rel target = $region3
    $region8: #{tpu_custom_call.1} parent=1 // loop_exit
      _
    %3450 = vsyncpa [#allocation4], 1
    %s3451 = scalar_lea.sflag [#allocation4], 1
    %3452 = vsyncpa %s3451, 1

</llo_original>
